<compile_context>
chip_gen: v5e
topology: v5e:2x2
jax: 0.10.0
libtpu: 0.0.40
codegen_flags: <defaults>
</compile_context>

<pallas_src>
import functools
import math
import warnings

import jax
import jax.numpy as jnp
from jax.experimental import pallas as pl
from jax.experimental.pallas import tpu as pltpu

# ---------------- BoostedLIFPopulation default hyper-parameters -------------
DT = 0.1
TAU_S = 10.0             # spike-trace time constant
TAU_DECAY = 100.0        # membrane decay time constant
THRESHOLD = 40.0
REFRAC_LENGTH = 5.0
RESET_POT = 0.0          # v.masked_fill_(s, 0)

DECAY = math.exp(-DT / TAU_DECAY)        # self.decay
TRACE_DECAY = math.exp(-DT / TAU_S)      # self.trace_decay


def _vmem_limit_bytes():
    """~75% of physical VMEM, capped at 96 MiB (=> 96 MiB on v5e/v6e, 48 MiB on v7x)."""
    try:
        cap = pltpu.get_tpu_info().vmem_capacity_bytes
        return min(int(cap) * 3 // 4, 96 * 1024 * 1024)
    except Exception:
        return 48 * 1024 * 1024   # safe on every generation


_VMEM_LIMIT = _vmem_limit_bytes()


def boosted_lif_kernel(x_ref, v_in, rc_in, tr_in,          # inputs  (VMEM)
                       v_out, s_out, rc_out, tr_out):      # outputs (VMEM)
    t = pl.program_id(1)

    # Load the initial state into the (time-resident) output blocks at the
    # first time chunk of each row tile.
    @pl.when(t == 0)
    def _():
        v_out[...] = v_in[...]
        rc_out[...] = rc_in[...]
        tr_out[...] = tr_in[...]

    tc_steps = x_ref.shape[0]            # static time-chunk length

    def step(tc, carry):
        v, rc, tr = carry                # state stays in vregs across the chunk
        x = x_ref[tc].astype(jnp.float32)
        # ---- compute_potential ----
        v = v * DECAY + jnp.where(rc > 0.0, 0.0, x)
        # ---- compute_spike ----
        s = v >= THRESHOLD
        s_out[tc] = s.astype(jnp.int8)   # lane-dense int8 spike raster
        # ---- refractory_and_reset ----
        rc = jnp.where(s, REFRAC_LENGTH, rc - DT)
        v = jnp.where(s, RESET_POT, v)
        # lower_bound is None -> no clamp.
        # ---- NeuralPopulation.forward (traces, additive_spike_trace=False) ----
        tr = jnp.where(s, 1.0, tr * TRACE_DECAY)
        return v, rc, tr

    v, rc, tr = jax.lax.fori_loop(
        0, tc_steps, step,
        (v_out[...], rc_out[...], tr_out[...]),
        unroll=True)

    # One VMEM store per state array per time chunk; HBM writeback only when
    # the row tile changes (output index_map ignores t).
    v_out[...] = v
    rc_out[...] = rc
    tr_out[...] = tr


@functools.partial(jax.jit,
                   static_argnames=("row_tile", "time_tile"),
                   donate_argnums=(1, 2, 3))
def boosted_lif_forward(x_seq, v, refrac_count, traces, *,
                        row_tile=128, time_tile=8):
    """Run T fused BoostedLIF simulation steps.

    Args:
      x_seq:        (T, R, C) f32 or bf16 input current per step.
      v:            (R, C) f32 membrane potential (state, donated).
      refrac_count: (R, C) f32 refractory counters (state, donated).
      traces:       (R, C) f32 spike traces (state, donated).

    Returns: (v_new, spike_raster_int8[T,R,C], refrac_count_new, traces_new)
    """
    T, R, C = x_seq.shape
    assert R % row_tile == 0 and C % 128 == 0
    assert T % time_tile == 0

    state_spec = pl.BlockSpec((row_tile, C), lambda i, t: (i, 0))
    seq_spec = pl.BlockSpec((time_tile, row_tile, C), lambda i, t: (t, i, 0))

    out_shapes = (
        jax.ShapeDtypeStruct((R, C), jnp.float32),      # v
        jax.ShapeDtypeStruct((T, R, C), jnp.int8),      # spike raster
        jax.ShapeDtypeStruct((R, C), jnp.float32),      # refrac_count
        jax.ShapeDtypeStruct((R, C), jnp.float32),      # traces
    )

    return pl.pallas_call(
        boosted_lif_kernel,
        out_shape=out_shapes,
        grid_spec=pltpu.PrefetchScalarGridSpec(
            num_scalar_prefetch=0,
            grid=(R // row_tile, T // time_tile),       # time axis innermost
            in_specs=[seq_spec, state_spec, state_spec, state_spec],
            out_specs=[state_spec, seq_spec, state_spec, state_spec],
        ),
        # In-place state update: inputs (x=0, v=1, rc=2, tr=3) -> outputs
        # (v=0, s=1, rc=2, tr=3).
        input_output_aliases={1: 0, 2: 2, 3: 3},
        compiler_params=pltpu.CompilerParams(
            dimension_semantics=("parallel", "arbitrary"),
            vmem_limit_bytes=_VMEM_LIMIT,
        ),
    )(x_seq, v, refrac_count, traces)


def boosted_lif_reference(x_seq, v0, rc0, tr0):
    """Pure-JAX reference (lax.scan over timesteps); f32 arithmetic."""
    def step(carry, x):
        v, rc, tr = carry
        x = x.astype(jnp.float32)
        v = v * DECAY + jnp.where(rc > 0.0, 0.0, x)
        s = v >= THRESHOLD
        rc = jnp.where(s, REFRAC_LENGTH, rc - DT)
        v = jnp.where(s, RESET_POT, v)
        tr = jnp.where(s, 1.0, tr * TRACE_DECAY)
        return (v, rc, tr), s.astype(jnp.int8)

    (v, rc, tr), s_seq = jax.lax.scan(step, (v0, rc0, tr0), x_seq)
    return v, s_seq, rc, tr


def _check(x_seq, R, C, T):
    """Run kernel + reference on the same input dtype and compare."""
    def fresh_state():
        # State right after reset_state_variables(): v = 0, refrac_count = 0,
        # traces = 0.  Fresh arrays each time because the kernel donates them.
        return (jnp.zeros((R, C), jnp.float32),
                jnp.zeros((R, C), jnp.float32),
                jnp.zeros((R, C), jnp.float32))

    v_ref, s_ref, rc_ref, tr_ref = boosted_lif_reference(x_seq, *fresh_state())

    v1, s_raster, rc1, tr1 = boosted_lif_forward(x_seq, *fresh_state())
    jax.block_until_ready((v1, s_raster, rc1, tr1))

    assert v1.shape == (R, C) and v1.dtype == jnp.float32
    assert s_raster.shape == (T, R, C) and s_raster.dtype == jnp.int8
    assert rc1.shape == (R, C) and tr1.shape == (R, C)
    assert bool(jnp.all(jnp.isfinite(v1)))
    assert int(jnp.sum(s_raster.astype(jnp.int32))) > 0

    spike_agree = float(jnp.mean((s_raster == s_ref).astype(jnp.float32)))
    v_agree = float(jnp.mean((jnp.abs(v1 - v_ref) <= 1e-3).astype(jnp.float32)))
    tr_agree = float(jnp.mean((jnp.abs(tr1 - tr_ref) <= 1e-3).astype(jnp.float32)))
    rc_agree = float(jnp.mean((jnp.abs(rc1 - rc_ref) <= 1e-3).astype(jnp.float32)))
    assert spike_agree > 0.999, spike_agree
    assert v_agree > 0.999, v_agree
    assert tr_agree > 0.999, tr_agree
    assert rc_agree > 0.999, rc_agree


if __name__ == "__main__":
    # Donation is fully consumed by the aliased outputs; silence the (harmless)
    # warning in case a backend declines to alias.
    warnings.filterwarnings("ignore", message="Some donated buffers were not usable")

    key = jax.random.PRNGKey(0)

    # Small deterministic example: 16 fused timesteps over a 256x256 neuron
    # slab (lane-dense last dim, 2 row tiles of 128 -> both TCs on v7x),
    # time-chunked 8 steps per grid iteration.
    T, R, C = 16, 256, 256
    x_f32 = 10.0 * jax.random.uniform(key, (T, R, C), dtype=jnp.float32)

    # 1) f32 input: bit-exact module semantics.
    _check(x_f32, R, C, T)

    # 2) bf16 input: halves the dominant HBM read (state / arithmetic stay f32).
    _check(x_f32.astype(jnp.bfloat16), R, C, T)

    print("KERNEL_OK")
</pallas_src>

<mosaic_0001>
module attributes {stable_mosaic.version = 11 : i64} {
  func.func @boosted_lif_kernel(%arg0: i32, %arg1: i32, %arg2: memref<8x128x256xf32, #tpu.memory_space<vmem>>, %arg3: memref<128x256xf32, #tpu.memory_space<vmem>>, %arg4: memref<128x256xf32, #tpu.memory_space<vmem>>, %arg5: memref<128x256xf32, #tpu.memory_space<vmem>>, %arg6: memref<128x256xf32, #tpu.memory_space<vmem>>, %arg7: memref<8x128x256xi8, #tpu.memory_space<vmem>>, %arg8: memref<128x256xf32, #tpu.memory_space<vmem>>, %arg9: memref<128x256xf32, #tpu.memory_space<vmem>>) attributes {dimension_semantics = [#tpu.dimension_semantics<parallel>, #tpu.dimension_semantics<arbitrary>], iteration_bounds = array<i64: 2, 2>, scalar_prefetch = 0 : i64, scratch_operands = 0 : i64, tpu.core_type = #tpu.core_type<tc>, window_params = [{transform_indices = @transform_0, window_bounds = array<i64: 8, 128, 256>}, {transform_indices = @transform_1, window_bounds = array<i64: 128, 256>}, {transform_indices = @transform_2, window_bounds = array<i64: 128, 256>}, {transform_indices = @transform_3, window_bounds = array<i64: 128, 256>}, {transform_indices = @transform_4, window_bounds = array<i64: 128, 256>}, {transform_indices = @transform_5, window_bounds = array<i64: 8, 128, 256>}, {transform_indices = @transform_6, window_bounds = array<i64: 128, 256>}, {transform_indices = @transform_7, window_bounds = array<i64: 128, 256>}]} {
    %c0_i32 = arith.constant 0 : i32
    %0 = arith.cmpi eq, %arg1, %c0_i32 : i32
    %1 = arith.extui %0 : i1 to i32
    %c0_i32_0 = arith.constant 0 : i32
    %2 = arith.cmpi ne, %1, %c0_i32_0 : i32
    scf.if %2 {
      %c0_116 = arith.constant 0 : index
      %c0_117 = arith.constant 0 : index
      %225 = vector.load %arg3[%c0_116, %c0_117] : memref<128x256xf32, #tpu.memory_space<vmem>>, vector<128x256xf32>
      %c0_118 = arith.constant 0 : index
      %c0_119 = arith.constant 0 : index
      %226 = vector.load %arg6[%c0_118, %c0_119] : memref<128x256xf32, #tpu.memory_space<vmem>>, vector<128x256xf32>
      tpu.vector_store %arg6[%c0_118, %c0_119], %225 {strides = array<i32>} : memref<128x256xf32, #tpu.memory_space<vmem>>, vector<128x256xf32>,
      %c0_120 = arith.constant 0 : index
      %c0_121 = arith.constant 0 : index
      %227 = vector.load %arg4[%c0_120, %c0_121] : memref<128x256xf32, #tpu.memory_space<vmem>>, vector<128x256xf32>
      %c0_122 = arith.constant 0 : index
      %c0_123 = arith.constant 0 : index
      %228 = vector.load %arg8[%c0_122, %c0_123] : memref<128x256xf32, #tpu.memory_space<vmem>>, vector<128x256xf32>
      tpu.vector_store %arg8[%c0_122, %c0_123], %227 {strides = array<i32>} : memref<128x256xf32, #tpu.memory_space<vmem>>, vector<128x256xf32>,
      %c0_124 = arith.constant 0 : index
      %c0_125 = arith.constant 0 : index
      %229 = vector.load %arg5[%c0_124, %c0_125] : memref<128x256xf32, #tpu.memory_space<vmem>>, vector<128x256xf32>
      %c0_126 = arith.constant 0 : index
      %c0_127 = arith.constant 0 : index
      %230 = vector.load %arg9[%c0_126, %c0_127] : memref<128x256xf32, #tpu.memory_space<vmem>>, vector<128x256xf32>
      tpu.vector_store %arg9[%c0_126, %c0_127], %229 {strides = array<i32>} : memref<128x256xf32, #tpu.memory_space<vmem>>, vector<128x256xf32>,
    } else {
    }
    %c0 = arith.constant 0 : index
    %c0_1 = arith.constant 0 : index
    %3 = vector.load %arg6[%c0, %c0_1] : memref<128x256xf32, #tpu.memory_space<vmem>>, vector<128x256xf32>
    %c0_2 = arith.constant 0 : index
    %c0_3 = arith.constant 0 : index
    %4 = vector.load %arg8[%c0_2, %c0_3] : memref<128x256xf32, #tpu.memory_space<vmem>>, vector<128x256xf32>
    %c0_4 = arith.constant 0 : index
    %c0_5 = arith.constant 0 : index
    %5 = vector.load %arg9[%c0_4, %c0_5] : memref<128x256xf32, #tpu.memory_space<vmem>>, vector<128x256xf32>
    %c0_i32_6 = arith.constant 0 : i32
    %6 = arith.index_cast %c0_i32_6 : i32 to index
    %c0_7 = arith.constant 0 : index
    %c0_8 = arith.constant 0 : index
    %7 = vector.load %arg2[%6, %c0_7, %c0_8] : memref<8x128x256xf32, #tpu.memory_space<vmem>>, vector<1x128x256xf32>
    %8 = vector.shape_cast %7 : vector<1x128x256xf32> to vector<128x256xf32>
    %cst = arith.constant 0.999000489 : f32
    %9 = vector.broadcast %cst : f32 to vector<128x256xf32>
    %10 = arith.mulf %3, %9 : vector<128x256xf32>
    %cst_9 = arith.constant 0.000000e+00 : f32
    %11 = vector.broadcast %cst_9 : f32 to vector<128x256xf32>
    %12 = arith.cmpf ogt, %4, %11 : vector<128x256xf32>
    %cst_10 = arith.constant 0.000000e+00 : f32
    %13 = vector.broadcast %cst_10 : f32 to vector<128x256xf32>
    %14 = arith.select %12, %13, %8 : vector<128x256xi1>, vector<128x256xf32>
    %15 = arith.addf %10, %14 : vector<128x256xf32>
    %cst_11 = arith.constant 4.000000e+01 : f32
    %16 = vector.broadcast %cst_11 : f32 to vector<128x256xf32>
    %17 = arith.cmpf oge, %15, %16 : vector<128x256xf32>
    %18 = arith.extui %17 : vector<128x256xi1> to vector<128x256xi8>
    %19 = arith.index_cast %c0_i32_6 : i32 to index
    %c0_12 = arith.constant 0 : index
    %c0_13 = arith.constant 0 : index
    %20 = vector.load %arg7[%19, %c0_12, %c0_13] : memref<8x128x256xi8, #tpu.memory_space<vmem>>, vector<1x128x256xi8>
    %21 = vector.shape_cast %20 : vector<1x128x256xi8> to vector<128x256xi8>
    %22 = vector.shape_cast %18 : vector<128x256xi8> to vector<1x128x256xi8>
    tpu.vector_store %arg7[%19, %c0_12, %c0_13], %22 {strides = array<i32>} : memref<8x128x256xi8, #tpu.memory_space<vmem>>, vector<1x128x256xi8>,
    %cst_14 = arith.constant 1.000000e-01 : f32
    %23 = vector.broadcast %cst_14 : f32 to vector<128x256xf32>
    %24 = arith.subf %4, %23 : vector<128x256xf32>
    %cst_15 = arith.constant 5.000000e+00 : f32
    %25 = vector.broadcast %cst_15 : f32 to vector<128x256xf32>
    %26 = arith.select %17, %25, %24 : vector<128x256xi1>, vector<128x256xf32>
    %cst_16 = arith.constant 0.000000e+00 : f32
    %27 = vector.broadcast %cst_16 : f32 to vector<128x256xf32>
    %28 = arith.select %17, %27, %15 : vector<128x256xi1>, vector<128x256xf32>
    %cst_17 = arith.constant 0.990049839 : f32
    %29 = vector.broadcast %cst_17 : f32 to vector<128x256xf32>
    %30 = arith.mulf %5, %29 : vector<128x256xf32>
    %cst_18 = arith.constant 1.000000e+00 : f32
    %31 = vector.broadcast %cst_18 : f32 to vector<128x256xf32>
    %32 = arith.select %17, %31, %30 : vector<128x256xi1>, vector<128x256xf32>
    %c1_i32 = arith.constant 1 : i32
    %33 = arith.index_cast %c1_i32 : i32 to index
    %c0_19 = arith.constant 0 : index
    %c0_20 = arith.constant 0 : index
    %34 = vector.load %arg2[%33, %c0_19, %c0_20] : memref<8x128x256xf32, #tpu.memory_space<vmem>>, vector<1x128x256xf32>
    %35 = vector.shape_cast %34 : vector<1x128x256xf32> to vector<128x256xf32>
    %cst_21 = arith.constant 0.999000489 : f32
    %36 = vector.broadcast %cst_21 : f32 to vector<128x256xf32>
    %37 = arith.mulf %28, %36 : vector<128x256xf32>
    %cst_22 = arith.constant 0.000000e+00 : f32
    %38 = vector.broadcast %cst_22 : f32 to vector<128x256xf32>
    %39 = arith.cmpf ogt, %26, %38 : vector<128x256xf32>
    %cst_23 = arith.constant 0.000000e+00 : f32
    %40 = vector.broadcast %cst_23 : f32 to vector<128x256xf32>
    %41 = arith.select %39, %40, %35 : vector<128x256xi1>, vector<128x256xf32>
    %42 = arith.addf %37, %41 : vector<128x256xf32>
    %cst_24 = arith.constant 4.000000e+01 : f32
    %43 = vector.broadcast %cst_24 : f32 to vector<128x256xf32>
    %44 = arith.cmpf oge, %42, %43 : vector<128x256xf32>
    %45 = arith.extui %44 : vector<128x256xi1> to vector<128x256xi8>
    %46 = arith.index_cast %c1_i32 : i32 to index
    %c0_25 = arith.constant 0 : index
    %c0_26 = arith.constant 0 : index
    %47 = vector.load %arg7[%46, %c0_25, %c0_26] : memref<8x128x256xi8, #tpu.memory_space<vmem>>, vector<1x128x256xi8>
    %48 = vector.shape_cast %47 : vector<1x128x256xi8> to vector<128x256xi8>
    %49 = vector.shape_cast %45 : vector<128x256xi8> to vector<1x128x256xi8>
    tpu.vector_store %arg7[%46, %c0_25, %c0_26], %49 {strides = array<i32>} : memref<8x128x256xi8, #tpu.memory_space<vmem>>, vector<1x128x256xi8>,
    %cst_27 = arith.constant 1.000000e-01 : f32
    %50 = vector.broadcast %cst_27 : f32 to vector<128x256xf32>
    %51 = arith.subf %26, %50 : vector<128x256xf32>
    %cst_28 = arith.constant 5.000000e+00 : f32
    %52 = vector.broadcast %cst_28 : f32 to vector<128x256xf32>
    %53 = arith.select %44, %52, %51 : vector<128x256xi1>, vector<128x256xf32>
    %cst_29 = arith.constant 0.000000e+00 : f32
    %54 = vector.broadcast %cst_29 : f32 to vector<128x256xf32>
    %55 = arith.select %44, %54, %42 : vector<128x256xi1>, vector<128x256xf32>
    %cst_30 = arith.constant 0.990049839 : f32
    %56 = vector.broadcast %cst_30 : f32 to vector<128x256xf32>
    %57 = arith.mulf %32, %56 : vector<128x256xf32>
    %cst_31 = arith.constant 1.000000e+00 : f32
    %58 = vector.broadcast %cst_31 : f32 to vector<128x256xf32>
    %59 = arith.select %44, %58, %57 : vector<128x256xi1>, vector<128x256xf32>
    %c2_i32 = arith.constant 2 : i32
    %60 = arith.index_cast %c2_i32 : i32 to index
    %c0_32 = arith.constant 0 : index
    %c0_33 = arith.constant 0 : index
    %61 = vector.load %arg2[%60, %c0_32, %c0_33] : memref<8x128x256xf32, #tpu.memory_space<vmem>>, vector<1x128x256xf32>
    %62 = vector.shape_cast %61 : vector<1x128x256xf32> to vector<128x256xf32>
    %cst_34 = arith.constant 0.999000489 : f32
    %63 = vector.broadcast %cst_34 : f32 to vector<128x256xf32>
    %64 = arith.mulf %55, %63 : vector<128x256xf32>
    %cst_35 = arith.constant 0.000000e+00 : f32
    %65 = vector.broadcast %cst_35 : f32 to vector<128x256xf32>
    %66 = arith.cmpf ogt, %53, %65 : vector<128x256xf32>
    %cst_36 = arith.constant 0.000000e+00 : f32
    %67 = vector.broadcast %cst_36 : f32 to vector<128x256xf32>
    %68 = arith.select %66, %67, %62 : vector<128x256xi1>, vector<128x256xf32>
    %69 = arith.addf %64, %68 : vector<128x256xf32>
    %cst_37 = arith.constant 4.000000e+01 : f32
    %70 = vector.broadcast %cst_37 : f32 to vector<128x256xf32>
    %71 = arith.cmpf oge, %69, %70 : vector<128x256xf32>
    %72 = arith.extui %71 : vector<128x256xi1> to vector<128x256xi8>
    %73 = arith.index_cast %c2_i32 : i32 to index
    %c0_38 = arith.constant 0 : index
    %c0_39 = arith.constant 0 : index
    %74 = vector.load %arg7[%73, %c0_38, %c0_39] : memref<8x128x256xi8, #tpu.memory_space<vmem>>, vector<1x128x256xi8>
    %75 = vector.shape_cast %74 : vector<1x128x256xi8> to vector<128x256xi8>
    %76 = vector.shape_cast %72 : vector<128x256xi8> to vector<1x128x256xi8>
    tpu.vector_store %arg7[%73, %c0_38, %c0_39], %76 {strides = array<i32>} : memref<8x128x256xi8, #tpu.memory_space<vmem>>, vector<1x128x256xi8>,
    %cst_40 = arith.constant 1.000000e-01 : f32
    %77 = vector.broadcast %cst_40 : f32 to vector<128x256xf32>
    %78 = arith.subf %53, %77 : vector<128x256xf32>
    %cst_41 = arith.constant 5.000000e+00 : f32
    %79 = vector.broadcast %cst_41 : f32 to vector<128x256xf32>
    %80 = arith.select %71, %79, %78 : vector<128x256xi1>, vector<128x256xf32>
    %cst_42 = arith.constant 0.000000e+00 : f32
    %81 = vector.broadcast %cst_42 : f32 to vector<128x256xf32>
    %82 = arith.select %71, %81, %69 : vector<128x256xi1>, vector<128x256xf32>
    %cst_43 = arith.constant 0.990049839 : f32
    %83 = vector.broadcast %cst_43 : f32 to vector<128x256xf32>
    %84 = arith.mulf %59, %83 : vector<128x256xf32>
    %cst_44 = arith.constant 1.000000e+00 : f32
    %85 = vector.broadcast %cst_44 : f32 to vector<128x256xf32>
    %86 = arith.select %71, %85, %84 : vector<128x256xi1>, vector<128x256xf32>
    %c3_i32 = arith.constant 3 : i32
    %87 = arith.index_cast %c3_i32 : i32 to index
    %c0_45 = arith.constant 0 : index
    %c0_46 = arith.constant 0 : index
    %88 = vector.load %arg2[%87, %c0_45, %c0_46] : memref<8x128x256xf32, #tpu.memory_space<vmem>>, vector<1x128x256xf32>
    %89 = vector.shape_cast %88 : vector<1x128x256xf32> to vector<128x256xf32>
    %cst_47 = arith.constant 0.999000489 : f32
    %90 = vector.broadcast %cst_47 : f32 to vector<128x256xf32>
    %91 = arith.mulf %82, %90 : vector<128x256xf32>
    %cst_48 = arith.constant 0.000000e+00 : f32
    %92 = vector.broadcast %cst_48 : f32 to vector<128x256xf32>
    %93 = arith.cmpf ogt, %80, %92 : vector<128x256xf32>
    %cst_49 = arith.constant 0.000000e+00 : f32
    %94 = vector.broadcast %cst_49 : f32 to vector<128x256xf32>
    %95 = arith.select %93, %94, %89 : vector<128x256xi1>, vector<128x256xf32>
    %96 = arith.addf %91, %95 : vector<128x256xf32>
    %cst_50 = arith.constant 4.000000e+01 : f32
    %97 = vector.broadcast %cst_50 : f32 to vector<128x256xf32>
    %98 = arith.cmpf oge, %96, %97 : vector<128x256xf32>
    %99 = arith.extui %98 : vector<128x256xi1> to vector<128x256xi8>
    %100 = arith.index_cast %c3_i32 : i32 to index
    %c0_51 = arith.constant 0 : index
    %c0_52 = arith.constant 0 : index
    %101 = vector.load %arg7[%100, %c0_51, %c0_52] : memref<8x128x256xi8, #tpu.memory_space<vmem>>, vector<1x128x256xi8>
    %102 = vector.shape_cast %101 : vector<1x128x256xi8> to vector<128x256xi8>
    %103 = vector.shape_cast %99 : vector<128x256xi8> to vector<1x128x256xi8>
    tpu.vector_store %arg7[%100, %c0_51, %c0_52], %103 {strides = array<i32>} : memref<8x128x256xi8, #tpu.memory_space<vmem>>, vector<1x128x256xi8>,
    %cst_53 = arith.constant 1.000000e-01 : f32
    %104 = vector.broadcast %cst_53 : f32 to vector<128x256xf32>
    %105 = arith.subf %80, %104 : vector<128x256xf32>
    %cst_54 = arith.constant 5.000000e+00 : f32
    %106 = vector.broadcast %cst_54 : f32 to vector<128x256xf32>
    %107 = arith.select %98, %106, %105 : vector<128x256xi1>, vector<128x256xf32>
    %cst_55 = arith.constant 0.000000e+00 : f32
    %108 = vector.broadcast %cst_55 : f32 to vector<128x256xf32>
    %109 = arith.select %98, %108, %96 : vector<128x256xi1>, vector<128x256xf32>
    %cst_56 = arith.constant 0.990049839 : f32
    %110 = vector.broadcast %cst_56 : f32 to vector<128x256xf32>
    %111 = arith.mulf %86, %110 : vector<128x256xf32>
    %cst_57 = arith.constant 1.000000e+00 : f32
    %112 = vector.broadcast %cst_57 : f32 to vector<128x256xf32>
    %113 = arith.select %98, %112, %111 : vector<128x256xi1>, vector<128x256xf32>
    %c4_i32 = arith.constant 4 : i32
    %114 = arith.index_cast %c4_i32 : i32 to index
    %c0_58 = arith.constant 0 : index
    %c0_59 = arith.constant 0 : index
    %115 = vector.load %arg2[%114, %c0_58, %c0_59] : memref<8x128x256xf32, #tpu.memory_space<vmem>>, vector<1x128x256xf32>
    %116 = vector.shape_cast %115 : vector<1x128x256xf32> to vector<128x256xf32>
    %cst_60 = arith.constant 0.999000489 : f32
    %117 = vector.broadcast %cst_60 : f32 to vector<128x256xf32>
    %118 = arith.mulf %109, %117 : vector<128x256xf32>
    %cst_61 = arith.constant 0.000000e+00 : f32
    %119 = vector.broadcast %cst_61 : f32 to vector<128x256xf32>
    %120 = arith.cmpf ogt, %107, %119 : vector<128x256xf32>
    %cst_62 = arith.constant 0.000000e+00 : f32
    %121 = vector.broadcast %cst_62 : f32 to vector<128x256xf32>
    %122 = arith.select %120, %121, %116 : vector<128x256xi1>, vector<128x256xf32>
    %123 = arith.addf %118, %122 : vector<128x256xf32>
    %cst_63 = arith.constant 4.000000e+01 : f32
    %124 = vector.broadcast %cst_63 : f32 to vector<128x256xf32>
    %125 = arith.cmpf oge, %123, %124 : vector<128x256xf32>
    %126 = arith.extui %125 : vector<128x256xi1> to vector<128x256xi8>
    %127 = arith.index_cast %c4_i32 : i32 to index
    %c0_64 = arith.constant 0 : index
    %c0_65 = arith.constant 0 : index
    %128 = vector.load %arg7[%127, %c0_64, %c0_65] : memref<8x128x256xi8, #tpu.memory_space<vmem>>, vector<1x128x256xi8>
    %129 = vector.shape_cast %128 : vector<1x128x256xi8> to vector<128x256xi8>
    %130 = vector.shape_cast %126 : vector<128x256xi8> to vector<1x128x256xi8>
    tpu.vector_store %arg7[%127, %c0_64, %c0_65], %130 {strides = array<i32>} : memref<8x128x256xi8, #tpu.memory_space<vmem>>, vector<1x128x256xi8>,
    %cst_66 = arith.constant 1.000000e-01 : f32
    %131 = vector.broadcast %cst_66 : f32 to vector<128x256xf32>
    %132 = arith.subf %107, %131 : vector<128x256xf32>
    %cst_67 = arith.constant 5.000000e+00 : f32
    %133 = vector.broadcast %cst_67 : f32 to vector<128x256xf32>
    %134 = arith.select %125, %133, %132 : vector<128x256xi1>, vector<128x256xf32>
    %cst_68 = arith.constant 0.000000e+00 : f32
    %135 = vector.broadcast %cst_68 : f32 to vector<128x256xf32>
    %136 = arith.select %125, %135, %123 : vector<128x256xi1>, vector<128x256xf32>
    %cst_69 = arith.constant 0.990049839 : f32
    %137 = vector.broadcast %cst_69 : f32 to vector<128x256xf32>
    %138 = arith.mulf %113, %137 : vector<128x256xf32>
    %cst_70 = arith.constant 1.000000e+00 : f32
    %139 = vector.broadcast %cst_70 : f32 to vector<128x256xf32>
    %140 = arith.select %125, %139, %138 : vector<128x256xi1>, vector<128x256xf32>
    %c5_i32 = arith.constant 5 : i32
    %141 = arith.index_cast %c5_i32 : i32 to index
    %c0_71 = arith.constant 0 : index
    %c0_72 = arith.constant 0 : index
    %142 = vector.load %arg2[%141, %c0_71, %c0_72] : memref<8x128x256xf32, #tpu.memory_space<vmem>>, vector<1x128x256xf32>
    %143 = vector.shape_cast %142 : vector<1x128x256xf32> to vector<128x256xf32>
    %cst_73 = arith.constant 0.999000489 : f32
    %144 = vector.broadcast %cst_73 : f32 to vector<128x256xf32>
    %145 = arith.mulf %136, %144 : vector<128x256xf32>
    %cst_74 = arith.constant 0.000000e+00 : f32
    %146 = vector.broadcast %cst_74 : f32 to vector<128x256xf32>
    %147 = arith.cmpf ogt, %134, %146 : vector<128x256xf32>
    %cst_75 = arith.constant 0.000000e+00 : f32
    %148 = vector.broadcast %cst_75 : f32 to vector<128x256xf32>
    %149 = arith.select %147, %148, %143 : vector<128x256xi1>, vector<128x256xf32>
    %150 = arith.addf %145, %149 : vector<128x256xf32>
    %cst_76 = arith.constant 4.000000e+01 : f32
    %151 = vector.broadcast %cst_76 : f32 to vector<128x256xf32>
    %152 = arith.cmpf oge, %150, %151 : vector<128x256xf32>
    %153 = arith.extui %152 : vector<128x256xi1> to vector<128x256xi8>
    %154 = arith.index_cast %c5_i32 : i32 to index
    %c0_77 = arith.constant 0 : index
    %c0_78 = arith.constant 0 : index
    %155 = vector.load %arg7[%154, %c0_77, %c0_78] : memref<8x128x256xi8, #tpu.memory_space<vmem>>, vector<1x128x256xi8>
    %156 = vector.shape_cast %155 : vector<1x128x256xi8> to vector<128x256xi8>
    %157 = vector.shape_cast %153 : vector<128x256xi8> to vector<1x128x256xi8>
    tpu.vector_store %arg7[%154, %c0_77, %c0_78], %157 {strides = array<i32>} : memref<8x128x256xi8, #tpu.memory_space<vmem>>, vector<1x128x256xi8>,
    %cst_79 = arith.constant 1.000000e-01 : f32
    %158 = vector.broadcast %cst_79 : f32 to vector<128x256xf32>
    %159 = arith.subf %134, %158 : vector<128x256xf32>
    %cst_80 = arith.constant 5.000000e+00 : f32
    %160 = vector.broadcast %cst_80 : f32 to vector<128x256xf32>
    %161 = arith.select %152, %160, %159 : vector<128x256xi1>, vector<128x256xf32>
    %cst_81 = arith.constant 0.000000e+00 : f32
    %162 = vector.broadcast %cst_81 : f32 to vector<128x256xf32>
    %163 = arith.select %152, %162, %150 : vector<128x256xi1>, vector<128x256xf32>
    %cst_82 = arith.constant 0.990049839 : f32
    %164 = vector.broadcast %cst_82 : f32 to vector<128x256xf32>
    %165 = arith.mulf %140, %164 : vector<128x256xf32>
    %cst_83 = arith.constant 1.000000e+00 : f32
    %166 = vector.broadcast %cst_83 : f32 to vector<128x256xf32>
    %167 = arith.select %152, %166, %165 : vector<128x256xi1>, vector<128x256xf32>
    %c6_i32 = arith.constant 6 : i32
    %168 = arith.index_cast %c6_i32 : i32 to index
    %c0_84 = arith.constant 0 : index
    %c0_85 = arith.constant 0 : index
    %169 = vector.load %arg2[%168, %c0_84, %c0_85] : memref<8x128x256xf32, #tpu.memory_space<vmem>>, vector<1x128x256xf32>
    %170 = vector.shape_cast %169 : vector<1x128x256xf32> to vector<128x256xf32>
    %cst_86 = arith.constant 0.999000489 : f32
    %171 = vector.broadcast %cst_86 : f32 to vector<128x256xf32>
    %172 = arith.mulf %163, %171 : vector<128x256xf32>
    %cst_87 = arith.constant 0.000000e+00 : f32
    %173 = vector.broadcast %cst_87 : f32 to vector<128x256xf32>
    %174 = arith.cmpf ogt, %161, %173 : vector<128x256xf32>
    %cst_88 = arith.constant 0.000000e+00 : f32
    %175 = vector.broadcast %cst_88 : f32 to vector<128x256xf32>
    %176 = arith.select %174, %175, %170 : vector<128x256xi1>, vector<128x256xf32>
    %177 = arith.addf %172, %176 : vector<128x256xf32>
    %cst_89 = arith.constant 4.000000e+01 : f32
    %178 = vector.broadcast %cst_89 : f32 to vector<128x256xf32>
    %179 = arith.cmpf oge, %177, %178 : vector<128x256xf32>
    %180 = arith.extui %179 : vector<128x256xi1> to vector<128x256xi8>
    %181 = arith.index_cast %c6_i32 : i32 to index
    %c0_90 = arith.constant 0 : index
    %c0_91 = arith.constant 0 : index
    %182 = vector.load %arg7[%181, %c0_90, %c0_91] : memref<8x128x256xi8, #tpu.memory_space<vmem>>, vector<1x128x256xi8>
    %183 = vector.shape_cast %182 : vector<1x128x256xi8> to vector<128x256xi8>
    %184 = vector.shape_cast %180 : vector<128x256xi8> to vector<1x128x256xi8>
    tpu.vector_store %arg7[%181, %c0_90, %c0_91], %184 {strides = array<i32>} : memref<8x128x256xi8, #tpu.memory_space<vmem>>, vector<1x128x256xi8>,
    %cst_92 = arith.constant 1.000000e-01 : f32
    %185 = vector.broadcast %cst_92 : f32 to vector<128x256xf32>
    %186 = arith.subf %161, %185 : vector<128x256xf32>
    %cst_93 = arith.constant 5.000000e+00 : f32
    %187 = vector.broadcast %cst_93 : f32 to vector<128x256xf32>
    %188 = arith.select %179, %187, %186 : vector<128x256xi1>, vector<128x256xf32>
    %cst_94 = arith.constant 0.000000e+00 : f32
    %189 = vector.broadcast %cst_94 : f32 to vector<128x256xf32>
    %190 = arith.select %179, %189, %177 : vector<128x256xi1>, vector<128x256xf32>
    %cst_95 = arith.constant 0.990049839 : f32
    %191 = vector.broadcast %cst_95 : f32 to vector<128x256xf32>
    %192 = arith.mulf %167, %191 : vector<128x256xf32>
    %cst_96 = arith.constant 1.000000e+00 : f32
    %193 = vector.broadcast %cst_96 : f32 to vector<128x256xf32>
    %194 = arith.select %179, %193, %192 : vector<128x256xi1>, vector<128x256xf32>
    %c7_i32 = arith.constant 7 : i32
    %195 = arith.index_cast %c7_i32 : i32 to index
    %c0_97 = arith.constant 0 : index
    %c0_98 = arith.constant 0 : index
    %196 = vector.load %arg2[%195, %c0_97, %c0_98] : memref<8x128x256xf32, #tpu.memory_space<vmem>>, vector<1x128x256xf32>
    %197 = vector.shape_cast %196 : vector<1x128x256xf32> to vector<128x256xf32>
    %cst_99 = arith.constant 0.999000489 : f32
    %198 = vector.broadcast %cst_99 : f32 to vector<128x256xf32>
    %199 = arith.mulf %190, %198 : vector<128x256xf32>
    %cst_100 = arith.constant 0.000000e+00 : f32
    %200 = vector.broadcast %cst_100 : f32 to vector<128x256xf32>
    %201 = arith.cmpf ogt, %188, %200 : vector<128x256xf32>
    %cst_101 = arith.constant 0.000000e+00 : f32
    %202 = vector.broadcast %cst_101 : f32 to vector<128x256xf32>
    %203 = arith.select %201, %202, %197 : vector<128x256xi1>, vector<128x256xf32>
    %204 = arith.addf %199, %203 : vector<128x256xf32>
    %cst_102 = arith.constant 4.000000e+01 : f32
    %205 = vector.broadcast %cst_102 : f32 to vector<128x256xf32>
    %206 = arith.cmpf oge, %204, %205 : vector<128x256xf32>
    %207 = arith.extui %206 : vector<128x256xi1> to vector<128x256xi8>
    %208 = arith.index_cast %c7_i32 : i32 to index
    %c0_103 = arith.constant 0 : index
    %c0_104 = arith.constant 0 : index
    %209 = vector.load %arg7[%208, %c0_103, %c0_104] : memref<8x128x256xi8, #tpu.memory_space<vmem>>, vector<1x128x256xi8>
    %210 = vector.shape_cast %209 : vector<1x128x256xi8> to vector<128x256xi8>
    %211 = vector.shape_cast %207 : vector<128x256xi8> to vector<1x128x256xi8>
    tpu.vector_store %arg7[%208, %c0_103, %c0_104], %211 {strides = array<i32>} : memref<8x128x256xi8, #tpu.memory_space<vmem>>, vector<1x128x256xi8>,
    %cst_105 = arith.constant 1.000000e-01 : f32
    %212 = vector.broadcast %cst_105 : f32 to vector<128x256xf32>
    %213 = arith.subf %188, %212 : vector<128x256xf32>
    %cst_106 = arith.constant 5.000000e+00 : f32
    %214 = vector.broadcast %cst_106 : f32 to vector<128x256xf32>
    %215 = arith.select %206, %214, %213 : vector<128x256xi1>, vector<128x256xf32>
    %cst_107 = arith.constant 0.000000e+00 : f32
    %216 = vector.broadcast %cst_107 : f32 to vector<128x256xf32>
    %217 = arith.select %206, %216, %204 : vector<128x256xi1>, vector<128x256xf32>
    %cst_108 = arith.constant 0.990049839 : f32
    %218 = vector.broadcast %cst_108 : f32 to vector<128x256xf32>
    %219 = arith.mulf %194, %218 : vector<128x256xf32>
    %cst_109 = arith.constant 1.000000e+00 : f32
    %220 = vector.broadcast %cst_109 : f32 to vector<128x256xf32>
    %221 = arith.select %206, %220, %219 : vector<128x256xi1>, vector<128x256xf32>
    %c8_i32 = arith.constant 8 : i32
    %c0_110 = arith.constant 0 : index
    %c0_111 = arith.constant 0 : index
    %222 = vector.load %arg6[%c0_110, %c0_111] : memref<128x256xf32, #tpu.memory_space<vmem>>, vector<128x256xf32>
    tpu.vector_store %arg6[%c0_110, %c0_111], %217 {strides = array<i32>} : memref<128x256xf32, #tpu.memory_space<vmem>>, vector<128x256xf32>,
    %c0_112 = arith.constant 0 : index
    %c0_113 = arith.constant 0 : index
    %223 = vector.load %arg8[%c0_112, %c0_113] : memref<128x256xf32, #tpu.memory_space<vmem>>, vector<128x256xf32>
    tpu.vector_store %arg8[%c0_112, %c0_113], %215 {strides = array<i32>} : memref<128x256xf32, #tpu.memory_space<vmem>>, vector<128x256xf32>,
    %c0_114 = arith.constant 0 : index
    %c0_115 = arith.constant 0 : index
    %224 = vector.load %arg9[%c0_114, %c0_115] : memref<128x256xf32, #tpu.memory_space<vmem>>, vector<128x256xf32>
    tpu.vector_store %arg9[%c0_114, %c0_115], %221 {strides = array<i32>} : memref<128x256xf32, #tpu.memory_space<vmem>>, vector<128x256xf32>,
    return
  }
  func.func @transform_0(%arg0: i32, %arg1: i32) -> (i32, i32, i32) {
    %c0_i32 = arith.constant 0 : i32
    %c0_i32_0 = arith.constant 0 : i32
    return %arg1, %arg0, %c0_i32 : i32, i32, i32
  }
  func.func @transform_1(%arg0: i32, %arg1: i32) -> (i32, i32) {
    %c0_i32 = arith.constant 0 : i32
    %c0_i32_0 = arith.constant 0 : i32
    return %arg0, %c0_i32 : i32, i32
  }
  func.func @transform_2(%arg0: i32, %arg1: i32) -> (i32, i32) {
    %c0_i32 = arith.constant 0 : i32
    %c0_i32_0 = arith.constant 0 : i32
    return %arg0, %c0_i32 : i32, i32
  }
  func.func @transform_3(%arg0: i32, %arg1: i32) -> (i32, i32) {
    %c0_i32 = arith.constant 0 : i32
    %c0_i32_0 = arith.constant 0 : i32
    return %arg0, %c0_i32 : i32, i32
  }
  func.func @transform_4(%arg0: i32, %arg1: i32) -> (i32, i32) {
    %c0_i32 = arith.constant 0 : i32
    %c0_i32_0 = arith.constant 0 : i32
    return %arg0, %c0_i32 : i32, i32
  }
  func.func @transform_5(%arg0: i32, %arg1: i32) -> (i32, i32, i32) {
    %c0_i32 = arith.constant 0 : i32
    %c0_i32_0 = arith.constant 0 : i32
    return %arg1, %arg0, %c0_i32 : i32, i32, i32
  }
  func.func @transform_6(%arg0: i32, %arg1: i32) -> (i32, i32) {
    %c0_i32 = arith.constant 0 : i32
    %c0_i32_0 = arith.constant 0 : i32
    return %arg0, %c0_i32 : i32, i32
  }
  func.func @transform_7(%arg0: i32, %arg1: i32) -> (i32, i32) {
    %c0_i32 = arith.constant 0 : i32
    %c0_i32_0 = arith.constant 0 : i32
    return %arg0, %c0_i32 : i32, i32
  }
}

</mosaic_0001>

<llo_original>
// kernel: boosted_lif_forward.1
$region0: #{boosted_lif_forward.1}
  #allocation0 [shape = 'u32[]', space=smem, size = 0x4, offset = 0x4, fixed_abs, tag = 'smem constant byte address 0x4 - core index']
  #allocation1 [shape = 'u32[72,128]{1,0:T(1,128)}', space=vmem, size = 0x9000, scoped, tag = 'internal scratch']
  #allocation16 [shape = 's32[]', space=sflag, size = 0x4, offset = 0, fixed_abs, tag = 'sflag constant byte address 0x0 - dummy sync flag']
  #allocation18 [shape = 's32[]', space=sflag, size = 0x4, offset = 0, fixed_abs, tag = 'sflag constant byte address 0x0 - dummy sync flag']
  %s0 = inlined_call_operand.hbm [shape: f32[16,256,256], index: 0, kind: input, shape index: {}]
  %s1 = inlined_call_operand.hbm [shape: f32[256,256], index: 1, kind: input, shape index: {}, may-alias: {1,4}]
  %s2 = inlined_call_operand.hbm [shape: f32[256,256], index: 2, kind: input, shape index: {}, may-alias: {2,6}]
  %s3 = inlined_call_operand.hbm [shape: f32[256,256], index: 3, kind: input, shape index: {}, may-alias: {3,7}]
  %s4 = inlined_call_operand.hbm [shape: f32[256,256], index: 4, kind: output, shape index: {0}, may-alias: {1,4}]
  %s5 = inlined_call_operand.hbm [shape: s8[16,256,256], index: 5, kind: output, shape index: {1}]
  %s6 = inlined_call_operand.hbm [shape: f32[256,256], index: 6, kind: output, shape index: {2}, may-alias: {2,6}]
  %s7 = inlined_call_operand.hbm [shape: f32[256,256], index: 7, kind: output, shape index: {3}, may-alias: {3,7}]
  %8 = xla_tuple %s4, %s5, %s6, %s7
  %s9 = sld [smem:[#allocation0]]
  $region93: #{boosted_lif_forward.1} parent=0
    _
  %s11 = ssub.s32 1, %s9
  %s12 = scalar_select 0, %s11, %s9
  $region1: #{boosted_lif_forward.1} parent=0
    #allocation2 [shape = 'u8[2097152]{0}', space=vmem, size = 0x200000, scoped, tag = 'input window, operand 0']
    #allocation3 [shape = 's32[2]{0}', space=sflag, size = 0x8, scoped, tag = 'scoped memory for boosted_lif_forward.1']
    #allocation4 [shape = 's32[2]{0}', space=sflag, size = 0x8, scoped, tag = 'scoped memory for boosted_lif_forward.1']
    #allocation5 [shape = 'u8[262144]{0}', space=vmem, size = 0x40000, scoped, tag = 'input window, operand 1']
    #allocation6 [shape = 's32[2]{0}', space=sflag, size = 0x8, scoped, tag = 'scoped memory for boosted_lif_forward.1']
    #allocation7 [shape = 'u8[262144]{0}', space=vmem, size = 0x40000, scoped, tag = 'input window, operand 2']
    #allocation8 [shape = 'u8[262144]{0}', space=vmem, size = 0x40000, scoped, tag = 'input window, operand 3']
    #allocation9 [shape = 's32[2]{0}', space=sflag, size = 0x8, scoped, tag = 'scoped memory for boosted_lif_forward.1']
    #allocation10 [shape = 'u8[262144]{0}', space=vmem, size = 0x40000, scoped, tag = 'output window, operand 0']
    #allocation11 [shape = 'u8[524288]{0}', space=vmem, size = 0x80000, scoped, tag = 'output window, operand 1']
    #allocation12 [shape = 's32[2]{0}', space=sflag, size = 0x8, scoped, tag = 'scoped memory for boosted_lif_forward.1']
    #allocation13 [shape = 'u8[262144]{0}', space=vmem, size = 0x40000, scoped, tag = 'output window, operand 2']
    #allocation14 [shape = 'u8[262144]{0}', space=vmem, size = 0x40000, scoped, tag = 'output window, operand 3']
    #allocation15 [shape = 's32[2]{0}', space=sflag, size = 0x8, scoped, tag = 'scoped memory for boosted_lif_forward.1']
    %13 = vsyncpa [#allocation3], 0
    %s14 = scalar_lea.sflag [#allocation3], 1
    %15 = vsyncpa %s14, 0
    %16 = vsyncpa [#allocation6], 0
    %s17 = scalar_lea.sflag [#allocation6], 1
    %18 = vsyncpa %s17, 0
    %19 = vsyncpa [#allocation9], 0
    %s20 = scalar_lea.sflag [#allocation9], 1
    %21 = vsyncpa %s20, 0
    %22 = vsyncpa [#allocation4], 0
    %s23 = scalar_lea.sflag [#allocation4], 1
    %24 = vsyncpa %s23, 0
    %25 = vsyncpa [#allocation12], 0
    %s26 = scalar_lea.sflag [#allocation12], 1
    %27 = vsyncpa %s26, 0
    %28 = vsyncpa [#allocation15], 0
    %s29 = scalar_lea.sflag [#allocation15], 1
    %30 = vsyncpa %s29, 0
    loop: start=0, step=1, limit=6
    $region2: #{boosted_lif_forward.1} parent=1 // loop_pre_header
      _
    $region3: #{boosted_lif_forward.1} parent=1 // loop_header
      %s32 = sphi 0, %s36
      %p33 = scmp.ge.s32.totalorder %s32, 6
      %s39 = sphi 0, %s51
      %s40 = sphi 0, %s47
      %s41 = sphi 0, %s39
      %s42 = sphi 0, %s40
      %s43 = sphi 0, %s41
      %s44 = sphi 0, %s42
      %s56 = sphi 0, %s58
      %s59 = sphi 0, %s56
      %s60 = sphi 0, %s59
      %s76 = sphi 0, %s60
      %s82 = sphi 0, %s84
      %s85 = sphi 0, %s82
      %s86 = sphi 0, %s85
      %s102 = sphi 0, %s86
      %s108 = sphi 0, %s110
      %s111 = sphi 0, %s108
      %s112 = sphi 0, %s111
      %s128 = sphi 0, %s112
      %s134 = sphi 0, %s136
      %s137 = sphi 0, %s134
      %s138 = sphi 0, %s137
      %s154 = sphi 0, %s138
      %s160 = sphi 0, %s162
      %s163 = sphi 0, %s160
      %s164 = sphi 0, %s163
      %s180 = sphi 0, %s164
      %s188 = sphi 0, %s190
      %s191 = sphi 0, %s188
      %s192 = sphi 0, %s191
      %s208 = sphi 0, %s192
      %s214 = sphi 0, %s216
      %s217 = sphi 0, %s214
      %s218 = sphi 0, %s217
      %s234 = sphi 0, %s218
      %s240 = sphi 0, %s242
      %s243 = sphi 0, %s240
      %s244 = sphi 0, %s243
      %s260 = sphi 0, %s244
    $region4: #{boosted_lif_forward.1} parent=1 // loop_header_branch
      %35 = sbr.rel (%p33) target = $region8
    $region5: #{boosted_lif_forward.1} parent=1 // loop_body
      %s37 = ssub.s32 %s32, 1
      %s38 = ssub.s32 %s32, 2
      %s45 = sadd.s32 1, %s40
      %p46 = scmp.ge.s32.totalorder %s45, 2
      %s47 = scalar_select %p46, 0, %s45
      %s48 = sadd.s32 1, %s39
      %s49 = scalar_select %p46, %s48, %s39
      %p50 = scmp.ge.s32.totalorder %s49, 2
      %s51 = scalar_select %p50, 0, %s49
      %s52 = ssub.s32 %s40, %s47
      %s53 = ssub.s32 %s39, %s51
      %s54 = sor.u32 %s52, %s53
      %p55 = scmp.eq.s32.totalorder %s54, 0
      %s57 = sadd.s32 %s56, 1
      %s58 = scalar_select %p55, %s56, %s57
      %p61 = pneg %p55
      %p62 = scmp.eq.s32.totalorder %s32, 3
      %p63 = por %p61, %p62
      %p64 = scmp.ne.s32.totalorder %s56, %s59
      %p65 = scmp.eq.s32.totalorder %s32, 0
      %p66 = por %p64, %p65
      %p67 = scmp.ne.s32.totalorder %s56, %s59
      %p68 = scmp.eq.s32.totalorder %s37, 3
      %p69 = por %p67, %p68
      %p70 = scmp.ne.s32.totalorder %s59, %s60
      %p71 = scmp.eq.s32.totalorder %s37, 0
      %p72 = por %p70, %p71
      %p73 = scmp.ne.s32.totalorder %s59, %s60
      %p74 = scmp.eq.s32.totalorder %s38, 3
      %p75 = por %p73, %p74
      %p77 = scmp.ne.s32.totalorder %s60, %s76
      %p78 = scmp.eq.s32.totalorder %s38, 0
      %p79 = por %p77, %p78
      %s80 = ssub.s32 %s39, %s51
      %p81 = scmp.eq.s32.totalorder %s80, 0
      %s83 = sadd.s32 %s82, 1
      %s84 = scalar_select %p81, %s82, %s83
      %p87 = pneg %p81
      %p88 = scmp.eq.s32.totalorder %s32, 3
      %p89 = por %p87, %p88
      %p90 = scmp.ne.s32.totalorder %s82, %s85
      %p91 = scmp.eq.s32.totalorder %s32, 0
      %p92 = por %p90, %p91
      %p93 = scmp.ne.s32.totalorder %s82, %s85
      %p94 = scmp.eq.s32.totalorder %s37, 3
      %p95 = por %p93, %p94
      %p96 = scmp.ne.s32.totalorder %s85, %s86
      %p97 = scmp.eq.s32.totalorder %s37, 0
      %p98 = por %p96, %p97
      %p99 = scmp.ne.s32.totalorder %s85, %s86
      %p100 = scmp.eq.s32.totalorder %s38, 3
      %p101 = por %p99, %p100
      %p103 = scmp.ne.s32.totalorder %s86, %s102
      %p104 = scmp.eq.s32.totalorder %s38, 0
      %p105 = por %p103, %p104
      %s106 = ssub.s32 %s39, %s51
      %p107 = scmp.eq.s32.totalorder %s106, 0
      %s109 = sadd.s32 %s108, 1
      %s110 = scalar_select %p107, %s108, %s109
      %p113 = pneg %p107
      %p114 = scmp.eq.s32.totalorder %s32, 3
      %p115 = por %p113, %p114
      %p116 = scmp.ne.s32.totalorder %s108, %s111
      %p117 = scmp.eq.s32.totalorder %s32, 0
      %p118 = por %p116, %p117
      %p119 = scmp.ne.s32.totalorder %s108, %s111
      %p120 = scmp.eq.s32.totalorder %s37, 3
      %p121 = por %p119, %p120
      %p122 = scmp.ne.s32.totalorder %s111, %s112
      %p123 = scmp.eq.s32.totalorder %s37, 0
      %p124 = por %p122, %p123
      %p125 = scmp.ne.s32.totalorder %s111, %s112
      %p126 = scmp.eq.s32.totalorder %s38, 3
      %p127 = por %p125, %p126
      %p129 = scmp.ne.s32.totalorder %s112, %s128
      %p130 = scmp.eq.s32.totalorder %s38, 0
      %p131 = por %p129, %p130
      %s132 = ssub.s32 %s39, %s51
      %p133 = scmp.eq.s32.totalorder %s132, 0
      %s135 = sadd.s32 %s134, 1
      %s136 = scalar_select %p133, %s134, %s135
      %p139 = pneg %p133
      %p140 = scmp.eq.s32.totalorder %s32, 3
      %p141 = por %p139, %p140
      %p142 = scmp.ne.s32.totalorder %s134, %s137
      %p143 = scmp.eq.s32.totalorder %s32, 0
      %p144 = por %p142, %p143
      %p145 = scmp.ne.s32.totalorder %s134, %s137
      %p146 = scmp.eq.s32.totalorder %s37, 3
      %p147 = por %p145, %p146
      %p148 = scmp.ne.s32.totalorder %s137, %s138
      %p149 = scmp.eq.s32.totalorder %s37, 0
      %p150 = por %p148, %p149
      %p151 = scmp.ne.s32.totalorder %s137, %s138
      %p152 = scmp.eq.s32.totalorder %s38, 3
      %p153 = por %p151, %p152
      %p155 = scmp.ne.s32.totalorder %s138, %s154
      %p156 = scmp.eq.s32.totalorder %s38, 0
      %p157 = por %p155, %p156
      %s158 = ssub.s32 %s39, %s51
      %p159 = scmp.eq.s32.totalorder %s158, 0
      %s161 = sadd.s32 %s160, 1
      %s162 = scalar_select %p159, %s160, %s161
      %p165 = pneg %p159
      %p166 = scmp.eq.s32.totalorder %s32, 3
      %p167 = por %p165, %p166
      %p168 = scmp.ne.s32.totalorder %s160, %s163
      %p169 = scmp.eq.s32.totalorder %s32, 0
      %p170 = por %p168, %p169
      %p171 = scmp.ne.s32.totalorder %s160, %s163
      %p172 = scmp.eq.s32.totalorder %s37, 3
      %p173 = por %p171, %p172
      %p174 = scmp.ne.s32.totalorder %s163, %s164
      %p175 = scmp.eq.s32.totalorder %s37, 0
      %p176 = por %p174, %p175
      %p177 = scmp.ne.s32.totalorder %s163, %s164
      %p178 = scmp.eq.s32.totalorder %s38, 3
      %p179 = por %p177, %p178
      %p181 = scmp.ne.s32.totalorder %s164, %s180
      %p182 = scmp.eq.s32.totalorder %s38, 0
      %p183 = por %p181, %p182
      %s184 = ssub.s32 %s40, %s47
      %s185 = ssub.s32 %s39, %s51
      %s186 = sor.u32 %s184, %s185
      %p187 = scmp.eq.s32.totalorder %s186, 0
      %s189 = sadd.s32 %s188, 1
      %s190 = scalar_select %p187, %s188, %s189
      %p193 = pneg %p187
      %p194 = scmp.eq.s32.totalorder %s32, 3
      %p195 = por %p193, %p194
      %p196 = scmp.ne.s32.totalorder %s188, %s191
      %p197 = scmp.eq.s32.totalorder %s32, 0
      %p198 = por %p196, %p197
      %p199 = scmp.ne.s32.totalorder %s188, %s191
      %p200 = scmp.eq.s32.totalorder %s37, 3
      %p201 = por %p199, %p200
      %p202 = scmp.ne.s32.totalorder %s191, %s192
      %p203 = scmp.eq.s32.totalorder %s37, 0
      %p204 = por %p202, %p203
      %p205 = scmp.ne.s32.totalorder %s191, %s192
      %p206 = scmp.eq.s32.totalorder %s38, 3
      %p207 = por %p205, %p206
      %p209 = scmp.ne.s32.totalorder %s192, %s208
      %p210 = scmp.eq.s32.totalorder %s38, 0
      %p211 = por %p209, %p210
      %s212 = ssub.s32 %s39, %s51
      %p213 = scmp.eq.s32.totalorder %s212, 0
      %s215 = sadd.s32 %s214, 1
      %s216 = scalar_select %p213, %s214, %s215
      %p219 = pneg %p213
      %p220 = scmp.eq.s32.totalorder %s32, 3
      %p221 = por %p219, %p220
      %p222 = scmp.ne.s32.totalorder %s214, %s217
      %p223 = scmp.eq.s32.totalorder %s32, 0
      %p224 = por %p222, %p223
      %p225 = scmp.ne.s32.totalorder %s214, %s217
      %p226 = scmp.eq.s32.totalorder %s37, 3
      %p227 = por %p225, %p226
      %p228 = scmp.ne.s32.totalorder %s217, %s218
      %p229 = scmp.eq.s32.totalorder %s37, 0
      %p230 = por %p228, %p229
      %p231 = scmp.ne.s32.totalorder %s217, %s218
      %p232 = scmp.eq.s32.totalorder %s38, 3
      %p233 = por %p231, %p232
      %p235 = scmp.ne.s32.totalorder %s218, %s234
      %p236 = scmp.eq.s32.totalorder %s38, 0
      %p237 = por %p235, %p236
      %s238 = ssub.s32 %s39, %s51
      %p239 = scmp.eq.s32.totalorder %s238, 0
      %s241 = sadd.s32 %s240, 1
      %s242 = scalar_select %p239, %s240, %s241
      %p245 = pneg %p239
      %p246 = scmp.eq.s32.totalorder %s32, 3
      %p247 = por %p245, %p246
      %p248 = scmp.ne.s32.totalorder %s240, %s243
      %p249 = scmp.eq.s32.totalorder %s32, 0
      %p250 = por %p248, %p249
      %p251 = scmp.ne.s32.totalorder %s240, %s243
      %p252 = scmp.eq.s32.totalorder %s37, 3
      %p253 = por %p251, %p252
      %p254 = scmp.ne.s32.totalorder %s243, %s244
      %p255 = scmp.eq.s32.totalorder %s37, 0
      %p256 = por %p254, %p255
      %p257 = scmp.ne.s32.totalorder %s243, %s244
      %p258 = scmp.eq.s32.totalorder %s38, 3
      %p259 = por %p257, %p258
      %p261 = scmp.ne.s32.totalorder %s244, %s260
      %p262 = scmp.eq.s32.totalorder %s38, 0
      %p263 = por %p261, %p262
      %p264 = scmp.le.s32.totalorder 1, %s32
      %p265 = scmp.lt.s32.totalorder %s32, 5
      %p266 = pnand %p264, %p265
      %p267 = pneg %p266
      // Predicated region
      $region9: #{boosted_lif_forward.1} parent=5 // pred_check
        _
      $region10: #{boosted_lif_forward.1} parent=5 // pred_check_branch
        %269 = sbr.rel (%p266) target = $region12
      $region11: #{boosted_lif_forward.1} parent=5 // pred_region
        %s270 = ssub.s32 %s32, 1
      $region12: #{boosted_lif_forward.1} parent=5 // pred_fallthru
        _
      %p271 = scmp.lt.s32.totalorder %s32, 4
      // Predicated region
      $region13: #{boosted_lif_forward.1} parent=5 // pred_check
        %p272 = pneg %p271
      $region14: #{boosted_lif_forward.1} parent=5 // pred_check_branch
        %274 = sbr.rel (%p272) target = $region16
      $region15: #{boosted_lif_forward.1} parent=5 // pred_region
        // Predicated region
        $region17: #{boosted_lif_forward.1} parent=15 // pred_check
          %p275 = pneg %p66
        $region18: #{boosted_lif_forward.1} parent=15 // pred_check_branch
          %277 = sbr.rel (%p275) target = $region20
        $region19: #{boosted_lif_forward.1} parent=15 // pred_region
          #allocation17 [shape = 'u32[6]{0}', space=smem, size = 0x18, scoped, tag = 'DMA stride descriptor']
          %s278 = sand.u32 %s56, 1
          %s279 = scalar_lea.sflag [#allocation3], %s278
          %s280 = sand.u32 %s56, 1
          %s281 = smul.addr %s280, 2048
          %s282 = scalar_lea.vmem [#allocation2], %s281
          %s283 = smul.u32 8, %s40
          %s284 = smul.u32 16, %s39
          %286 = vsyncadd %s279, 0
          %s287 = smul.addr %s284, 2
          %s288 = smul.addr %s283, 64
          %s289 = sadd.s32 %s287, %s288
          %s290 = smul.addr %s289, 8
          %s291 = scalar_lea.hbm %s0, %s290
          %s293 = sshll.u32 1, 14
          %s294 = sxor.u32 4294967295, %s293
          %s296 = sld [smem:[#allocation0]]
          %s297 = sadd.s32 2, %s296
          %s299 = sshll.u32 7, 26
          %s300 = sxor.u32 4294967295, %s299
          %s301 = sand.u32 0, %s300
          %s302 = sshll.u32 %s297, 26
          %s303 = sor.u32 %s301, %s302
          %s304 = sshll.u32 %s291, 4
          %s305 = int_to_ptr.hbm [resolvable:$true] %s304
          %s306 = sshll.u32 %s282, 4
          %s307 = int_to_ptr.vmem [resolvable:$true] %s306
          %313 = sst [smem:[#allocation17]] 8192
          %s314 = scalar_lea.smem [#allocation17], 1
          %315 = sst [smem:[%s314]] 4096
          %s316 = scalar_lea.smem [#allocation17], 2
          %317 = sst [smem:[%s316]] 16
          %s318 = scalar_lea.smem [#allocation17], 3
          %319 = sst [smem:[%s318]] 256
          %s320 = scalar_lea.smem [#allocation17], 4
          %321 = sst [smem:[%s320]] 256
          %s322 = scalar_lea.smem [#allocation17], 5
          %323 = sst [smem:[%s322]] 16
          %325 = dma.general %s305, 32768, %s307, %s279, [#allocation16], [#allocation17], %s303, 0
        $region20: #{boosted_lif_forward.1} parent=15 // pred_fallthru
          _
        // Predicated region
        $region21: #{boosted_lif_forward.1} parent=15 // pred_check
          %p326 = pneg %p92
        $region22: #{boosted_lif_forward.1} parent=15 // pred_check_branch
          %328 = sbr.rel (%p326) target = $region24
        $region23: #{boosted_lif_forward.1} parent=15 // pred_region
          %s329 = sand.u32 %s32, 1
          %s330 = scalar_lea.sflag [#allocation6], %s329
          %s331 = sand.u32 %s82, 1
          %s332 = smul.addr %s331, 256
          %s333 = scalar_lea.vmem [#allocation5], %s332
          %s334 = smul.u32 16, %s39
          %336 = vsyncadd %s330, 0
          %s337 = smul.addr %s334, 2
          %s338 = smul.addr %s337, 8
          %s339 = scalar_lea.hbm %s1, %s338
          %s340 = sshll.u32 %s339, 4
          %s341 = int_to_ptr.hbm [resolvable:$true] %s340
          %s342 = sshll.u32 %s333, 4
          %s343 = int_to_ptr.vmem [resolvable:$true] %s342
          %348 = dma.hbm_to_vmem [thread:$0]  %s341, 4096, %s343, %s330, 256, 256, 16
        $region24: #{boosted_lif_forward.1} parent=15 // pred_fallthru
          _
        // Predicated region
        $region25: #{boosted_lif_forward.1} parent=15 // pred_check
          %p349 = pneg %p118
        $region26: #{boosted_lif_forward.1} parent=15 // pred_check_branch
          %351 = sbr.rel (%p349) target = $region28
        $region27: #{boosted_lif_forward.1} parent=15 // pred_region
          %s352 = sand.u32 %s32, 1
          %s353 = scalar_lea.sflag [#allocation6], %s352
          %s354 = sand.u32 %s108, 1
          %s355 = smul.addr %s354, 256
          %s356 = scalar_lea.vmem [#allocation7], %s355
          %s357 = smul.u32 16, %s39
          %359 = vsyncadd %s353, 0
          %s360 = smul.addr %s357, 2
          %s361 = smul.addr %s360, 8
          %s362 = scalar_lea.hbm %s2, %s361
          %s363 = sshll.u32 %s362, 4
          %s364 = int_to_ptr.hbm [resolvable:$true] %s363
          %s365 = sshll.u32 %s356, 4
          %s366 = int_to_ptr.vmem [resolvable:$true] %s365
          %371 = dma.hbm_to_vmem [thread:$0]  %s364, 4096, %s366, %s353, 256, 256, 16
        $region28: #{boosted_lif_forward.1} parent=15 // pred_fallthru
          _
        // Predicated region
        $region29: #{boosted_lif_forward.1} parent=15 // pred_check
          %p372 = pneg %p144
        $region30: #{boosted_lif_forward.1} parent=15 // pred_check_branch
          %374 = sbr.rel (%p372) target = $region32
        $region31: #{boosted_lif_forward.1} parent=15 // pred_region
          %s375 = sand.u32 %s134, 1
          %s376 = scalar_lea.sflag [#allocation9], %s375
          %s377 = sand.u32 %s134, 1
          %s378 = smul.addr %s377, 256
          %s379 = scalar_lea.vmem [#allocation8], %s378
          %s380 = smul.u32 16, %s39
          %382 = vsyncadd %s376, 0
          %s383 = smul.addr %s380, 2
          %s384 = smul.addr %s383, 8
          %s385 = scalar_lea.hbm %s3, %s384
          %s386 = sshll.u32 %s385, 4
          %s387 = int_to_ptr.hbm [resolvable:$true] %s386
          %s388 = sshll.u32 %s379, 4
          %s389 = int_to_ptr.vmem [resolvable:$true] %s388
          %394 = dma.hbm_to_vmem [thread:$0]  %s387, 4096, %s389, %s376, 256, 256, 16
        $region32: #{boosted_lif_forward.1} parent=15 // pred_fallthru
          _
      $region16: #{boosted_lif_forward.1} parent=5 // pred_fallthru
        _
      %p395 = scmp.le.s32.totalorder 1, %s32
      %p396 = scmp.lt.s32.totalorder %s32, 5
      %p397 = pnand %p395, %p396
      %p398 = pneg %p397
      // Predicated region
      $region33: #{boosted_lif_forward.1} parent=5 // pred_check
        _
      $region34: #{boosted_lif_forward.1} parent=5 // pred_check_branch
        %400 = sbr.rel (%p397) target = $region36
      $region35: #{boosted_lif_forward.1} parent=5 // pred_region
        %s401 = ssub.s32 %s32, 1
        %s402 = sand.u32 %s59, 1
        %s403 = scalar_lea.sflag [#allocation3], %s402
        %s404 = sand.u32 %s59, 1
        %s405 = smul.addr %s404, 2048
        %s406 = scalar_lea.vmem [#allocation2], %s405
        // Predicated region
        $region37: #{boosted_lif_forward.1} parent=35 // pred_check
          %p407 = pneg %p72
        $region38: #{boosted_lif_forward.1} parent=35 // pred_check_branch
          %409 = sbr.rel (%p407) target = $region40
        $region39: #{boosted_lif_forward.1} parent=35 // pred_region
          %411 = dma.done %s403, 32768
        $region40: #{boosted_lif_forward.1} parent=35 // pred_fallthru
          _
        %s412 = sand.u32 %s37, 1
        %s413 = scalar_lea.sflag [#allocation6], %s412
        %s414 = sand.u32 %s85, 1
        %s415 = smul.addr %s414, 256
        %s416 = scalar_lea.vmem [#allocation5], %s415
        // Predicated region
        $region41: #{boosted_lif_forward.1} parent=35 // pred_check
          %p417 = pneg %p98
        $region42: #{boosted_lif_forward.1} parent=35 // pred_check_branch
          %419 = sbr.rel (%p417) target = $region44
        $region43: #{boosted_lif_forward.1} parent=35 // pred_region
          %421 = dma.done %s413, 4096
        $region44: #{boosted_lif_forward.1} parent=35 // pred_fallthru
          _
        %s422 = sand.u32 %s37, 1
        %s423 = scalar_lea.sflag [#allocation6], %s422
        %s424 = sand.u32 %s111, 1
        %s425 = smul.addr %s424, 256
        %s426 = scalar_lea.vmem [#allocation7], %s425
        // Predicated region
        $region45: #{boosted_lif_forward.1} parent=35 // pred_check
          %p427 = pneg %p124
        $region46: #{boosted_lif_forward.1} parent=35 // pred_check_branch
          %429 = sbr.rel (%p427) target = $region48
        $region47: #{boosted_lif_forward.1} parent=35 // pred_region
          %431 = dma.done %s423, 4096
        $region48: #{boosted_lif_forward.1} parent=35 // pred_fallthru
          _
        %s432 = sand.u32 %s137, 1
        %s433 = scalar_lea.sflag [#allocation9], %s432
        %s434 = sand.u32 %s137, 1
        %s435 = smul.addr %s434, 256
        %s436 = scalar_lea.vmem [#allocation8], %s435
        // Predicated region
        $region49: #{boosted_lif_forward.1} parent=35 // pred_check
          %p437 = pneg %p150
        $region50: #{boosted_lif_forward.1} parent=35 // pred_check_branch
          %439 = sbr.rel (%p437) target = $region52
        $region51: #{boosted_lif_forward.1} parent=35 // pred_region
          %441 = dma.done %s433, 4096
        $region52: #{boosted_lif_forward.1} parent=35 // pred_fallthru
          _
        %s442 = sand.u32 %s59, 1
        %s443 = scalar_lea.sflag [#allocation3], %s442
        %s444 = sand.u32 %s59, 1
        %s445 = smul.addr %s444, 2048
        %s446 = scalar_lea.vmem [#allocation2], %s445
        %p447 = pneg %p72
        %p448 = pneg %p69
        %s449 = sand.u32 %s37, 1
        %s450 = scalar_lea.sflag [#allocation6], %s449
        %s451 = sand.u32 %s85, 1
        %s452 = smul.addr %s451, 256
        %s453 = scalar_lea.vmem [#allocation5], %s452
        %p454 = pneg %p98
        %p455 = pneg %p95
        %s456 = sand.u32 %s37, 1
        %s457 = scalar_lea.sflag [#allocation6], %s456
        %s458 = sand.u32 %s111, 1
        %s459 = smul.addr %s458, 256
        %s460 = scalar_lea.vmem [#allocation7], %s459
        %p461 = pneg %p124
        %p462 = pneg %p121
        %s463 = sand.u32 %s137, 1
        %s464 = scalar_lea.sflag [#allocation9], %s463
        %s465 = sand.u32 %s137, 1
        %s466 = smul.addr %s465, 256
        %s467 = scalar_lea.vmem [#allocation8], %s466
        %p468 = pneg %p150
        %p469 = pneg %p147
        %p470 = pneg %p176
        %p471 = pneg %p173
        %s472 = sand.u32 %s163, 1
        %s473 = scalar_lea.sflag [#allocation4], %s472
        %s474 = sand.u32 %s163, 1
        %s475 = smul.addr %s474, 256
        %s476 = scalar_lea.vmem [#allocation10], %s475
        %p477 = pneg %p204
        %p478 = pneg %p201
        %s479 = sand.u32 %s37, 1
        %s480 = scalar_lea.sflag [#allocation12], %s479
        %s481 = sand.u32 %s191, 1
        %s482 = smul.addr %s481, 512
        %s483 = scalar_lea.vmem [#allocation11], %s482
        %p484 = pneg %p230
        %p485 = pneg %p227
        %s486 = sand.u32 %s37, 1
        %s487 = scalar_lea.sflag [#allocation12], %s486
        %s488 = sand.u32 %s217, 1
        %s489 = smul.addr %s488, 256
        %s490 = scalar_lea.vmem [#allocation13], %s489
        %p491 = pneg %p256
        %p492 = pneg %p253
        %s493 = sand.u32 %s243, 1
        %s494 = scalar_lea.sflag [#allocation15], %s493
        %s495 = sand.u32 %s243, 1
        %s496 = smul.addr %s495, 256
        %s497 = scalar_lea.vmem [#allocation14], %s496
        %s498 = smul.u32 8, %s42
        %s499 = smul.u32 16, %s41
        %s500 = smul.u32 16, %s41
        %s501 = smul.u32 16, %s41
        %s502 = smul.u32 16, %s41
        %s503 = smul.u32 16, %s41
        %s504 = smul.u32 8, %s42
        %s505 = smul.u32 4, %s41
        %s506 = smul.u32 16, %s41
        %s507 = smul.u32 16, %s41
        %p510 = scmp.eq.s32.totalorder %s42, 0
        // Predicated region
        $region53: #{boosted_lif_forward.1} parent=35 // pred_check
          %p511 = pneg %p510
        $region54: #{boosted_lif_forward.1} parent=35 // pred_check_branch
          %513 = sbr.rel (%p511) target = $region56
        $region55: #{boosted_lif_forward.1} parent=35 // pred_region
          %v514 = vld [vmem:[%s416] sm:$0xff]
          %v515 = vld [vmem:[%s416 + $0x8] sm:$0xff]
          %v516 = vld [vmem:[%s416 + $0x10] sm:$0xff]
          %v517 = vld [vmem:[%s416 + $0x18] sm:$0xff]
          %v518 = vld [vmem:[%s416 + $0x20] sm:$0xff]
          %v519 = vld [vmem:[%s416 + $0x28] sm:$0xff]
          %v520 = vld [vmem:[%s416 + $0x30] sm:$0xff]
          %v521 = vld [vmem:[%s416 + $0x38] sm:$0xff]
          %v522 = vld [vmem:[%s416 + $0x40] sm:$0xff]
          %v523 = vld [vmem:[%s416 + $0x48] sm:$0xff]
          %v524 = vld [vmem:[%s416 + $0x50] sm:$0xff]
          %v525 = vld [vmem:[%s416 + $0x58] sm:$0xff]
          %v526 = vld [vmem:[%s416 + $0x60] sm:$0xff]
          %v527 = vld [vmem:[%s416 + $0x68] sm:$0xff]
          %v528 = vld [vmem:[%s416 + $0x70] sm:$0xff]
          %v529 = vld [vmem:[%s416 + $0x78] sm:$0xff]
          %v530 = vld [vmem:[%s416 + $0x80] sm:$0xff]
          %v531 = vld [vmem:[%s416 + $0x88] sm:$0xff]
          %v532 = vld [vmem:[%s416 + $0x90] sm:$0xff]
          %v533 = vld [vmem:[%s416 + $0x98] sm:$0xff]
          %v534 = vld [vmem:[%s416 + $0xa0] sm:$0xff]
          %v535 = vld [vmem:[%s416 + $0xa8] sm:$0xff]
          %v536 = vld [vmem:[%s416 + $0xb0] sm:$0xff]
          %v537 = vld [vmem:[%s416 + $0xb8] sm:$0xff]
          %v538 = vld [vmem:[%s416 + $0xc0] sm:$0xff]
          %v539 = vld [vmem:[%s416 + $0xc8] sm:$0xff]
          %v540 = vld [vmem:[%s416 + $0xd0] sm:$0xff]
          %v541 = vld [vmem:[%s416 + $0xd8] sm:$0xff]
          %v542 = vld [vmem:[%s416 + $0xe0] sm:$0xff]
          %v543 = vld [vmem:[%s416 + $0xe8] sm:$0xff]
          %v544 = vld [vmem:[%s416 + $0xf0] sm:$0xff]
          %v545 = vld [vmem:[%s416 + $0xf8] sm:$0xff]
          %546 = vst [vmem:[%s476] sm:$0xff] %v514
          %547 = vst [vmem:[%s476 + $0x8] sm:$0xff] %v515
          %548 = vst [vmem:[%s476 + $0x10] sm:$0xff] %v516
          %549 = vst [vmem:[%s476 + $0x18] sm:$0xff] %v517
          %550 = vst [vmem:[%s476 + $0x20] sm:$0xff] %v518
          %551 = vst [vmem:[%s476 + $0x28] sm:$0xff] %v519
          %552 = vst [vmem:[%s476 + $0x30] sm:$0xff] %v520
          %553 = vst [vmem:[%s476 + $0x38] sm:$0xff] %v521
          %554 = vst [vmem:[%s476 + $0x40] sm:$0xff] %v522
          %555 = vst [vmem:[%s476 + $0x48] sm:$0xff] %v523
          %556 = vst [vmem:[%s476 + $0x50] sm:$0xff] %v524
          %557 = vst [vmem:[%s476 + $0x58] sm:$0xff] %v525
          %558 = vst [vmem:[%s476 + $0x60] sm:$0xff] %v526
          %559 = vst [vmem:[%s476 + $0x68] sm:$0xff] %v527
          %560 = vst [vmem:[%s476 + $0x70] sm:$0xff] %v528
          %561 = vst [vmem:[%s476 + $0x78] sm:$0xff] %v529
          %562 = vst [vmem:[%s476 + $0x80] sm:$0xff] %v530
          %563 = vst [vmem:[%s476 + $0x88] sm:$0xff] %v531
          %564 = vst [vmem:[%s476 + $0x90] sm:$0xff] %v532
          %565 = vst [vmem:[%s476 + $0x98] sm:$0xff] %v533
          %566 = vst [vmem:[%s476 + $0xa0] sm:$0xff] %v534
          %567 = vst [vmem:[%s476 + $0xa8] sm:$0xff] %v535
          %568 = vst [vmem:[%s476 + $0xb0] sm:$0xff] %v536
          %569 = vst [vmem:[%s476 + $0xb8] sm:$0xff] %v537
          %570 = vst [vmem:[%s476 + $0xc0] sm:$0xff] %v538
          %571 = vst [vmem:[%s476 + $0xc8] sm:$0xff] %v539
          %572 = vst [vmem:[%s476 + $0xd0] sm:$0xff] %v540
          %573 = vst [vmem:[%s476 + $0xd8] sm:$0xff] %v541
          %574 = vst [vmem:[%s476 + $0xe0] sm:$0xff] %v542
          %575 = vst [vmem:[%s476 + $0xe8] sm:$0xff] %v543
          %576 = vst [vmem:[%s476 + $0xf0] sm:$0xff] %v544
          %577 = vst [vmem:[%s476 + $0xf8] sm:$0xff] %v545
          %v578 = vld [vmem:[%s426] sm:$0xff]
          %v579 = vld [vmem:[%s426 + $0x8] sm:$0xff]
          %v580 = vld [vmem:[%s426 + $0x10] sm:$0xff]
          %v581 = vld [vmem:[%s426 + $0x18] sm:$0xff]
          %v582 = vld [vmem:[%s426 + $0x20] sm:$0xff]
          %v583 = vld [vmem:[%s426 + $0x28] sm:$0xff]
          %v584 = vld [vmem:[%s426 + $0x30] sm:$0xff]
          %v585 = vld [vmem:[%s426 + $0x38] sm:$0xff]
          %v586 = vld [vmem:[%s426 + $0x40] sm:$0xff]
          %v587 = vld [vmem:[%s426 + $0x48] sm:$0xff]
          %v588 = vld [vmem:[%s426 + $0x50] sm:$0xff]
          %v589 = vld [vmem:[%s426 + $0x58] sm:$0xff]
          %v590 = vld [vmem:[%s426 + $0x60] sm:$0xff]
          %v591 = vld [vmem:[%s426 + $0x68] sm:$0xff]
          %v592 = vld [vmem:[%s426 + $0x70] sm:$0xff]
          %v593 = vld [vmem:[%s426 + $0x78] sm:$0xff]
          %v594 = vld [vmem:[%s426 + $0x80] sm:$0xff]
          %v595 = vld [vmem:[%s426 + $0x88] sm:$0xff]
          %v596 = vld [vmem:[%s426 + $0x90] sm:$0xff]
          %v597 = vld [vmem:[%s426 + $0x98] sm:$0xff]
          %v598 = vld [vmem:[%s426 + $0xa0] sm:$0xff]
          %v599 = vld [vmem:[%s426 + $0xa8] sm:$0xff]
          %v600 = vld [vmem:[%s426 + $0xb0] sm:$0xff]
          %v601 = vld [vmem:[%s426 + $0xb8] sm:$0xff]
          %v602 = vld [vmem:[%s426 + $0xc0] sm:$0xff]
          %v603 = vld [vmem:[%s426 + $0xc8] sm:$0xff]
          %v604 = vld [vmem:[%s426 + $0xd0] sm:$0xff]
          %v605 = vld [vmem:[%s426 + $0xd8] sm:$0xff]
          %v606 = vld [vmem:[%s426 + $0xe0] sm:$0xff]
          %v607 = vld [vmem:[%s426 + $0xe8] sm:$0xff]
          %v608 = vld [vmem:[%s426 + $0xf0] sm:$0xff]
          %v609 = vld [vmem:[%s426 + $0xf8] sm:$0xff]
          %610 = vst [vmem:[%s490] sm:$0xff] %v578
          %611 = vst [vmem:[%s490 + $0x8] sm:$0xff] %v579
          %612 = vst [vmem:[%s490 + $0x10] sm:$0xff] %v580
          %613 = vst [vmem:[%s490 + $0x18] sm:$0xff] %v581
          %614 = vst [vmem:[%s490 + $0x20] sm:$0xff] %v582
          %615 = vst [vmem:[%s490 + $0x28] sm:$0xff] %v583
          %616 = vst [vmem:[%s490 + $0x30] sm:$0xff] %v584
          %617 = vst [vmem:[%s490 + $0x38] sm:$0xff] %v585
          %618 = vst [vmem:[%s490 + $0x40] sm:$0xff] %v586
          %619 = vst [vmem:[%s490 + $0x48] sm:$0xff] %v587
          %620 = vst [vmem:[%s490 + $0x50] sm:$0xff] %v588
          %621 = vst [vmem:[%s490 + $0x58] sm:$0xff] %v589
          %622 = vst [vmem:[%s490 + $0x60] sm:$0xff] %v590
          %623 = vst [vmem:[%s490 + $0x68] sm:$0xff] %v591
          %624 = vst [vmem:[%s490 + $0x70] sm:$0xff] %v592
          %625 = vst [vmem:[%s490 + $0x78] sm:$0xff] %v593
          %626 = vst [vmem:[%s490 + $0x80] sm:$0xff] %v594
          %627 = vst [vmem:[%s490 + $0x88] sm:$0xff] %v595
          %628 = vst [vmem:[%s490 + $0x90] sm:$0xff] %v596
          %629 = vst [vmem:[%s490 + $0x98] sm:$0xff] %v597
          %630 = vst [vmem:[%s490 + $0xa0] sm:$0xff] %v598
          %631 = vst [vmem:[%s490 + $0xa8] sm:$0xff] %v599
          %632 = vst [vmem:[%s490 + $0xb0] sm:$0xff] %v600
          %633 = vst [vmem:[%s490 + $0xb8] sm:$0xff] %v601
          %634 = vst [vmem:[%s490 + $0xc0] sm:$0xff] %v602
          %635 = vst [vmem:[%s490 + $0xc8] sm:$0xff] %v603
          %636 = vst [vmem:[%s490 + $0xd0] sm:$0xff] %v604
          %637 = vst [vmem:[%s490 + $0xd8] sm:$0xff] %v605
          %638 = vst [vmem:[%s490 + $0xe0] sm:$0xff] %v606
          %639 = vst [vmem:[%s490 + $0xe8] sm:$0xff] %v607
          %640 = vst [vmem:[%s490 + $0xf0] sm:$0xff] %v608
          %641 = vst [vmem:[%s490 + $0xf8] sm:$0xff] %v609
          %v642 = vld [vmem:[%s436] sm:$0xff]
          %v643 = vld [vmem:[%s436 + $0x8] sm:$0xff]
          %v644 = vld [vmem:[%s436 + $0x10] sm:$0xff]
          %v645 = vld [vmem:[%s436 + $0x18] sm:$0xff]
          %v646 = vld [vmem:[%s436 + $0x20] sm:$0xff]
          %v647 = vld [vmem:[%s436 + $0x28] sm:$0xff]
          %v648 = vld [vmem:[%s436 + $0x30] sm:$0xff]
          %v649 = vld [vmem:[%s436 + $0x38] sm:$0xff]
          %v650 = vld [vmem:[%s436 + $0x40] sm:$0xff]
          %v651 = vld [vmem:[%s436 + $0x48] sm:$0xff]
          %v652 = vld [vmem:[%s436 + $0x50] sm:$0xff]
          %v653 = vld [vmem:[%s436 + $0x58] sm:$0xff]
          %v654 = vld [vmem:[%s436 + $0x60] sm:$0xff]
          %v655 = vld [vmem:[%s436 + $0x68] sm:$0xff]
          %v656 = vld [vmem:[%s436 + $0x70] sm:$0xff]
          %v657 = vld [vmem:[%s436 + $0x78] sm:$0xff]
          %v658 = vld [vmem:[%s436 + $0x80] sm:$0xff]
          %v659 = vld [vmem:[%s436 + $0x88] sm:$0xff]
          %v660 = vld [vmem:[%s436 + $0x90] sm:$0xff]
          %v661 = vld [vmem:[%s436 + $0x98] sm:$0xff]
          %v662 = vld [vmem:[%s436 + $0xa0] sm:$0xff]
          %v663 = vld [vmem:[%s436 + $0xa8] sm:$0xff]
          %v664 = vld [vmem:[%s436 + $0xb0] sm:$0xff]
          %v665 = vld [vmem:[%s436 + $0xb8] sm:$0xff]
          %v666 = vld [vmem:[%s436 + $0xc0] sm:$0xff]
          %v667 = vld [vmem:[%s436 + $0xc8] sm:$0xff]
          %v668 = vld [vmem:[%s436 + $0xd0] sm:$0xff]
          %v669 = vld [vmem:[%s436 + $0xd8] sm:$0xff]
          %v670 = vld [vmem:[%s436 + $0xe0] sm:$0xff]
          %v671 = vld [vmem:[%s436 + $0xe8] sm:$0xff]
          %v672 = vld [vmem:[%s436 + $0xf0] sm:$0xff]
          %v673 = vld [vmem:[%s436 + $0xf8] sm:$0xff]
          %674 = vst [vmem:[%s497] sm:$0xff] %v642
          %675 = vst [vmem:[%s497 + $0x8] sm:$0xff] %v643
          %676 = vst [vmem:[%s497 + $0x10] sm:$0xff] %v644
          %677 = vst [vmem:[%s497 + $0x18] sm:$0xff] %v645
          %678 = vst [vmem:[%s497 + $0x20] sm:$0xff] %v646
          %679 = vst [vmem:[%s497 + $0x28] sm:$0xff] %v647
          %680 = vst [vmem:[%s497 + $0x30] sm:$0xff] %v648
          %681 = vst [vmem:[%s497 + $0x38] sm:$0xff] %v649
          %682 = vst [vmem:[%s497 + $0x40] sm:$0xff] %v650
          %683 = vst [vmem:[%s497 + $0x48] sm:$0xff] %v651
          %684 = vst [vmem:[%s497 + $0x50] sm:$0xff] %v652
          %685 = vst [vmem:[%s497 + $0x58] sm:$0xff] %v653
          %686 = vst [vmem:[%s497 + $0x60] sm:$0xff] %v654
          %687 = vst [vmem:[%s497 + $0x68] sm:$0xff] %v655
          %688 = vst [vmem:[%s497 + $0x70] sm:$0xff] %v656
          %689 = vst [vmem:[%s497 + $0x78] sm:$0xff] %v657
          %690 = vst [vmem:[%s497 + $0x80] sm:$0xff] %v658
          %691 = vst [vmem:[%s497 + $0x88] sm:$0xff] %v659
          %692 = vst [vmem:[%s497 + $0x90] sm:$0xff] %v660
          %693 = vst [vmem:[%s497 + $0x98] sm:$0xff] %v661
          %694 = vst [vmem:[%s497 + $0xa0] sm:$0xff] %v662
          %695 = vst [vmem:[%s497 + $0xa8] sm:$0xff] %v663
          %696 = vst [vmem:[%s497 + $0xb0] sm:$0xff] %v664
          %697 = vst [vmem:[%s497 + $0xb8] sm:$0xff] %v665
          %698 = vst [vmem:[%s497 + $0xc0] sm:$0xff] %v666
          %699 = vst [vmem:[%s497 + $0xc8] sm:$0xff] %v667
          %700 = vst [vmem:[%s497 + $0xd0] sm:$0xff] %v668
          %701 = vst [vmem:[%s497 + $0xd8] sm:$0xff] %v669
          %702 = vst [vmem:[%s497 + $0xe0] sm:$0xff] %v670
          %703 = vst [vmem:[%s497 + $0xe8] sm:$0xff] %v671
          %704 = vst [vmem:[%s497 + $0xf0] sm:$0xff] %v672
          %705 = vst [vmem:[%s497 + $0xf8] sm:$0xff] %v673
        $region56: #{boosted_lif_forward.1} parent=35 // pred_fallthru
          _
        %v706 = vld [vmem:[%s476] sm:$0xff]
        %v707 = vld [vmem:[%s476 + $0x8] sm:$0xff]
        %v708 = vld [vmem:[%s476 + $0x10] sm:$0xff]
        %v709 = vld [vmem:[%s476 + $0x18] sm:$0xff]
        %v710 = vld [vmem:[%s476 + $0x20] sm:$0xff]
        %v711 = vld [vmem:[%s476 + $0x28] sm:$0xff]
        %v712 = vld [vmem:[%s476 + $0x30] sm:$0xff]
        %v713 = vld [vmem:[%s476 + $0x38] sm:$0xff]
        %v714 = vld [vmem:[%s476 + $0x40] sm:$0xff]
        %v715 = vld [vmem:[%s476 + $0x48] sm:$0xff]
        %v716 = vld [vmem:[%s476 + $0x50] sm:$0xff]
        %v717 = vld [vmem:[%s476 + $0x58] sm:$0xff]
        %v718 = vld [vmem:[%s476 + $0x60] sm:$0xff]
        %v719 = vld [vmem:[%s476 + $0x68] sm:$0xff]
        %v720 = vld [vmem:[%s476 + $0x70] sm:$0xff]
        %v721 = vld [vmem:[%s476 + $0x78] sm:$0xff]
        %v722 = vld [vmem:[%s476 + $0x80] sm:$0xff]
        %v723 = vld [vmem:[%s476 + $0x88] sm:$0xff]
        %v724 = vld [vmem:[%s476 + $0x90] sm:$0xff]
        %v725 = vld [vmem:[%s476 + $0x98] sm:$0xff]
        %v726 = vld [vmem:[%s476 + $0xa0] sm:$0xff]
        %v727 = vld [vmem:[%s476 + $0xa8] sm:$0xff]
        %v728 = vld [vmem:[%s476 + $0xb0] sm:$0xff]
        %v729 = vld [vmem:[%s476 + $0xb8] sm:$0xff]
        %v730 = vld [vmem:[%s476 + $0xc0] sm:$0xff]
        %v731 = vld [vmem:[%s476 + $0xc8] sm:$0xff]
        %v732 = vld [vmem:[%s476 + $0xd0] sm:$0xff]
        %v733 = vld [vmem:[%s476 + $0xd8] sm:$0xff]
        %v734 = vld [vmem:[%s476 + $0xe0] sm:$0xff]
        %v735 = vld [vmem:[%s476 + $0xe8] sm:$0xff]
        %v736 = vld [vmem:[%s476 + $0xf0] sm:$0xff]
        %v737 = vld [vmem:[%s476 + $0xf8] sm:$0xff]
        %v738 = vld [vmem:[%s490] sm:$0xff]
        %v739 = vld [vmem:[%s490 + $0x8] sm:$0xff]
        %v740 = vld [vmem:[%s490 + $0x10] sm:$0xff]
        %v741 = vld [vmem:[%s490 + $0x18] sm:$0xff]
        %v742 = vld [vmem:[%s490 + $0x20] sm:$0xff]
        %v743 = vld [vmem:[%s490 + $0x28] sm:$0xff]
        %v744 = vld [vmem:[%s490 + $0x30] sm:$0xff]
        %v745 = vld [vmem:[%s490 + $0x38] sm:$0xff]
        %v746 = vld [vmem:[%s490 + $0x40] sm:$0xff]
        %v747 = vld [vmem:[%s490 + $0x48] sm:$0xff]
        %v748 = vld [vmem:[%s490 + $0x50] sm:$0xff]
        %v749 = vld [vmem:[%s490 + $0x58] sm:$0xff]
        %v750 = vld [vmem:[%s490 + $0x60] sm:$0xff]
        %v751 = vld [vmem:[%s490 + $0x68] sm:$0xff]
        %v752 = vld [vmem:[%s490 + $0x70] sm:$0xff]
        %v753 = vld [vmem:[%s490 + $0x78] sm:$0xff]
        %v754 = vld [vmem:[%s490 + $0x80] sm:$0xff]
        %v755 = vld [vmem:[%s490 + $0x88] sm:$0xff]
        %v756 = vld [vmem:[%s490 + $0x90] sm:$0xff]
        %v757 = vld [vmem:[%s490 + $0x98] sm:$0xff]
        %v758 = vld [vmem:[%s490 + $0xa0] sm:$0xff]
        %v759 = vld [vmem:[%s490 + $0xa8] sm:$0xff]
        %v760 = vld [vmem:[%s490 + $0xb0] sm:$0xff]
        %v761 = vld [vmem:[%s490 + $0xb8] sm:$0xff]
        %v762 = vld [vmem:[%s490 + $0xc0] sm:$0xff]
        %v763 = vld [vmem:[%s490 + $0xc8] sm:$0xff]
        %v764 = vld [vmem:[%s490 + $0xd0] sm:$0xff]
        %v765 = vld [vmem:[%s490 + $0xd8] sm:$0xff]
        %v766 = vld [vmem:[%s490 + $0xe0] sm:$0xff]
        %v767 = vld [vmem:[%s490 + $0xe8] sm:$0xff]
        %v768 = vld [vmem:[%s490 + $0xf0] sm:$0xff]
        %v769 = vld [vmem:[%s490 + $0xf8] sm:$0xff]
        %v770 = vld [vmem:[%s497] sm:$0xff]
        %v771 = vld [vmem:[%s497 + $0x8] sm:$0xff]
        %v772 = vld [vmem:[%s497 + $0x10] sm:$0xff]
        %v773 = vld [vmem:[%s497 + $0x18] sm:$0xff]
        %v774 = vld [vmem:[%s497 + $0x20] sm:$0xff]
        %v775 = vld [vmem:[%s497 + $0x28] sm:$0xff]
        %v776 = vld [vmem:[%s497 + $0x30] sm:$0xff]
        %v777 = vld [vmem:[%s497 + $0x38] sm:$0xff]
        %v778 = vld [vmem:[%s497 + $0x40] sm:$0xff]
        %v779 = vld [vmem:[%s497 + $0x48] sm:$0xff]
        %v780 = vld [vmem:[%s497 + $0x50] sm:$0xff]
        %v781 = vld [vmem:[%s497 + $0x58] sm:$0xff]
        %v782 = vld [vmem:[%s497 + $0x60] sm:$0xff]
        %v783 = vld [vmem:[%s497 + $0x68] sm:$0xff]
        %v784 = vld [vmem:[%s497 + $0x70] sm:$0xff]
        %v785 = vld [vmem:[%s497 + $0x78] sm:$0xff]
        %v786 = vld [vmem:[%s497 + $0x80] sm:$0xff]
        %v787 = vld [vmem:[%s497 + $0x88] sm:$0xff]
        %v788 = vld [vmem:[%s497 + $0x90] sm:$0xff]
        %v789 = vld [vmem:[%s497 + $0x98] sm:$0xff]
        %v790 = vld [vmem:[%s497 + $0xa0] sm:$0xff]
        %v791 = vld [vmem:[%s497 + $0xa8] sm:$0xff]
        %v792 = vld [vmem:[%s497 + $0xb0] sm:$0xff]
        %v793 = vld [vmem:[%s497 + $0xb8] sm:$0xff]
        %v794 = vld [vmem:[%s497 + $0xc0] sm:$0xff]
        %v795 = vld [vmem:[%s497 + $0xc8] sm:$0xff]
        %v796 = vld [vmem:[%s497 + $0xd0] sm:$0xff]
        %v797 = vld [vmem:[%s497 + $0xd8] sm:$0xff]
        %v798 = vld [vmem:[%s497 + $0xe0] sm:$0xff]
        %v799 = vld [vmem:[%s497 + $0xe8] sm:$0xff]
        %v800 = vld [vmem:[%s497 + $0xf0] sm:$0xff]
        %v801 = vld [vmem:[%s497 + $0xf8] sm:$0xff]
        %v802 = vld [vmem:[%s406] sm:$0xff]
        %v803 = vld [vmem:[%s406 + $0x8] sm:$0xff]
        %v804 = vld [vmem:[%s406 + $0x10] sm:$0xff]
        %v805 = vld [vmem:[%s406 + $0x18] sm:$0xff]
        %v806 = vld [vmem:[%s406 + $0x20] sm:$0xff]
        %v807 = vld [vmem:[%s406 + $0x28] sm:$0xff]
        %v808 = vld [vmem:[%s406 + $0x30] sm:$0xff]
        %v809 = vld [vmem:[%s406 + $0x38] sm:$0xff]
        %v810 = vld [vmem:[%s406 + $0x40] sm:$0xff]
        %v811 = vld [vmem:[%s406 + $0x48] sm:$0xff]
        %v812 = vld [vmem:[%s406 + $0x50] sm:$0xff]
        %v813 = vld [vmem:[%s406 + $0x58] sm:$0xff]
        %v814 = vld [vmem:[%s406 + $0x60] sm:$0xff]
        %v815 = vld [vmem:[%s406 + $0x68] sm:$0xff]
        %v816 = vld [vmem:[%s406 + $0x70] sm:$0xff]
        %v817 = vld [vmem:[%s406 + $0x78] sm:$0xff]
        %v818 = vld [vmem:[%s406 + $0x80] sm:$0xff]
        %v819 = vld [vmem:[%s406 + $0x88] sm:$0xff]
        %v820 = vld [vmem:[%s406 + $0x90] sm:$0xff]
        %v821 = vld [vmem:[%s406 + $0x98] sm:$0xff]
        %v822 = vld [vmem:[%s406 + $0xa0] sm:$0xff]
        %v823 = vld [vmem:[%s406 + $0xa8] sm:$0xff]
        %v824 = vld [vmem:[%s406 + $0xb0] sm:$0xff]
        %v825 = vld [vmem:[%s406 + $0xb8] sm:$0xff]
        %v826 = vld [vmem:[%s406 + $0xc0] sm:$0xff]
        %v827 = vld [vmem:[%s406 + $0xc8] sm:$0xff]
        %v828 = vld [vmem:[%s406 + $0xd0] sm:$0xff]
        %v829 = vld [vmem:[%s406 + $0xd8] sm:$0xff]
        %v830 = vld [vmem:[%s406 + $0xe0] sm:$0xff]
        %v831 = vld [vmem:[%s406 + $0xe8] sm:$0xff]
        %v832 = vld [vmem:[%s406 + $0xf0] sm:$0xff]
        %v833 = vld [vmem:[%s406 + $0xf8] sm:$0xff]
        %v834 = vmul.f32 %v706, 0.9990005
        %v835 = vmul.f32 %v707, 0.9990005
        %v836 = vmul.f32 %v708, 0.9990005
        %v837 = vmul.f32 %v709, 0.9990005
        %v838 = vmul.f32 %v710, 0.9990005
        %v839 = vmul.f32 %v711, 0.9990005
        %v840 = vmul.f32 %v712, 0.9990005
        %v841 = vmul.f32 %v713, 0.9990005
        %v842 = vmul.f32 %v714, 0.9990005
        %v843 = vmul.f32 %v715, 0.9990005
        %v844 = vmul.f32 %v716, 0.9990005
        %v845 = vmul.f32 %v717, 0.9990005
        %v846 = vmul.f32 %v718, 0.9990005
        %v847 = vmul.f32 %v719, 0.9990005
        %v848 = vmul.f32 %v720, 0.9990005
        %v849 = vmul.f32 %v721, 0.9990005
        %v850 = vmul.f32 %v722, 0.9990005
        %v851 = vmul.f32 %v723, 0.9990005
        %v852 = vmul.f32 %v724, 0.9990005
        %v853 = vmul.f32 %v725, 0.9990005
        %v854 = vmul.f32 %v726, 0.9990005
        %v855 = vmul.f32 %v727, 0.9990005
        %v856 = vmul.f32 %v728, 0.9990005
        %v857 = vmul.f32 %v729, 0.9990005
        %v858 = vmul.f32 %v730, 0.9990005
        %v859 = vmul.f32 %v731, 0.9990005
        %v860 = vmul.f32 %v732, 0.9990005
        %v861 = vmul.f32 %v733, 0.9990005
        %v862 = vmul.f32 %v734, 0.9990005
        %v863 = vmul.f32 %v735, 0.9990005
        %v864 = vmul.f32 %v736, 0.9990005
        %v865 = vmul.f32 %v737, 0.9990005
        %vm866 = vcmp.gt.f32.partialorder %v738, 0.0
        %vm867 = vcmp.gt.f32.partialorder %v739, 0.0
        %vm868 = vcmp.gt.f32.partialorder %v740, 0.0
        %vm869 = vcmp.gt.f32.partialorder %v741, 0.0
        %vm870 = vcmp.gt.f32.partialorder %v742, 0.0
        %vm871 = vcmp.gt.f32.partialorder %v743, 0.0
        %vm872 = vcmp.gt.f32.partialorder %v744, 0.0
        %vm873 = vcmp.gt.f32.partialorder %v745, 0.0
        %vm874 = vcmp.gt.f32.partialorder %v746, 0.0
        %vm875 = vcmp.gt.f32.partialorder %v747, 0.0
        %vm876 = vcmp.gt.f32.partialorder %v748, 0.0
        %vm877 = vcmp.gt.f32.partialorder %v749, 0.0
        %vm878 = vcmp.gt.f32.partialorder %v750, 0.0
        %vm879 = vcmp.gt.f32.partialorder %v751, 0.0
        %vm880 = vcmp.gt.f32.partialorder %v752, 0.0
        %vm881 = vcmp.gt.f32.partialorder %v753, 0.0
        %vm882 = vcmp.gt.f32.partialorder %v754, 0.0
        %vm883 = vcmp.gt.f32.partialorder %v755, 0.0
        %vm884 = vcmp.gt.f32.partialorder %v756, 0.0
        %vm885 = vcmp.gt.f32.partialorder %v757, 0.0
        %vm886 = vcmp.gt.f32.partialorder %v758, 0.0
        %vm887 = vcmp.gt.f32.partialorder %v759, 0.0
        %vm888 = vcmp.gt.f32.partialorder %v760, 0.0
        %vm889 = vcmp.gt.f32.partialorder %v761, 0.0
        %vm890 = vcmp.gt.f32.partialorder %v762, 0.0
        %vm891 = vcmp.gt.f32.partialorder %v763, 0.0
        %vm892 = vcmp.gt.f32.partialorder %v764, 0.0
        %vm893 = vcmp.gt.f32.partialorder %v765, 0.0
        %vm894 = vcmp.gt.f32.partialorder %v766, 0.0
        %vm895 = vcmp.gt.f32.partialorder %v767, 0.0
        %vm896 = vcmp.gt.f32.partialorder %v768, 0.0
        %vm897 = vcmp.gt.f32.partialorder %v769, 0.0
        %v898 = vsel %vm866, 0.0, %v802
        %v899 = vsel %vm867, 0.0, %v803
        %v900 = vsel %vm868, 0.0, %v804
        %v901 = vsel %vm869, 0.0, %v805
        %v902 = vsel %vm870, 0.0, %v806
        %v903 = vsel %vm871, 0.0, %v807
        %v904 = vsel %vm872, 0.0, %v808
        %v905 = vsel %vm873, 0.0, %v809
        %v906 = vsel %vm874, 0.0, %v810
        %v907 = vsel %vm875, 0.0, %v811
        %v908 = vsel %vm876, 0.0, %v812
        %v909 = vsel %vm877, 0.0, %v813
        %v910 = vsel %vm878, 0.0, %v814
        %v911 = vsel %vm879, 0.0, %v815
        %v912 = vsel %vm880, 0.0, %v816
        %v913 = vsel %vm881, 0.0, %v817
        %v914 = vsel %vm882, 0.0, %v818
        %v915 = vsel %vm883, 0.0, %v819
        %v916 = vsel %vm884, 0.0, %v820
        %v917 = vsel %vm885, 0.0, %v821
        %v918 = vsel %vm886, 0.0, %v822
        %v919 = vsel %vm887, 0.0, %v823
        %v920 = vsel %vm888, 0.0, %v824
        %v921 = vsel %vm889, 0.0, %v825
        %v922 = vsel %vm890, 0.0, %v826
        %v923 = vsel %vm891, 0.0, %v827
        %v924 = vsel %vm892, 0.0, %v828
        %v925 = vsel %vm893, 0.0, %v829
        %v926 = vsel %vm894, 0.0, %v830
        %v927 = vsel %vm895, 0.0, %v831
        %v928 = vsel %vm896, 0.0, %v832
        %v929 = vsel %vm897, 0.0, %v833
        %v930 = vadd.f32 %v834, %v898
        %v931 = vadd.f32 %v835, %v899
        %v932 = vadd.f32 %v836, %v900
        %v933 = vadd.f32 %v837, %v901
        %v934 = vadd.f32 %v838, %v902
        %v935 = vadd.f32 %v839, %v903
        %v936 = vadd.f32 %v840, %v904
        %v937 = vadd.f32 %v841, %v905
        %v938 = vadd.f32 %v842, %v906
        %v939 = vadd.f32 %v843, %v907
        %v940 = vadd.f32 %v844, %v908
        %v941 = vadd.f32 %v845, %v909
        %v942 = vadd.f32 %v846, %v910
        %v943 = vadd.f32 %v847, %v911
        %v944 = vadd.f32 %v848, %v912
        %v945 = vadd.f32 %v849, %v913
        %v946 = vadd.f32 %v850, %v914
        %v947 = vadd.f32 %v851, %v915
        %v948 = vadd.f32 %v852, %v916
        %v949 = vadd.f32 %v853, %v917
        %v950 = vadd.f32 %v854, %v918
        %v951 = vadd.f32 %v855, %v919
        %v952 = vadd.f32 %v856, %v920
        %v953 = vadd.f32 %v857, %v921
        %v954 = vadd.f32 %v858, %v922
        %v955 = vadd.f32 %v859, %v923
        %v956 = vadd.f32 %v860, %v924
        %v957 = vadd.f32 %v861, %v925
        %v958 = vadd.f32 %v862, %v926
        %v959 = vadd.f32 %v863, %v927
        %v960 = vadd.f32 %v864, %v928
        %v961 = vadd.f32 %v865, %v929
        %vm962 = vcmp.ge.f32.partialorder %v930, 40.0
        %vm963 = vcmp.ge.f32.partialorder %v931, 40.0
        %vm964 = vcmp.ge.f32.partialorder %v932, 40.0
        %vm965 = vcmp.ge.f32.partialorder %v933, 40.0
        %vm966 = vcmp.ge.f32.partialorder %v934, 40.0
        %vm967 = vcmp.ge.f32.partialorder %v935, 40.0
        %vm968 = vcmp.ge.f32.partialorder %v936, 40.0
        %vm969 = vcmp.ge.f32.partialorder %v937, 40.0
        %vm970 = vcmp.ge.f32.partialorder %v938, 40.0
        %vm971 = vcmp.ge.f32.partialorder %v939, 40.0
        %vm972 = vcmp.ge.f32.partialorder %v940, 40.0
        %vm973 = vcmp.ge.f32.partialorder %v941, 40.0
        %vm974 = vcmp.ge.f32.partialorder %v942, 40.0
        %vm975 = vcmp.ge.f32.partialorder %v943, 40.0
        %vm976 = vcmp.ge.f32.partialorder %v944, 40.0
        %vm977 = vcmp.ge.f32.partialorder %v945, 40.0
        %vm978 = vcmp.ge.f32.partialorder %v946, 40.0
        %vm979 = vcmp.ge.f32.partialorder %v947, 40.0
        %vm980 = vcmp.ge.f32.partialorder %v948, 40.0
        %vm981 = vcmp.ge.f32.partialorder %v949, 40.0
        %vm982 = vcmp.ge.f32.partialorder %v950, 40.0
        %vm983 = vcmp.ge.f32.partialorder %v951, 40.0
        %vm984 = vcmp.ge.f32.partialorder %v952, 40.0
        %vm985 = vcmp.ge.f32.partialorder %v953, 40.0
        %vm986 = vcmp.ge.f32.partialorder %v954, 40.0
        %vm987 = vcmp.ge.f32.partialorder %v955, 40.0
        %vm988 = vcmp.ge.f32.partialorder %v956, 40.0
        %vm989 = vcmp.ge.f32.partialorder %v957, 40.0
        %vm990 = vcmp.ge.f32.partialorder %v958, 40.0
        %vm991 = vcmp.ge.f32.partialorder %v959, 40.0
        %vm992 = vcmp.ge.f32.partialorder %v960, 40.0
        %vm993 = vcmp.ge.f32.partialorder %v961, 40.0
        %vm994 = vmpackc.low %vm964, %vm962
        %vm995 = vmpackc.low %vm968, %vm966
        %v996 = vsel %vm994, 16711935, 0
        %v997 = vsel %vm995, 16711935, 0
        %v998 = vpack.c.b8 %v997, %v996
        %vm999 = vnez %v998
        %vm1000 = vmpackc.low %vm965, %vm963
        %vm1001 = vmpackc.low %vm969, %vm967
        %v1002 = vsel %vm1000, 16711935, 0
        %v1003 = vsel %vm1001, 16711935, 0
        %v1004 = vpack.c.b8 %v1003, %v1002
        %vm1005 = vnez %v1004
        %vm1006 = vmpackc.low %vm972, %vm970
        %vm1007 = vmpackc.low %vm976, %vm974
        %v1008 = vsel %vm1006, 16711935, 0
        %v1009 = vsel %vm1007, 16711935, 0
        %v1010 = vpack.c.b8 %v1009, %v1008
        %vm1011 = vnez %v1010
        %vm1012 = vmpackc.low %vm973, %vm971
        %vm1013 = vmpackc.low %vm977, %vm975
        %v1014 = vsel %vm1012, 16711935, 0
        %v1015 = vsel %vm1013, 16711935, 0
        %v1016 = vpack.c.b8 %v1015, %v1014
        %vm1017 = vnez %v1016
        %vm1018 = vmpackc.low %vm980, %vm978
        %vm1019 = vmpackc.low %vm984, %vm982
        %v1020 = vsel %vm1018, 16711935, 0
        %v1021 = vsel %vm1019, 16711935, 0
        %v1022 = vpack.c.b8 %v1021, %v1020
        %vm1023 = vnez %v1022
        %vm1024 = vmpackc.low %vm981, %vm979
        %vm1025 = vmpackc.low %vm985, %vm983
        %v1026 = vsel %vm1024, 16711935, 0
        %v1027 = vsel %vm1025, 16711935, 0
        %v1028 = vpack.c.b8 %v1027, %v1026
        %vm1029 = vnez %v1028
        %vm1030 = vmpackc.low %vm988, %vm986
        %vm1031 = vmpackc.low %vm992, %vm990
        %v1032 = vsel %vm1030, 16711935, 0
        %v1033 = vsel %vm1031, 16711935, 0
        %v1034 = vpack.c.b8 %v1033, %v1032
        %vm1035 = vnez %v1034
        %vm1036 = vmpackc.low %vm989, %vm987
        %vm1037 = vmpackc.low %vm993, %vm991
        %v1038 = vsel %vm1036, 16711935, 0
        %v1039 = vsel %vm1037, 16711935, 0
        %v1040 = vpack.c.b8 %v1039, %v1038
        %vm1041 = vnez %v1040
        %v1042 = vsel %vm999, 16843009, 0
        %v1043 = vsel %vm1005, 16843009, 0
        %v1044 = vsel %vm1011, 16843009, 0
        %v1045 = vsel %vm1017, 16843009, 0
        %v1046 = vsel %vm1023, 16843009, 0
        %v1047 = vsel %vm1029, 16843009, 0
        %v1048 = vsel %vm1035, 16843009, 0
        %v1049 = vsel %vm1041, 16843009, 0
        %1050 = vst [vmem:[%s483] sm:$0xff] %v1042
        %1051 = vst [vmem:[%s483 + $0x8] sm:$0xff] %v1043
        %1052 = vst [vmem:[%s483 + $0x10] sm:$0xff] %v1044
        %1053 = vst [vmem:[%s483 + $0x18] sm:$0xff] %v1045
        %1054 = vst [vmem:[%s483 + $0x20] sm:$0xff] %v1046
        %1055 = vst [vmem:[%s483 + $0x28] sm:$0xff] %v1047
        %1056 = vst [vmem:[%s483 + $0x30] sm:$0xff] %v1048
        %1057 = vst [vmem:[%s483 + $0x38] sm:$0xff] %v1049
        %v1058 = vsub.f32 %v738, 0.1
        %v1059 = vsub.f32 %v739, 0.1
        %v1060 = vsub.f32 %v740, 0.1
        %v1061 = vsub.f32 %v741, 0.1
        %v1062 = vsub.f32 %v742, 0.1
        %v1063 = vsub.f32 %v743, 0.1
        %v1064 = vsub.f32 %v744, 0.1
        %v1065 = vsub.f32 %v745, 0.1
        %v1066 = vsub.f32 %v746, 0.1
        %v1067 = vsub.f32 %v747, 0.1
        %v1068 = vsub.f32 %v748, 0.1
        %v1069 = vsub.f32 %v749, 0.1
        %v1070 = vsub.f32 %v750, 0.1
        %v1071 = vsub.f32 %v751, 0.1
        %v1072 = vsub.f32 %v752, 0.1
        %v1073 = vsub.f32 %v753, 0.1
        %v1074 = vsub.f32 %v754, 0.1
        %v1075 = vsub.f32 %v755, 0.1
        %v1076 = vsub.f32 %v756, 0.1
        %v1077 = vsub.f32 %v757, 0.1
        %v1078 = vsub.f32 %v758, 0.1
        %v1079 = vsub.f32 %v759, 0.1
        %v1080 = vsub.f32 %v760, 0.1
        %v1081 = vsub.f32 %v761, 0.1
        %v1082 = vsub.f32 %v762, 0.1
        %v1083 = vsub.f32 %v763, 0.1
        %v1084 = vsub.f32 %v764, 0.1
        %v1085 = vsub.f32 %v765, 0.1
        %v1086 = vsub.f32 %v766, 0.1
        %v1087 = vsub.f32 %v767, 0.1
        %v1088 = vsub.f32 %v768, 0.1
        %v1089 = vsub.f32 %v769, 0.1
        %v1090 = vsel %vm962, 5.0, %v1058
        %v1091 = vsel %vm963, 5.0, %v1059
        %v1092 = vsel %vm964, 5.0, %v1060
        %v1093 = vsel %vm965, 5.0, %v1061
        %v1094 = vsel %vm966, 5.0, %v1062
        %v1095 = vsel %vm967, 5.0, %v1063
        %v1096 = vsel %vm968, 5.0, %v1064
        %v1097 = vsel %vm969, 5.0, %v1065
        %v1098 = vsel %vm970, 5.0, %v1066
        %v1099 = vsel %vm971, 5.0, %v1067
        %v1100 = vsel %vm972, 5.0, %v1068
        %v1101 = vsel %vm973, 5.0, %v1069
        %v1102 = vsel %vm974, 5.0, %v1070
        %v1103 = vsel %vm975, 5.0, %v1071
        %v1104 = vsel %vm976, 5.0, %v1072
        %v1105 = vsel %vm977, 5.0, %v1073
        %v1106 = vsel %vm978, 5.0, %v1074
        %v1107 = vsel %vm979, 5.0, %v1075
        %v1108 = vsel %vm980, 5.0, %v1076
        %v1109 = vsel %vm981, 5.0, %v1077
        %v1110 = vsel %vm982, 5.0, %v1078
        %v1111 = vsel %vm983, 5.0, %v1079
        %v1112 = vsel %vm984, 5.0, %v1080
        %v1113 = vsel %vm985, 5.0, %v1081
        %v1114 = vsel %vm986, 5.0, %v1082
        %v1115 = vsel %vm987, 5.0, %v1083
        %v1116 = vsel %vm988, 5.0, %v1084
        %v1117 = vsel %vm989, 5.0, %v1085
        %v1118 = vsel %vm990, 5.0, %v1086
        %v1119 = vsel %vm991, 5.0, %v1087
        %v1120 = vsel %vm992, 5.0, %v1088
        %v1121 = vsel %vm993, 5.0, %v1089
        %v1122 = vsel %vm962, 0.0, %v930
        %v1123 = vsel %vm963, 0.0, %v931
        %v1124 = vsel %vm964, 0.0, %v932
        %v1125 = vsel %vm965, 0.0, %v933
        %v1126 = vsel %vm966, 0.0, %v934
        %v1127 = vsel %vm967, 0.0, %v935
        %v1128 = vsel %vm968, 0.0, %v936
        %v1129 = vsel %vm969, 0.0, %v937
        %v1130 = vsel %vm970, 0.0, %v938
        %v1131 = vsel %vm971, 0.0, %v939
        %v1132 = vsel %vm972, 0.0, %v940
        %v1133 = vsel %vm973, 0.0, %v941
        %v1134 = vsel %vm974, 0.0, %v942
        %v1135 = vsel %vm975, 0.0, %v943
        %v1136 = vsel %vm976, 0.0, %v944
        %v1137 = vsel %vm977, 0.0, %v945
        %v1138 = vsel %vm978, 0.0, %v946
        %v1139 = vsel %vm979, 0.0, %v947
        %v1140 = vsel %vm980, 0.0, %v948
        %v1141 = vsel %vm981, 0.0, %v949
        %v1142 = vsel %vm982, 0.0, %v950
        %v1143 = vsel %vm983, 0.0, %v951
        %v1144 = vsel %vm984, 0.0, %v952
        %v1145 = vsel %vm985, 0.0, %v953
        %v1146 = vsel %vm986, 0.0, %v954
        %v1147 = vsel %vm987, 0.0, %v955
        %v1148 = vsel %vm988, 0.0, %v956
        %v1149 = vsel %vm989, 0.0, %v957
        %v1150 = vsel %vm990, 0.0, %v958
        %v1151 = vsel %vm991, 0.0, %v959
        %v1152 = vsel %vm992, 0.0, %v960
        %v1153 = vsel %vm993, 0.0, %v961
        %v1154 = vmul.f32 %v770, 0.99004984
        %v1155 = vmul.f32 %v771, 0.99004984
        %v1156 = vmul.f32 %v772, 0.99004984
        %v1157 = vmul.f32 %v773, 0.99004984
        %v1158 = vmul.f32 %v774, 0.99004984
        %v1159 = vmul.f32 %v775, 0.99004984
        %v1160 = vmul.f32 %v776, 0.99004984
        %v1161 = vmul.f32 %v777, 0.99004984
        %v1162 = vmul.f32 %v778, 0.99004984
        %v1163 = vmul.f32 %v779, 0.99004984
        %v1164 = vmul.f32 %v780, 0.99004984
        %v1165 = vmul.f32 %v781, 0.99004984
        %v1166 = vmul.f32 %v782, 0.99004984
        %v1167 = vmul.f32 %v783, 0.99004984
        %v1168 = vmul.f32 %v784, 0.99004984
        %v1169 = vmul.f32 %v785, 0.99004984
        %v1170 = vmul.f32 %v786, 0.99004984
        %v1171 = vmul.f32 %v787, 0.99004984
        %v1172 = vmul.f32 %v788, 0.99004984
        %v1173 = vmul.f32 %v789, 0.99004984
        %v1174 = vmul.f32 %v790, 0.99004984
        %v1175 = vmul.f32 %v791, 0.99004984
        %v1176 = vmul.f32 %v792, 0.99004984
        %v1177 = vmul.f32 %v793, 0.99004984
        %v1178 = vmul.f32 %v794, 0.99004984
        %v1179 = vmul.f32 %v795, 0.99004984
        %v1180 = vmul.f32 %v796, 0.99004984
        %v1181 = vmul.f32 %v797, 0.99004984
        %v1182 = vmul.f32 %v798, 0.99004984
        %v1183 = vmul.f32 %v799, 0.99004984
        %v1184 = vmul.f32 %v800, 0.99004984
        %v1185 = vmul.f32 %v801, 0.99004984
        %v1186 = vsel %vm962, 1.0, %v1154
        %v1187 = vsel %vm963, 1.0, %v1155
        %v1188 = vsel %vm964, 1.0, %v1156
        %v1189 = vsel %vm965, 1.0, %v1157
        %v1190 = vsel %vm966, 1.0, %v1158
        %v1191 = vsel %vm967, 1.0, %v1159
        %v1192 = vsel %vm968, 1.0, %v1160
        %v1193 = vsel %vm969, 1.0, %v1161
        %v1194 = vsel %vm970, 1.0, %v1162
        %v1195 = vsel %vm971, 1.0, %v1163
        %v1196 = vsel %vm972, 1.0, %v1164
        %v1197 = vsel %vm973, 1.0, %v1165
        %v1198 = vsel %vm974, 1.0, %v1166
        %v1199 = vsel %vm975, 1.0, %v1167
        %v1200 = vsel %vm976, 1.0, %v1168
        %v1201 = vsel %vm977, 1.0, %v1169
        %v1202 = vsel %vm978, 1.0, %v1170
        %v1203 = vsel %vm979, 1.0, %v1171
        %v1204 = vsel %vm980, 1.0, %v1172
        %v1205 = vsel %vm981, 1.0, %v1173
        %v1206 = vsel %vm982, 1.0, %v1174
        %v1207 = vsel %vm983, 1.0, %v1175
        %v1208 = vsel %vm984, 1.0, %v1176
        %v1209 = vsel %vm985, 1.0, %v1177
        %v1210 = vsel %vm986, 1.0, %v1178
        %v1211 = vsel %vm987, 1.0, %v1179
        %v1212 = vsel %vm988, 1.0, %v1180
        %v1213 = vsel %vm989, 1.0, %v1181
        %v1214 = vsel %vm990, 1.0, %v1182
        %v1215 = vsel %vm991, 1.0, %v1183
        %v1216 = vsel %vm992, 1.0, %v1184
        %v1217 = vsel %vm993, 1.0, %v1185
        %s1218 = scalar_lea.vmem %s406, 256 [#allocation2]
        %v1219 = vld [vmem:[%s1218] sm:$0xff]
        %v1220 = vld [vmem:[%s1218 + $0x8] sm:$0xff]
        %v1221 = vld [vmem:[%s1218 + $0x10] sm:$0xff]
        %v1222 = vld [vmem:[%s1218 + $0x18] sm:$0xff]
        %v1223 = vld [vmem:[%s1218 + $0x20] sm:$0xff]
        %v1224 = vld [vmem:[%s1218 + $0x28] sm:$0xff]
        %v1225 = vld [vmem:[%s1218 + $0x30] sm:$0xff]
        %v1226 = vld [vmem:[%s1218 + $0x38] sm:$0xff]
        %v1227 = vld [vmem:[%s1218 + $0x40] sm:$0xff]
        %v1228 = vld [vmem:[%s1218 + $0x48] sm:$0xff]
        %v1229 = vld [vmem:[%s1218 + $0x50] sm:$0xff]
        %v1230 = vld [vmem:[%s1218 + $0x58] sm:$0xff]
        %v1231 = vld [vmem:[%s1218 + $0x60] sm:$0xff]
        %v1232 = vld [vmem:[%s1218 + $0x68] sm:$0xff]
        %v1233 = vld [vmem:[%s1218 + $0x70] sm:$0xff]
        %v1234 = vld [vmem:[%s1218 + $0x78] sm:$0xff]
        %v1235 = vld [vmem:[%s1218 + $0x80] sm:$0xff]
        %v1236 = vld [vmem:[%s1218 + $0x88] sm:$0xff]
        %v1237 = vld [vmem:[%s1218 + $0x90] sm:$0xff]
        %v1238 = vld [vmem:[%s1218 + $0x98] sm:$0xff]
        %v1239 = vld [vmem:[%s1218 + $0xa0] sm:$0xff]
        %v1240 = vld [vmem:[%s1218 + $0xa8] sm:$0xff]
        %v1241 = vld [vmem:[%s1218 + $0xb0] sm:$0xff]
        %v1242 = vld [vmem:[%s1218 + $0xb8] sm:$0xff]
        %v1243 = vld [vmem:[%s1218 + $0xc0] sm:$0xff]
        %v1244 = vld [vmem:[%s1218 + $0xc8] sm:$0xff]
        %v1245 = vld [vmem:[%s1218 + $0xd0] sm:$0xff]
        %v1246 = vld [vmem:[%s1218 + $0xd8] sm:$0xff]
        %v1247 = vld [vmem:[%s1218 + $0xe0] sm:$0xff]
        %v1248 = vld [vmem:[%s1218 + $0xe8] sm:$0xff]
        %v1249 = vld [vmem:[%s1218 + $0xf0] sm:$0xff]
        %v1250 = vld [vmem:[%s1218 + $0xf8] sm:$0xff]
        %v1251 = vmul.f32 %v1122, 0.9990005
        %v1252 = vmul.f32 %v1123, 0.9990005
        %v1253 = vmul.f32 %v1124, 0.9990005
        %v1254 = vmul.f32 %v1125, 0.9990005
        %v1255 = vmul.f32 %v1126, 0.9990005
        %v1256 = vmul.f32 %v1127, 0.9990005
        %v1257 = vmul.f32 %v1128, 0.9990005
        %v1258 = vmul.f32 %v1129, 0.9990005
        %v1259 = vmul.f32 %v1130, 0.9990005
        %v1260 = vmul.f32 %v1131, 0.9990005
        %v1261 = vmul.f32 %v1132, 0.9990005
        %v1262 = vmul.f32 %v1133, 0.9990005
        %v1263 = vmul.f32 %v1134, 0.9990005
        %v1264 = vmul.f32 %v1135, 0.9990005
        %v1265 = vmul.f32 %v1136, 0.9990005
        %v1266 = vmul.f32 %v1137, 0.9990005
        %v1267 = vmul.f32 %v1138, 0.9990005
        %v1268 = vmul.f32 %v1139, 0.9990005
        %v1269 = vmul.f32 %v1140, 0.9990005
        %v1270 = vmul.f32 %v1141, 0.9990005
        %v1271 = vmul.f32 %v1142, 0.9990005
        %v1272 = vmul.f32 %v1143, 0.9990005
        %v1273 = vmul.f32 %v1144, 0.9990005
        %v1274 = vmul.f32 %v1145, 0.9990005
        %v1275 = vmul.f32 %v1146, 0.9990005
        %v1276 = vmul.f32 %v1147, 0.9990005
        %v1277 = vmul.f32 %v1148, 0.9990005
        %v1278 = vmul.f32 %v1149, 0.9990005
        %v1279 = vmul.f32 %v1150, 0.9990005
        %v1280 = vmul.f32 %v1151, 0.9990005
        %v1281 = vmul.f32 %v1152, 0.9990005
        %v1282 = vmul.f32 %v1153, 0.9990005
        %vm1283 = vcmp.gt.f32.partialorder %v1090, 0.0
        %vm1284 = vcmp.gt.f32.partialorder %v1091, 0.0
        %vm1285 = vcmp.gt.f32.partialorder %v1092, 0.0
        %vm1286 = vcmp.gt.f32.partialorder %v1093, 0.0
        %vm1287 = vcmp.gt.f32.partialorder %v1094, 0.0
        %vm1288 = vcmp.gt.f32.partialorder %v1095, 0.0
        %vm1289 = vcmp.gt.f32.partialorder %v1096, 0.0
        %vm1290 = vcmp.gt.f32.partialorder %v1097, 0.0
        %vm1291 = vcmp.gt.f32.partialorder %v1098, 0.0
        %vm1292 = vcmp.gt.f32.partialorder %v1099, 0.0
        %vm1293 = vcmp.gt.f32.partialorder %v1100, 0.0
        %vm1294 = vcmp.gt.f32.partialorder %v1101, 0.0
        %vm1295 = vcmp.gt.f32.partialorder %v1102, 0.0
        %vm1296 = vcmp.gt.f32.partialorder %v1103, 0.0
        %vm1297 = vcmp.gt.f32.partialorder %v1104, 0.0
        %vm1298 = vcmp.gt.f32.partialorder %v1105, 0.0
        %vm1299 = vcmp.gt.f32.partialorder %v1106, 0.0
        %vm1300 = vcmp.gt.f32.partialorder %v1107, 0.0
        %vm1301 = vcmp.gt.f32.partialorder %v1108, 0.0
        %vm1302 = vcmp.gt.f32.partialorder %v1109, 0.0
        %vm1303 = vcmp.gt.f32.partialorder %v1110, 0.0
        %vm1304 = vcmp.gt.f32.partialorder %v1111, 0.0
        %vm1305 = vcmp.gt.f32.partialorder %v1112, 0.0
        %vm1306 = vcmp.gt.f32.partialorder %v1113, 0.0
        %vm1307 = vcmp.gt.f32.partialorder %v1114, 0.0
        %vm1308 = vcmp.gt.f32.partialorder %v1115, 0.0
        %vm1309 = vcmp.gt.f32.partialorder %v1116, 0.0
        %vm1310 = vcmp.gt.f32.partialorder %v1117, 0.0
        %vm1311 = vcmp.gt.f32.partialorder %v1118, 0.0
        %vm1312 = vcmp.gt.f32.partialorder %v1119, 0.0
        %vm1313 = vcmp.gt.f32.partialorder %v1120, 0.0
        %vm1314 = vcmp.gt.f32.partialorder %v1121, 0.0
        %v1315 = vsel %vm1283, 0.0, %v1219
        %v1316 = vsel %vm1284, 0.0, %v1220
        %v1317 = vsel %vm1285, 0.0, %v1221
        %v1318 = vsel %vm1286, 0.0, %v1222
        %v1319 = vsel %vm1287, 0.0, %v1223
        %v1320 = vsel %vm1288, 0.0, %v1224
        %v1321 = vsel %vm1289, 0.0, %v1225
        %v1322 = vsel %vm1290, 0.0, %v1226
        %v1323 = vsel %vm1291, 0.0, %v1227
        %v1324 = vsel %vm1292, 0.0, %v1228
        %v1325 = vsel %vm1293, 0.0, %v1229
        %v1326 = vsel %vm1294, 0.0, %v1230
        %v1327 = vsel %vm1295, 0.0, %v1231
        %v1328 = vsel %vm1296, 0.0, %v1232
        %v1329 = vsel %vm1297, 0.0, %v1233
        %v1330 = vsel %vm1298, 0.0, %v1234
        %v1331 = vsel %vm1299, 0.0, %v1235
        %v1332 = vsel %vm1300, 0.0, %v1236
        %v1333 = vsel %vm1301, 0.0, %v1237
        %v1334 = vsel %vm1302, 0.0, %v1238
        %v1335 = vsel %vm1303, 0.0, %v1239
        %v1336 = vsel %vm1304, 0.0, %v1240
        %v1337 = vsel %vm1305, 0.0, %v1241
        %v1338 = vsel %vm1306, 0.0, %v1242
        %v1339 = vsel %vm1307, 0.0, %v1243
        %v1340 = vsel %vm1308, 0.0, %v1244
        %v1341 = vsel %vm1309, 0.0, %v1245
        %v1342 = vsel %vm1310, 0.0, %v1246
        %v1343 = vsel %vm1311, 0.0, %v1247
        %v1344 = vsel %vm1312, 0.0, %v1248
        %v1345 = vsel %vm1313, 0.0, %v1249
        %v1346 = vsel %vm1314, 0.0, %v1250
        %v1347 = vadd.f32 %v1251, %v1315
        %v1348 = vadd.f32 %v1252, %v1316
        %v1349 = vadd.f32 %v1253, %v1317
        %v1350 = vadd.f32 %v1254, %v1318
        %v1351 = vadd.f32 %v1255, %v1319
        %v1352 = vadd.f32 %v1256, %v1320
        %v1353 = vadd.f32 %v1257, %v1321
        %v1354 = vadd.f32 %v1258, %v1322
        %v1355 = vadd.f32 %v1259, %v1323
        %v1356 = vadd.f32 %v1260, %v1324
        %v1357 = vadd.f32 %v1261, %v1325
        %v1358 = vadd.f32 %v1262, %v1326
        %v1359 = vadd.f32 %v1263, %v1327
        %v1360 = vadd.f32 %v1264, %v1328
        %v1361 = vadd.f32 %v1265, %v1329
        %v1362 = vadd.f32 %v1266, %v1330
        %v1363 = vadd.f32 %v1267, %v1331
        %v1364 = vadd.f32 %v1268, %v1332
        %v1365 = vadd.f32 %v1269, %v1333
        %v1366 = vadd.f32 %v1270, %v1334
        %v1367 = vadd.f32 %v1271, %v1335
        %v1368 = vadd.f32 %v1272, %v1336
        %v1369 = vadd.f32 %v1273, %v1337
        %v1370 = vadd.f32 %v1274, %v1338
        %v1371 = vadd.f32 %v1275, %v1339
        %v1372 = vadd.f32 %v1276, %v1340
        %v1373 = vadd.f32 %v1277, %v1341
        %v1374 = vadd.f32 %v1278, %v1342
        %v1375 = vadd.f32 %v1279, %v1343
        %v1376 = vadd.f32 %v1280, %v1344
        %v1377 = vadd.f32 %v1281, %v1345
        %v1378 = vadd.f32 %v1282, %v1346
        %vm1379 = vcmp.ge.f32.partialorder %v1347, 40.0
        %vm1380 = vcmp.ge.f32.partialorder %v1348, 40.0
        %vm1381 = vcmp.ge.f32.partialorder %v1349, 40.0
        %vm1382 = vcmp.ge.f32.partialorder %v1350, 40.0
        %vm1383 = vcmp.ge.f32.partialorder %v1351, 40.0
        %vm1384 = vcmp.ge.f32.partialorder %v1352, 40.0
        %vm1385 = vcmp.ge.f32.partialorder %v1353, 40.0
        %vm1386 = vcmp.ge.f32.partialorder %v1354, 40.0
        %vm1387 = vcmp.ge.f32.partialorder %v1355, 40.0
        %vm1388 = vcmp.ge.f32.partialorder %v1356, 40.0
        %vm1389 = vcmp.ge.f32.partialorder %v1357, 40.0
        %vm1390 = vcmp.ge.f32.partialorder %v1358, 40.0
        %vm1391 = vcmp.ge.f32.partialorder %v1359, 40.0
        %vm1392 = vcmp.ge.f32.partialorder %v1360, 40.0
        %vm1393 = vcmp.ge.f32.partialorder %v1361, 40.0
        %vm1394 = vcmp.ge.f32.partialorder %v1362, 40.0
        %vm1395 = vcmp.ge.f32.partialorder %v1363, 40.0
        %vm1396 = vcmp.ge.f32.partialorder %v1364, 40.0
        %vm1397 = vcmp.ge.f32.partialorder %v1365, 40.0
        %vm1398 = vcmp.ge.f32.partialorder %v1366, 40.0
        %vm1399 = vcmp.ge.f32.partialorder %v1367, 40.0
        %vm1400 = vcmp.ge.f32.partialorder %v1368, 40.0
        %vm1401 = vcmp.ge.f32.partialorder %v1369, 40.0
        %vm1402 = vcmp.ge.f32.partialorder %v1370, 40.0
        %vm1403 = vcmp.ge.f32.partialorder %v1371, 40.0
        %vm1404 = vcmp.ge.f32.partialorder %v1372, 40.0
        %vm1405 = vcmp.ge.f32.partialorder %v1373, 40.0
        %vm1406 = vcmp.ge.f32.partialorder %v1374, 40.0
        %vm1407 = vcmp.ge.f32.partialorder %v1375, 40.0
        %vm1408 = vcmp.ge.f32.partialorder %v1376, 40.0
        %vm1409 = vcmp.ge.f32.partialorder %v1377, 40.0
        %vm1410 = vcmp.ge.f32.partialorder %v1378, 40.0
        %vm1411 = vmpackc.low %vm1381, %vm1379
        %vm1412 = vmpackc.low %vm1385, %vm1383
        %v1413 = vsel %vm1411, 16711935, 0
        %v1414 = vsel %vm1412, 16711935, 0
        %v1415 = vpack.c.b8 %v1414, %v1413
        %vm1416 = vnez %v1415
        %vm1417 = vmpackc.low %vm1382, %vm1380
        %vm1418 = vmpackc.low %vm1386, %vm1384
        %v1419 = vsel %vm1417, 16711935, 0
        %v1420 = vsel %vm1418, 16711935, 0
        %v1421 = vpack.c.b8 %v1420, %v1419
        %vm1422 = vnez %v1421
        %vm1423 = vmpackc.low %vm1389, %vm1387
        %vm1424 = vmpackc.low %vm1393, %vm1391
        %v1425 = vsel %vm1423, 16711935, 0
        %v1426 = vsel %vm1424, 16711935, 0
        %v1427 = vpack.c.b8 %v1426, %v1425
        %vm1428 = vnez %v1427
        %vm1429 = vmpackc.low %vm1390, %vm1388
        %vm1430 = vmpackc.low %vm1394, %vm1392
        %v1431 = vsel %vm1429, 16711935, 0
        %v1432 = vsel %vm1430, 16711935, 0
        %v1433 = vpack.c.b8 %v1432, %v1431
        %vm1434 = vnez %v1433
        %vm1435 = vmpackc.low %vm1397, %vm1395
        %vm1436 = vmpackc.low %vm1401, %vm1399
        %v1437 = vsel %vm1435, 16711935, 0
        %v1438 = vsel %vm1436, 16711935, 0
        %v1439 = vpack.c.b8 %v1438, %v1437
        %vm1440 = vnez %v1439
        %vm1441 = vmpackc.low %vm1398, %vm1396
        %vm1442 = vmpackc.low %vm1402, %vm1400
        %v1443 = vsel %vm1441, 16711935, 0
        %v1444 = vsel %vm1442, 16711935, 0
        %v1445 = vpack.c.b8 %v1444, %v1443
        %vm1446 = vnez %v1445
        %vm1447 = vmpackc.low %vm1405, %vm1403
        %vm1448 = vmpackc.low %vm1409, %vm1407
        %v1449 = vsel %vm1447, 16711935, 0
        %v1450 = vsel %vm1448, 16711935, 0
        %v1451 = vpack.c.b8 %v1450, %v1449
        %vm1452 = vnez %v1451
        %vm1453 = vmpackc.low %vm1406, %vm1404
        %vm1454 = vmpackc.low %vm1410, %vm1408
        %v1455 = vsel %vm1453, 16711935, 0
        %v1456 = vsel %vm1454, 16711935, 0
        %v1457 = vpack.c.b8 %v1456, %v1455
        %vm1458 = vnez %v1457
        %v1459 = vsel %vm1416, 16843009, 0
        %v1460 = vsel %vm1422, 16843009, 0
        %v1461 = vsel %vm1428, 16843009, 0
        %v1462 = vsel %vm1434, 16843009, 0
        %v1463 = vsel %vm1440, 16843009, 0
        %v1464 = vsel %vm1446, 16843009, 0
        %v1465 = vsel %vm1452, 16843009, 0
        %v1466 = vsel %vm1458, 16843009, 0
        %s1467 = scalar_lea.vmem %s483, 64 [#allocation11]
        %1468 = vst [vmem:[%s1467] sm:$0xff] %v1459
        %1469 = vst [vmem:[%s1467 + $0x8] sm:$0xff] %v1460
        %1470 = vst [vmem:[%s1467 + $0x10] sm:$0xff] %v1461
        %1471 = vst [vmem:[%s1467 + $0x18] sm:$0xff] %v1462
        %1472 = vst [vmem:[%s1467 + $0x20] sm:$0xff] %v1463
        %1473 = vst [vmem:[%s1467 + $0x28] sm:$0xff] %v1464
        %1474 = vst [vmem:[%s1467 + $0x30] sm:$0xff] %v1465
        %1475 = vst [vmem:[%s1467 + $0x38] sm:$0xff] %v1466
        %v1476 = vsub.f32 %v1090, 0.1
        %v1477 = vsub.f32 %v1091, 0.1
        %v1478 = vsub.f32 %v1092, 0.1
        %v1479 = vsub.f32 %v1093, 0.1
        %v1480 = vsub.f32 %v1094, 0.1
        %v1481 = vsub.f32 %v1095, 0.1
        %v1482 = vsub.f32 %v1096, 0.1
        %v1483 = vsub.f32 %v1097, 0.1
        %v1484 = vsub.f32 %v1098, 0.1
        %v1485 = vsub.f32 %v1099, 0.1
        %v1486 = vsub.f32 %v1100, 0.1
        %v1487 = vsub.f32 %v1101, 0.1
        %v1488 = vsub.f32 %v1102, 0.1
        %v1489 = vsub.f32 %v1103, 0.1
        %v1490 = vsub.f32 %v1104, 0.1
        %v1491 = vsub.f32 %v1105, 0.1
        %v1492 = vsub.f32 %v1106, 0.1
        %v1493 = vsub.f32 %v1107, 0.1
        %v1494 = vsub.f32 %v1108, 0.1
        %v1495 = vsub.f32 %v1109, 0.1
        %v1496 = vsub.f32 %v1110, 0.1
        %v1497 = vsub.f32 %v1111, 0.1
        %v1498 = vsub.f32 %v1112, 0.1
        %v1499 = vsub.f32 %v1113, 0.1
        %v1500 = vsub.f32 %v1114, 0.1
        %v1501 = vsub.f32 %v1115, 0.1
        %v1502 = vsub.f32 %v1116, 0.1
        %v1503 = vsub.f32 %v1117, 0.1
        %v1504 = vsub.f32 %v1118, 0.1
        %v1505 = vsub.f32 %v1119, 0.1
        %v1506 = vsub.f32 %v1120, 0.1
        %v1507 = vsub.f32 %v1121, 0.1
        %v1508 = vsel %vm1379, 5.0, %v1476
        %v1509 = vsel %vm1380, 5.0, %v1477
        %v1510 = vsel %vm1381, 5.0, %v1478
        %v1511 = vsel %vm1382, 5.0, %v1479
        %v1512 = vsel %vm1383, 5.0, %v1480
        %v1513 = vsel %vm1384, 5.0, %v1481
        %v1514 = vsel %vm1385, 5.0, %v1482
        %v1515 = vsel %vm1386, 5.0, %v1483
        %v1516 = vsel %vm1387, 5.0, %v1484
        %v1517 = vsel %vm1388, 5.0, %v1485
        %v1518 = vsel %vm1389, 5.0, %v1486
        %v1519 = vsel %vm1390, 5.0, %v1487
        %v1520 = vsel %vm1391, 5.0, %v1488
        %v1521 = vsel %vm1392, 5.0, %v1489
        %v1522 = vsel %vm1393, 5.0, %v1490
        %v1523 = vsel %vm1394, 5.0, %v1491
        %v1524 = vsel %vm1395, 5.0, %v1492
        %v1525 = vsel %vm1396, 5.0, %v1493
        %v1526 = vsel %vm1397, 5.0, %v1494
        %v1527 = vsel %vm1398, 5.0, %v1495
        %v1528 = vsel %vm1399, 5.0, %v1496
        %v1529 = vsel %vm1400, 5.0, %v1497
        %v1530 = vsel %vm1401, 5.0, %v1498
        %v1531 = vsel %vm1402, 5.0, %v1499
        %v1532 = vsel %vm1403, 5.0, %v1500
        %v1533 = vsel %vm1404, 5.0, %v1501
        %v1534 = vsel %vm1405, 5.0, %v1502
        %v1535 = vsel %vm1406, 5.0, %v1503
        %v1536 = vsel %vm1407, 5.0, %v1504
        %v1537 = vsel %vm1408, 5.0, %v1505
        %v1538 = vsel %vm1409, 5.0, %v1506
        %v1539 = vsel %vm1410, 5.0, %v1507
        %v1540 = vsel %vm1379, 0.0, %v1347
        %v1541 = vsel %vm1380, 0.0, %v1348
        %v1542 = vsel %vm1381, 0.0, %v1349
        %v1543 = vsel %vm1382, 0.0, %v1350
        %v1544 = vsel %vm1383, 0.0, %v1351
        %v1545 = vsel %vm1384, 0.0, %v1352
        %v1546 = vsel %vm1385, 0.0, %v1353
        %v1547 = vsel %vm1386, 0.0, %v1354
        %v1548 = vsel %vm1387, 0.0, %v1355
        %v1549 = vsel %vm1388, 0.0, %v1356
        %v1550 = vsel %vm1389, 0.0, %v1357
        %v1551 = vsel %vm1390, 0.0, %v1358
        %v1552 = vsel %vm1391, 0.0, %v1359
        %v1553 = vsel %vm1392, 0.0, %v1360
        %v1554 = vsel %vm1393, 0.0, %v1361
        %v1555 = vsel %vm1394, 0.0, %v1362
        %v1556 = vsel %vm1395, 0.0, %v1363
        %v1557 = vsel %vm1396, 0.0, %v1364
        %v1558 = vsel %vm1397, 0.0, %v1365
        %v1559 = vsel %vm1398, 0.0, %v1366
        %v1560 = vsel %vm1399, 0.0, %v1367
        %v1561 = vsel %vm1400, 0.0, %v1368
        %v1562 = vsel %vm1401, 0.0, %v1369
        %v1563 = vsel %vm1402, 0.0, %v1370
        %v1564 = vsel %vm1403, 0.0, %v1371
        %v1565 = vsel %vm1404, 0.0, %v1372
        %v1566 = vsel %vm1405, 0.0, %v1373
        %v1567 = vsel %vm1406, 0.0, %v1374
        %v1568 = vsel %vm1407, 0.0, %v1375
        %v1569 = vsel %vm1408, 0.0, %v1376
        %v1570 = vsel %vm1409, 0.0, %v1377
        %v1571 = vsel %vm1410, 0.0, %v1378
        %v1572 = vmul.f32 %v1186, 0.99004984
        %v1573 = vmul.f32 %v1187, 0.99004984
        %v1574 = vmul.f32 %v1188, 0.99004984
        %v1575 = vmul.f32 %v1189, 0.99004984
        %v1576 = vmul.f32 %v1190, 0.99004984
        %v1577 = vmul.f32 %v1191, 0.99004984
        %v1578 = vmul.f32 %v1192, 0.99004984
        %v1579 = vmul.f32 %v1193, 0.99004984
        %v1580 = vmul.f32 %v1194, 0.99004984
        %v1581 = vmul.f32 %v1195, 0.99004984
        %v1582 = vmul.f32 %v1196, 0.99004984
        %v1583 = vmul.f32 %v1197, 0.99004984
        %v1584 = vmul.f32 %v1198, 0.99004984
        %v1585 = vmul.f32 %v1199, 0.99004984
        %v1586 = vmul.f32 %v1200, 0.99004984
        %v1587 = vmul.f32 %v1201, 0.99004984
        %v1588 = vmul.f32 %v1202, 0.99004984
        %v1589 = vmul.f32 %v1203, 0.99004984
        %v1590 = vmul.f32 %v1204, 0.99004984
        %v1591 = vmul.f32 %v1205, 0.99004984
        %v1592 = vmul.f32 %v1206, 0.99004984
        %v1593 = vmul.f32 %v1207, 0.99004984
        %v1594 = vmul.f32 %v1208, 0.99004984
        %v1595 = vmul.f32 %v1209, 0.99004984
        %v1596 = vmul.f32 %v1210, 0.99004984
        %v1597 = vmul.f32 %v1211, 0.99004984
        %v1598 = vmul.f32 %v1212, 0.99004984
        %v1599 = vmul.f32 %v1213, 0.99004984
        %v1600 = vmul.f32 %v1214, 0.99004984
        %v1601 = vmul.f32 %v1215, 0.99004984
        %v1602 = vmul.f32 %v1216, 0.99004984
        %v1603 = vmul.f32 %v1217, 0.99004984
        %v1604 = vsel %vm1379, 1.0, %v1572
        %v1605 = vsel %vm1380, 1.0, %v1573
        %v1606 = vsel %vm1381, 1.0, %v1574
        %v1607 = vsel %vm1382, 1.0, %v1575
        %v1608 = vsel %vm1383, 1.0, %v1576
        %v1609 = vsel %vm1384, 1.0, %v1577
        %v1610 = vsel %vm1385, 1.0, %v1578
        %v1611 = vsel %vm1386, 1.0, %v1579
        %v1612 = vsel %vm1387, 1.0, %v1580
        %v1613 = vsel %vm1388, 1.0, %v1581
        %v1614 = vsel %vm1389, 1.0, %v1582
        %v1615 = vsel %vm1390, 1.0, %v1583
        %v1616 = vsel %vm1391, 1.0, %v1584
        %v1617 = vsel %vm1392, 1.0, %v1585
        %v1618 = vsel %vm1393, 1.0, %v1586
        %v1619 = vsel %vm1394, 1.0, %v1587
        %v1620 = vsel %vm1395, 1.0, %v1588
        %v1621 = vsel %vm1396, 1.0, %v1589
        %v1622 = vsel %vm1397, 1.0, %v1590
        %v1623 = vsel %vm1398, 1.0, %v1591
        %v1624 = vsel %vm1399, 1.0, %v1592
        %v1625 = vsel %vm1400, 1.0, %v1593
        %v1626 = vsel %vm1401, 1.0, %v1594
        %v1627 = vsel %vm1402, 1.0, %v1595
        %v1628 = vsel %vm1403, 1.0, %v1596
        %v1629 = vsel %vm1404, 1.0, %v1597
        %v1630 = vsel %vm1405, 1.0, %v1598
        %v1631 = vsel %vm1406, 1.0, %v1599
        %v1632 = vsel %vm1407, 1.0, %v1600
        %v1633 = vsel %vm1408, 1.0, %v1601
        %v1634 = vsel %vm1409, 1.0, %v1602
        %v1635 = vsel %vm1410, 1.0, %v1603
        %s1636 = scalar_lea.vmem %s406, 512 [#allocation2]
        %v1637 = vld [vmem:[%s1636] sm:$0xff]
        %v1638 = vld [vmem:[%s1636 + $0x8] sm:$0xff]
        %v1639 = vld [vmem:[%s1636 + $0x10] sm:$0xff]
        %v1640 = vld [vmem:[%s1636 + $0x18] sm:$0xff]
        %v1641 = vld [vmem:[%s1636 + $0x20] sm:$0xff]
        %v1642 = vld [vmem:[%s1636 + $0x28] sm:$0xff]
        %v1643 = vld [vmem:[%s1636 + $0x30] sm:$0xff]
        %v1644 = vld [vmem:[%s1636 + $0x38] sm:$0xff]
        %v1645 = vld [vmem:[%s1636 + $0x40] sm:$0xff]
        %v1646 = vld [vmem:[%s1636 + $0x48] sm:$0xff]
        %v1647 = vld [vmem:[%s1636 + $0x50] sm:$0xff]
        %v1648 = vld [vmem:[%s1636 + $0x58] sm:$0xff]
        %v1649 = vld [vmem:[%s1636 + $0x60] sm:$0xff]
        %v1650 = vld [vmem:[%s1636 + $0x68] sm:$0xff]
        %v1651 = vld [vmem:[%s1636 + $0x70] sm:$0xff]
        %v1652 = vld [vmem:[%s1636 + $0x78] sm:$0xff]
        %v1653 = vld [vmem:[%s1636 + $0x80] sm:$0xff]
        %v1654 = vld [vmem:[%s1636 + $0x88] sm:$0xff]
        %v1655 = vld [vmem:[%s1636 + $0x90] sm:$0xff]
        %v1656 = vld [vmem:[%s1636 + $0x98] sm:$0xff]
        %v1657 = vld [vmem:[%s1636 + $0xa0] sm:$0xff]
        %v1658 = vld [vmem:[%s1636 + $0xa8] sm:$0xff]
        %v1659 = vld [vmem:[%s1636 + $0xb0] sm:$0xff]
        %v1660 = vld [vmem:[%s1636 + $0xb8] sm:$0xff]
        %v1661 = vld [vmem:[%s1636 + $0xc0] sm:$0xff]
        %v1662 = vld [vmem:[%s1636 + $0xc8] sm:$0xff]
        %v1663 = vld [vmem:[%s1636 + $0xd0] sm:$0xff]
        %v1664 = vld [vmem:[%s1636 + $0xd8] sm:$0xff]
        %v1665 = vld [vmem:[%s1636 + $0xe0] sm:$0xff]
        %v1666 = vld [vmem:[%s1636 + $0xe8] sm:$0xff]
        %v1667 = vld [vmem:[%s1636 + $0xf0] sm:$0xff]
        %v1668 = vld [vmem:[%s1636 + $0xf8] sm:$0xff]
        %v1669 = vmul.f32 %v1540, 0.9990005
        %v1670 = vmul.f32 %v1541, 0.9990005
        %v1671 = vmul.f32 %v1542, 0.9990005
        %v1672 = vmul.f32 %v1543, 0.9990005
        %v1673 = vmul.f32 %v1544, 0.9990005
        %v1674 = vmul.f32 %v1545, 0.9990005
        %v1675 = vmul.f32 %v1546, 0.9990005
        %v1676 = vmul.f32 %v1547, 0.9990005
        %v1677 = vmul.f32 %v1548, 0.9990005
        %v1678 = vmul.f32 %v1549, 0.9990005
        %v1679 = vmul.f32 %v1550, 0.9990005
        %v1680 = vmul.f32 %v1551, 0.9990005
        %v1681 = vmul.f32 %v1552, 0.9990005
        %v1682 = vmul.f32 %v1553, 0.9990005
        %v1683 = vmul.f32 %v1554, 0.9990005
        %v1684 = vmul.f32 %v1555, 0.9990005
        %v1685 = vmul.f32 %v1556, 0.9990005
        %v1686 = vmul.f32 %v1557, 0.9990005
        %v1687 = vmul.f32 %v1558, 0.9990005
        %v1688 = vmul.f32 %v1559, 0.9990005
        %v1689 = vmul.f32 %v1560, 0.9990005
        %v1690 = vmul.f32 %v1561, 0.9990005
        %v1691 = vmul.f32 %v1562, 0.9990005
        %v1692 = vmul.f32 %v1563, 0.9990005
        %v1693 = vmul.f32 %v1564, 0.9990005
        %v1694 = vmul.f32 %v1565, 0.9990005
        %v1695 = vmul.f32 %v1566, 0.9990005
        %v1696 = vmul.f32 %v1567, 0.9990005
        %v1697 = vmul.f32 %v1568, 0.9990005
        %v1698 = vmul.f32 %v1569, 0.9990005
        %v1699 = vmul.f32 %v1570, 0.9990005
        %v1700 = vmul.f32 %v1571, 0.9990005
        %vm1701 = vcmp.gt.f32.partialorder %v1508, 0.0
        %vm1702 = vcmp.gt.f32.partialorder %v1509, 0.0
        %vm1703 = vcmp.gt.f32.partialorder %v1510, 0.0
        %vm1704 = vcmp.gt.f32.partialorder %v1511, 0.0
        %vm1705 = vcmp.gt.f32.partialorder %v1512, 0.0
        %vm1706 = vcmp.gt.f32.partialorder %v1513, 0.0
        %vm1707 = vcmp.gt.f32.partialorder %v1514, 0.0
        %vm1708 = vcmp.gt.f32.partialorder %v1515, 0.0
        %vm1709 = vcmp.gt.f32.partialorder %v1516, 0.0
        %vm1710 = vcmp.gt.f32.partialorder %v1517, 0.0
        %vm1711 = vcmp.gt.f32.partialorder %v1518, 0.0
        %vm1712 = vcmp.gt.f32.partialorder %v1519, 0.0
        %vm1713 = vcmp.gt.f32.partialorder %v1520, 0.0
        %vm1714 = vcmp.gt.f32.partialorder %v1521, 0.0
        %vm1715 = vcmp.gt.f32.partialorder %v1522, 0.0
        %vm1716 = vcmp.gt.f32.partialorder %v1523, 0.0
        %vm1717 = vcmp.gt.f32.partialorder %v1524, 0.0
        %vm1718 = vcmp.gt.f32.partialorder %v1525, 0.0
        %vm1719 = vcmp.gt.f32.partialorder %v1526, 0.0
        %vm1720 = vcmp.gt.f32.partialorder %v1527, 0.0
        %vm1721 = vcmp.gt.f32.partialorder %v1528, 0.0
        %vm1722 = vcmp.gt.f32.partialorder %v1529, 0.0
        %vm1723 = vcmp.gt.f32.partialorder %v1530, 0.0
        %vm1724 = vcmp.gt.f32.partialorder %v1531, 0.0
        %vm1725 = vcmp.gt.f32.partialorder %v1532, 0.0
        %vm1726 = vcmp.gt.f32.partialorder %v1533, 0.0
        %vm1727 = vcmp.gt.f32.partialorder %v1534, 0.0
        %vm1728 = vcmp.gt.f32.partialorder %v1535, 0.0
        %vm1729 = vcmp.gt.f32.partialorder %v1536, 0.0
        %vm1730 = vcmp.gt.f32.partialorder %v1537, 0.0
        %vm1731 = vcmp.gt.f32.partialorder %v1538, 0.0
        %vm1732 = vcmp.gt.f32.partialorder %v1539, 0.0
        %v1733 = vsel %vm1701, 0.0, %v1637
        %v1734 = vsel %vm1702, 0.0, %v1638
        %v1735 = vsel %vm1703, 0.0, %v1639
        %v1736 = vsel %vm1704, 0.0, %v1640
        %v1737 = vsel %vm1705, 0.0, %v1641
        %v1738 = vsel %vm1706, 0.0, %v1642
        %v1739 = vsel %vm1707, 0.0, %v1643
        %v1740 = vsel %vm1708, 0.0, %v1644
        %v1741 = vsel %vm1709, 0.0, %v1645
        %v1742 = vsel %vm1710, 0.0, %v1646
        %v1743 = vsel %vm1711, 0.0, %v1647
        %v1744 = vsel %vm1712, 0.0, %v1648
        %v1745 = vsel %vm1713, 0.0, %v1649
        %v1746 = vsel %vm1714, 0.0, %v1650
        %v1747 = vsel %vm1715, 0.0, %v1651
        %v1748 = vsel %vm1716, 0.0, %v1652
        %v1749 = vsel %vm1717, 0.0, %v1653
        %v1750 = vsel %vm1718, 0.0, %v1654
        %v1751 = vsel %vm1719, 0.0, %v1655
        %v1752 = vsel %vm1720, 0.0, %v1656
        %v1753 = vsel %vm1721, 0.0, %v1657
        %v1754 = vsel %vm1722, 0.0, %v1658
        %v1755 = vsel %vm1723, 0.0, %v1659
        %v1756 = vsel %vm1724, 0.0, %v1660
        %v1757 = vsel %vm1725, 0.0, %v1661
        %v1758 = vsel %vm1726, 0.0, %v1662
        %v1759 = vsel %vm1727, 0.0, %v1663
        %v1760 = vsel %vm1728, 0.0, %v1664
        %v1761 = vsel %vm1729, 0.0, %v1665
        %v1762 = vsel %vm1730, 0.0, %v1666
        %v1763 = vsel %vm1731, 0.0, %v1667
        %v1764 = vsel %vm1732, 0.0, %v1668
        %v1765 = vadd.f32 %v1669, %v1733
        %v1766 = vadd.f32 %v1670, %v1734
        %v1767 = vadd.f32 %v1671, %v1735
        %v1768 = vadd.f32 %v1672, %v1736
        %v1769 = vadd.f32 %v1673, %v1737
        %v1770 = vadd.f32 %v1674, %v1738
        %v1771 = vadd.f32 %v1675, %v1739
        %v1772 = vadd.f32 %v1676, %v1740
        %v1773 = vadd.f32 %v1677, %v1741
        %v1774 = vadd.f32 %v1678, %v1742
        %v1775 = vadd.f32 %v1679, %v1743
        %v1776 = vadd.f32 %v1680, %v1744
        %v1777 = vadd.f32 %v1681, %v1745
        %v1778 = vadd.f32 %v1682, %v1746
        %v1779 = vadd.f32 %v1683, %v1747
        %v1780 = vadd.f32 %v1684, %v1748
        %v1781 = vadd.f32 %v1685, %v1749
        %v1782 = vadd.f32 %v1686, %v1750
        %v1783 = vadd.f32 %v1687, %v1751
        %v1784 = vadd.f32 %v1688, %v1752
        %v1785 = vadd.f32 %v1689, %v1753
        %v1786 = vadd.f32 %v1690, %v1754
        %v1787 = vadd.f32 %v1691, %v1755
        %v1788 = vadd.f32 %v1692, %v1756
        %v1789 = vadd.f32 %v1693, %v1757
        %v1790 = vadd.f32 %v1694, %v1758
        %v1791 = vadd.f32 %v1695, %v1759
        %v1792 = vadd.f32 %v1696, %v1760
        %v1793 = vadd.f32 %v1697, %v1761
        %v1794 = vadd.f32 %v1698, %v1762
        %v1795 = vadd.f32 %v1699, %v1763
        %v1796 = vadd.f32 %v1700, %v1764
        %vm1797 = vcmp.ge.f32.partialorder %v1765, 40.0
        %vm1798 = vcmp.ge.f32.partialorder %v1766, 40.0
        %vm1799 = vcmp.ge.f32.partialorder %v1767, 40.0
        %vm1800 = vcmp.ge.f32.partialorder %v1768, 40.0
        %vm1801 = vcmp.ge.f32.partialorder %v1769, 40.0
        %vm1802 = vcmp.ge.f32.partialorder %v1770, 40.0
        %vm1803 = vcmp.ge.f32.partialorder %v1771, 40.0
        %vm1804 = vcmp.ge.f32.partialorder %v1772, 40.0
        %vm1805 = vcmp.ge.f32.partialorder %v1773, 40.0
        %vm1806 = vcmp.ge.f32.partialorder %v1774, 40.0
        %vm1807 = vcmp.ge.f32.partialorder %v1775, 40.0
        %vm1808 = vcmp.ge.f32.partialorder %v1776, 40.0
        %vm1809 = vcmp.ge.f32.partialorder %v1777, 40.0
        %vm1810 = vcmp.ge.f32.partialorder %v1778, 40.0
        %vm1811 = vcmp.ge.f32.partialorder %v1779, 40.0
        %vm1812 = vcmp.ge.f32.partialorder %v1780, 40.0
        %vm1813 = vcmp.ge.f32.partialorder %v1781, 40.0
        %vm1814 = vcmp.ge.f32.partialorder %v1782, 40.0
        %vm1815 = vcmp.ge.f32.partialorder %v1783, 40.0
        %vm1816 = vcmp.ge.f32.partialorder %v1784, 40.0
        %vm1817 = vcmp.ge.f32.partialorder %v1785, 40.0
        %vm1818 = vcmp.ge.f32.partialorder %v1786, 40.0
        %vm1819 = vcmp.ge.f32.partialorder %v1787, 40.0
        %vm1820 = vcmp.ge.f32.partialorder %v1788, 40.0
        %vm1821 = vcmp.ge.f32.partialorder %v1789, 40.0
        %vm1822 = vcmp.ge.f32.partialorder %v1790, 40.0
        %vm1823 = vcmp.ge.f32.partialorder %v1791, 40.0
        %vm1824 = vcmp.ge.f32.partialorder %v1792, 40.0
        %vm1825 = vcmp.ge.f32.partialorder %v1793, 40.0
        %vm1826 = vcmp.ge.f32.partialorder %v1794, 40.0
        %vm1827 = vcmp.ge.f32.partialorder %v1795, 40.0
        %vm1828 = vcmp.ge.f32.partialorder %v1796, 40.0
        %vm1829 = vmpackc.low %vm1799, %vm1797
        %vm1830 = vmpackc.low %vm1803, %vm1801
        %v1831 = vsel %vm1829, 16711935, 0
        %v1832 = vsel %vm1830, 16711935, 0
        %v1833 = vpack.c.b8 %v1832, %v1831
        %vm1834 = vnez %v1833
        %vm1835 = vmpackc.low %vm1800, %vm1798
        %vm1836 = vmpackc.low %vm1804, %vm1802
        %v1837 = vsel %vm1835, 16711935, 0
        %v1838 = vsel %vm1836, 16711935, 0
        %v1839 = vpack.c.b8 %v1838, %v1837
        %vm1840 = vnez %v1839
        %vm1841 = vmpackc.low %vm1807, %vm1805
        %vm1842 = vmpackc.low %vm1811, %vm1809
        %v1843 = vsel %vm1841, 16711935, 0
        %v1844 = vsel %vm1842, 16711935, 0
        %v1845 = vpack.c.b8 %v1844, %v1843
        %vm1846 = vnez %v1845
        %vm1847 = vmpackc.low %vm1808, %vm1806
        %vm1848 = vmpackc.low %vm1812, %vm1810
        %v1849 = vsel %vm1847, 16711935, 0
        %v1850 = vsel %vm1848, 16711935, 0
        %v1851 = vpack.c.b8 %v1850, %v1849
        %vm1852 = vnez %v1851
        %vm1853 = vmpackc.low %vm1815, %vm1813
        %vm1854 = vmpackc.low %vm1819, %vm1817
        %v1855 = vsel %vm1853, 16711935, 0
        %v1856 = vsel %vm1854, 16711935, 0
        %v1857 = vpack.c.b8 %v1856, %v1855
        %vm1858 = vnez %v1857
        %vm1859 = vmpackc.low %vm1816, %vm1814
        %vm1860 = vmpackc.low %vm1820, %vm1818
        %v1861 = vsel %vm1859, 16711935, 0
        %v1862 = vsel %vm1860, 16711935, 0
        %v1863 = vpack.c.b8 %v1862, %v1861
        %vm1864 = vnez %v1863
        %vm1865 = vmpackc.low %vm1823, %vm1821
        %vm1866 = vmpackc.low %vm1827, %vm1825
        %v1867 = vsel %vm1865, 16711935, 0
        %v1868 = vsel %vm1866, 16711935, 0
        %v1869 = vpack.c.b8 %v1868, %v1867
        %vm1870 = vnez %v1869
        %vm1871 = vmpackc.low %vm1824, %vm1822
        %vm1872 = vmpackc.low %vm1828, %vm1826
        %v1873 = vsel %vm1871, 16711935, 0
        %v1874 = vsel %vm1872, 16711935, 0
        %v1875 = vpack.c.b8 %v1874, %v1873
        %vm1876 = vnez %v1875
        %v1877 = vsel %vm1834, 16843009, 0
        %v1878 = vsel %vm1840, 16843009, 0
        %v1879 = vsel %vm1846, 16843009, 0
        %v1880 = vsel %vm1852, 16843009, 0
        %v1881 = vsel %vm1858, 16843009, 0
        %v1882 = vsel %vm1864, 16843009, 0
        %v1883 = vsel %vm1870, 16843009, 0
        %v1884 = vsel %vm1876, 16843009, 0
        %s1885 = scalar_lea.vmem %s483, 128 [#allocation11]
        %1886 = vst [vmem:[%s1885] sm:$0xff] %v1877
        %1887 = vst [vmem:[%s1885 + $0x8] sm:$0xff] %v1878
        %1888 = vst [vmem:[%s1885 + $0x10] sm:$0xff] %v1879
        %1889 = vst [vmem:[%s1885 + $0x18] sm:$0xff] %v1880
        %1890 = vst [vmem:[%s1885 + $0x20] sm:$0xff] %v1881
        %1891 = vst [vmem:[%s1885 + $0x28] sm:$0xff] %v1882
        %1892 = vst [vmem:[%s1885 + $0x30] sm:$0xff] %v1883
        %1893 = vst [vmem:[%s1885 + $0x38] sm:$0xff] %v1884
        %v1894 = vsub.f32 %v1508, 0.1
        %v1895 = vsub.f32 %v1509, 0.1
        %v1896 = vsub.f32 %v1510, 0.1
        %v1897 = vsub.f32 %v1511, 0.1
        %v1898 = vsub.f32 %v1512, 0.1
        %v1899 = vsub.f32 %v1513, 0.1
        %v1900 = vsub.f32 %v1514, 0.1
        %v1901 = vsub.f32 %v1515, 0.1
        %v1902 = vsub.f32 %v1516, 0.1
        %v1903 = vsub.f32 %v1517, 0.1
        %v1904 = vsub.f32 %v1518, 0.1
        %v1905 = vsub.f32 %v1519, 0.1
        %v1906 = vsub.f32 %v1520, 0.1
        %v1907 = vsub.f32 %v1521, 0.1
        %v1908 = vsub.f32 %v1522, 0.1
        %v1909 = vsub.f32 %v1523, 0.1
        %v1910 = vsub.f32 %v1524, 0.1
        %v1911 = vsub.f32 %v1525, 0.1
        %v1912 = vsub.f32 %v1526, 0.1
        %v1913 = vsub.f32 %v1527, 0.1
        %v1914 = vsub.f32 %v1528, 0.1
        %v1915 = vsub.f32 %v1529, 0.1
        %v1916 = vsub.f32 %v1530, 0.1
        %v1917 = vsub.f32 %v1531, 0.1
        %v1918 = vsub.f32 %v1532, 0.1
        %v1919 = vsub.f32 %v1533, 0.1
        %v1920 = vsub.f32 %v1534, 0.1
        %v1921 = vsub.f32 %v1535, 0.1
        %v1922 = vsub.f32 %v1536, 0.1
        %v1923 = vsub.f32 %v1537, 0.1
        %v1924 = vsub.f32 %v1538, 0.1
        %v1925 = vsub.f32 %v1539, 0.1
        %v1926 = vsel %vm1797, 5.0, %v1894
        %v1927 = vsel %vm1798, 5.0, %v1895
        %v1928 = vsel %vm1799, 5.0, %v1896
        %v1929 = vsel %vm1800, 5.0, %v1897
        %v1930 = vsel %vm1801, 5.0, %v1898
        %v1931 = vsel %vm1802, 5.0, %v1899
        %v1932 = vsel %vm1803, 5.0, %v1900
        %v1933 = vsel %vm1804, 5.0, %v1901
        %v1934 = vsel %vm1805, 5.0, %v1902
        %v1935 = vsel %vm1806, 5.0, %v1903
        %v1936 = vsel %vm1807, 5.0, %v1904
        %v1937 = vsel %vm1808, 5.0, %v1905
        %v1938 = vsel %vm1809, 5.0, %v1906
        %v1939 = vsel %vm1810, 5.0, %v1907
        %v1940 = vsel %vm1811, 5.0, %v1908
        %v1941 = vsel %vm1812, 5.0, %v1909
        %v1942 = vsel %vm1813, 5.0, %v1910
        %v1943 = vsel %vm1814, 5.0, %v1911
        %v1944 = vsel %vm1815, 5.0, %v1912
        %v1945 = vsel %vm1816, 5.0, %v1913
        %v1946 = vsel %vm1817, 5.0, %v1914
        %v1947 = vsel %vm1818, 5.0, %v1915
        %v1948 = vsel %vm1819, 5.0, %v1916
        %v1949 = vsel %vm1820, 5.0, %v1917
        %v1950 = vsel %vm1821, 5.0, %v1918
        %v1951 = vsel %vm1822, 5.0, %v1919
        %v1952 = vsel %vm1823, 5.0, %v1920
        %v1953 = vsel %vm1824, 5.0, %v1921
        %v1954 = vsel %vm1825, 5.0, %v1922
        %v1955 = vsel %vm1826, 5.0, %v1923
        %v1956 = vsel %vm1827, 5.0, %v1924
        %v1957 = vsel %vm1828, 5.0, %v1925
        %v1958 = vsel %vm1797, 0.0, %v1765
        %v1959 = vsel %vm1798, 0.0, %v1766
        %v1960 = vsel %vm1799, 0.0, %v1767
        %v1961 = vsel %vm1800, 0.0, %v1768
        %v1962 = vsel %vm1801, 0.0, %v1769
        %v1963 = vsel %vm1802, 0.0, %v1770
        %v1964 = vsel %vm1803, 0.0, %v1771
        %v1965 = vsel %vm1804, 0.0, %v1772
        %v1966 = vsel %vm1805, 0.0, %v1773
        %v1967 = vsel %vm1806, 0.0, %v1774
        %v1968 = vsel %vm1807, 0.0, %v1775
        %v1969 = vsel %vm1808, 0.0, %v1776
        %v1970 = vsel %vm1809, 0.0, %v1777
        %v1971 = vsel %vm1810, 0.0, %v1778
        %v1972 = vsel %vm1811, 0.0, %v1779
        %v1973 = vsel %vm1812, 0.0, %v1780
        %v1974 = vsel %vm1813, 0.0, %v1781
        %v1975 = vsel %vm1814, 0.0, %v1782
        %v1976 = vsel %vm1815, 0.0, %v1783
        %v1977 = vsel %vm1816, 0.0, %v1784
        %v1978 = vsel %vm1817, 0.0, %v1785
        %v1979 = vsel %vm1818, 0.0, %v1786
        %v1980 = vsel %vm1819, 0.0, %v1787
        %v1981 = vsel %vm1820, 0.0, %v1788
        %v1982 = vsel %vm1821, 0.0, %v1789
        %v1983 = vsel %vm1822, 0.0, %v1790
        %v1984 = vsel %vm1823, 0.0, %v1791
        %v1985 = vsel %vm1824, 0.0, %v1792
        %v1986 = vsel %vm1825, 0.0, %v1793
        %v1987 = vsel %vm1826, 0.0, %v1794
        %v1988 = vsel %vm1827, 0.0, %v1795
        %v1989 = vsel %vm1828, 0.0, %v1796
        %v1990 = vmul.f32 %v1604, 0.99004984
        %v1991 = vmul.f32 %v1605, 0.99004984
        %v1992 = vmul.f32 %v1606, 0.99004984
        %v1993 = vmul.f32 %v1607, 0.99004984
        %v1994 = vmul.f32 %v1608, 0.99004984
        %v1995 = vmul.f32 %v1609, 0.99004984
        %v1996 = vmul.f32 %v1610, 0.99004984
        %v1997 = vmul.f32 %v1611, 0.99004984
        %v1998 = vmul.f32 %v1612, 0.99004984
        %v1999 = vmul.f32 %v1613, 0.99004984
        %v2000 = vmul.f32 %v1614, 0.99004984
        %v2001 = vmul.f32 %v1615, 0.99004984
        %v2002 = vmul.f32 %v1616, 0.99004984
        %v2003 = vmul.f32 %v1617, 0.99004984
        %v2004 = vmul.f32 %v1618, 0.99004984
        %v2005 = vmul.f32 %v1619, 0.99004984
        %v2006 = vmul.f32 %v1620, 0.99004984
        %v2007 = vmul.f32 %v1621, 0.99004984
        %v2008 = vmul.f32 %v1622, 0.99004984
        %v2009 = vmul.f32 %v1623, 0.99004984
        %v2010 = vmul.f32 %v1624, 0.99004984
        %v2011 = vmul.f32 %v1625, 0.99004984
        %v2012 = vmul.f32 %v1626, 0.99004984
        %v2013 = vmul.f32 %v1627, 0.99004984
        %v2014 = vmul.f32 %v1628, 0.99004984
        %v2015 = vmul.f32 %v1629, 0.99004984
        %v2016 = vmul.f32 %v1630, 0.99004984
        %v2017 = vmul.f32 %v1631, 0.99004984
        %v2018 = vmul.f32 %v1632, 0.99004984
        %v2019 = vmul.f32 %v1633, 0.99004984
        %v2020 = vmul.f32 %v1634, 0.99004984
        %v2021 = vmul.f32 %v1635, 0.99004984
        %v2022 = vsel %vm1797, 1.0, %v1990
        %v2023 = vsel %vm1798, 1.0, %v1991
        %v2024 = vsel %vm1799, 1.0, %v1992
        %v2025 = vsel %vm1800, 1.0, %v1993
        %v2026 = vsel %vm1801, 1.0, %v1994
        %v2027 = vsel %vm1802, 1.0, %v1995
        %v2028 = vsel %vm1803, 1.0, %v1996
        %v2029 = vsel %vm1804, 1.0, %v1997
        %v2030 = vsel %vm1805, 1.0, %v1998
        %v2031 = vsel %vm1806, 1.0, %v1999
        %v2032 = vsel %vm1807, 1.0, %v2000
        %v2033 = vsel %vm1808, 1.0, %v2001
        %v2034 = vsel %vm1809, 1.0, %v2002
        %v2035 = vsel %vm1810, 1.0, %v2003
        %v2036 = vsel %vm1811, 1.0, %v2004
        %v2037 = vsel %vm1812, 1.0, %v2005
        %v2038 = vsel %vm1813, 1.0, %v2006
        %v2039 = vsel %vm1814, 1.0, %v2007
        %v2040 = vsel %vm1815, 1.0, %v2008
        %v2041 = vsel %vm1816, 1.0, %v2009
        %v2042 = vsel %vm1817, 1.0, %v2010
        %v2043 = vsel %vm1818, 1.0, %v2011
        %v2044 = vsel %vm1819, 1.0, %v2012
        %v2045 = vsel %vm1820, 1.0, %v2013
        %v2046 = vsel %vm1821, 1.0, %v2014
        %v2047 = vsel %vm1822, 1.0, %v2015
        %v2048 = vsel %vm1823, 1.0, %v2016
        %v2049 = vsel %vm1824, 1.0, %v2017
        %v2050 = vsel %vm1825, 1.0, %v2018
        %v2051 = vsel %vm1826, 1.0, %v2019
        %v2052 = vsel %vm1827, 1.0, %v2020
        %v2053 = vsel %vm1828, 1.0, %v2021
        %s2054 = scalar_lea.vmem %s406, 768 [#allocation2]
        %v2055 = vld [vmem:[%s2054] sm:$0xff]
        %v2056 = vld [vmem:[%s2054 + $0x8] sm:$0xff]
        %v2057 = vld [vmem:[%s2054 + $0x10] sm:$0xff]
        %v2058 = vld [vmem:[%s2054 + $0x18] sm:$0xff]
        %v2059 = vld [vmem:[%s2054 + $0x20] sm:$0xff]
        %v2060 = vld [vmem:[%s2054 + $0x28] sm:$0xff]
        %v2061 = vld [vmem:[%s2054 + $0x30] sm:$0xff]
        %v2062 = vld [vmem:[%s2054 + $0x38] sm:$0xff]
        %v2063 = vld [vmem:[%s2054 + $0x40] sm:$0xff]
        %v2064 = vld [vmem:[%s2054 + $0x48] sm:$0xff]
        %v2065 = vld [vmem:[%s2054 + $0x50] sm:$0xff]
        %v2066 = vld [vmem:[%s2054 + $0x58] sm:$0xff]
        %v2067 = vld [vmem:[%s2054 + $0x60] sm:$0xff]
        %v2068 = vld [vmem:[%s2054 + $0x68] sm:$0xff]
        %v2069 = vld [vmem:[%s2054 + $0x70] sm:$0xff]
        %v2070 = vld [vmem:[%s2054 + $0x78] sm:$0xff]
        %v2071 = vld [vmem:[%s2054 + $0x80] sm:$0xff]
        %v2072 = vld [vmem:[%s2054 + $0x88] sm:$0xff]
        %v2073 = vld [vmem:[%s2054 + $0x90] sm:$0xff]
        %v2074 = vld [vmem:[%s2054 + $0x98] sm:$0xff]
        %v2075 = vld [vmem:[%s2054 + $0xa0] sm:$0xff]
        %v2076 = vld [vmem:[%s2054 + $0xa8] sm:$0xff]
        %v2077 = vld [vmem:[%s2054 + $0xb0] sm:$0xff]
        %v2078 = vld [vmem:[%s2054 + $0xb8] sm:$0xff]
        %v2079 = vld [vmem:[%s2054 + $0xc0] sm:$0xff]
        %v2080 = vld [vmem:[%s2054 + $0xc8] sm:$0xff]
        %v2081 = vld [vmem:[%s2054 + $0xd0] sm:$0xff]
        %v2082 = vld [vmem:[%s2054 + $0xd8] sm:$0xff]
        %v2083 = vld [vmem:[%s2054 + $0xe0] sm:$0xff]
        %v2084 = vld [vmem:[%s2054 + $0xe8] sm:$0xff]
        %v2085 = vld [vmem:[%s2054 + $0xf0] sm:$0xff]
        %v2086 = vld [vmem:[%s2054 + $0xf8] sm:$0xff]
        %v2087 = vmul.f32 %v1958, 0.9990005
        %v2088 = vmul.f32 %v1959, 0.9990005
        %v2089 = vmul.f32 %v1960, 0.9990005
        %v2090 = vmul.f32 %v1961, 0.9990005
        %v2091 = vmul.f32 %v1962, 0.9990005
        %v2092 = vmul.f32 %v1963, 0.9990005
        %v2093 = vmul.f32 %v1964, 0.9990005
        %v2094 = vmul.f32 %v1965, 0.9990005
        %v2095 = vmul.f32 %v1966, 0.9990005
        %v2096 = vmul.f32 %v1967, 0.9990005
        %v2097 = vmul.f32 %v1968, 0.9990005
        %v2098 = vmul.f32 %v1969, 0.9990005
        %v2099 = vmul.f32 %v1970, 0.9990005
        %v2100 = vmul.f32 %v1971, 0.9990005
        %v2101 = vmul.f32 %v1972, 0.9990005
        %v2102 = vmul.f32 %v1973, 0.9990005
        %v2103 = vmul.f32 %v1974, 0.9990005
        %v2104 = vmul.f32 %v1975, 0.9990005
        %v2105 = vmul.f32 %v1976, 0.9990005
        %v2106 = vmul.f32 %v1977, 0.9990005
        %v2107 = vmul.f32 %v1978, 0.9990005
        %v2108 = vmul.f32 %v1979, 0.9990005
        %v2109 = vmul.f32 %v1980, 0.9990005
        %v2110 = vmul.f32 %v1981, 0.9990005
        %v2111 = vmul.f32 %v1982, 0.9990005
        %v2112 = vmul.f32 %v1983, 0.9990005
        %v2113 = vmul.f32 %v1984, 0.9990005
        %v2114 = vmul.f32 %v1985, 0.9990005
        %v2115 = vmul.f32 %v1986, 0.9990005
        %v2116 = vmul.f32 %v1987, 0.9990005
        %v2117 = vmul.f32 %v1988, 0.9990005
        %v2118 = vmul.f32 %v1989, 0.9990005
        %vm2119 = vcmp.gt.f32.partialorder %v1926, 0.0
        %vm2120 = vcmp.gt.f32.partialorder %v1927, 0.0
        %vm2121 = vcmp.gt.f32.partialorder %v1928, 0.0
        %vm2122 = vcmp.gt.f32.partialorder %v1929, 0.0
        %vm2123 = vcmp.gt.f32.partialorder %v1930, 0.0
        %vm2124 = vcmp.gt.f32.partialorder %v1931, 0.0
        %vm2125 = vcmp.gt.f32.partialorder %v1932, 0.0
        %vm2126 = vcmp.gt.f32.partialorder %v1933, 0.0
        %vm2127 = vcmp.gt.f32.partialorder %v1934, 0.0
        %vm2128 = vcmp.gt.f32.partialorder %v1935, 0.0
        %vm2129 = vcmp.gt.f32.partialorder %v1936, 0.0
        %vm2130 = vcmp.gt.f32.partialorder %v1937, 0.0
        %vm2131 = vcmp.gt.f32.partialorder %v1938, 0.0
        %vm2132 = vcmp.gt.f32.partialorder %v1939, 0.0
        %vm2133 = vcmp.gt.f32.partialorder %v1940, 0.0
        %vm2134 = vcmp.gt.f32.partialorder %v1941, 0.0
        %vm2135 = vcmp.gt.f32.partialorder %v1942, 0.0
        %vm2136 = vcmp.gt.f32.partialorder %v1943, 0.0
        %vm2137 = vcmp.gt.f32.partialorder %v1944, 0.0
        %vm2138 = vcmp.gt.f32.partialorder %v1945, 0.0
        %vm2139 = vcmp.gt.f32.partialorder %v1946, 0.0
        %vm2140 = vcmp.gt.f32.partialorder %v1947, 0.0
        %vm2141 = vcmp.gt.f32.partialorder %v1948, 0.0
        %vm2142 = vcmp.gt.f32.partialorder %v1949, 0.0
        %vm2143 = vcmp.gt.f32.partialorder %v1950, 0.0
        %vm2144 = vcmp.gt.f32.partialorder %v1951, 0.0
        %vm2145 = vcmp.gt.f32.partialorder %v1952, 0.0
        %vm2146 = vcmp.gt.f32.partialorder %v1953, 0.0
        %vm2147 = vcmp.gt.f32.partialorder %v1954, 0.0
        %vm2148 = vcmp.gt.f32.partialorder %v1955, 0.0
        %vm2149 = vcmp.gt.f32.partialorder %v1956, 0.0
        %vm2150 = vcmp.gt.f32.partialorder %v1957, 0.0
        %v2151 = vsel %vm2119, 0.0, %v2055
        %v2152 = vsel %vm2120, 0.0, %v2056
        %v2153 = vsel %vm2121, 0.0, %v2057
        %v2154 = vsel %vm2122, 0.0, %v2058
        %v2155 = vsel %vm2123, 0.0, %v2059
        %v2156 = vsel %vm2124, 0.0, %v2060
        %v2157 = vsel %vm2125, 0.0, %v2061
        %v2158 = vsel %vm2126, 0.0, %v2062
        %v2159 = vsel %vm2127, 0.0, %v2063
        %v2160 = vsel %vm2128, 0.0, %v2064
        %v2161 = vsel %vm2129, 0.0, %v2065
        %v2162 = vsel %vm2130, 0.0, %v2066
        %v2163 = vsel %vm2131, 0.0, %v2067
        %v2164 = vsel %vm2132, 0.0, %v2068
        %v2165 = vsel %vm2133, 0.0, %v2069
        %v2166 = vsel %vm2134, 0.0, %v2070
        %v2167 = vsel %vm2135, 0.0, %v2071
        %v2168 = vsel %vm2136, 0.0, %v2072
        %v2169 = vsel %vm2137, 0.0, %v2073
        %v2170 = vsel %vm2138, 0.0, %v2074
        %v2171 = vsel %vm2139, 0.0, %v2075
        %v2172 = vsel %vm2140, 0.0, %v2076
        %v2173 = vsel %vm2141, 0.0, %v2077
        %v2174 = vsel %vm2142, 0.0, %v2078
        %v2175 = vsel %vm2143, 0.0, %v2079
        %v2176 = vsel %vm2144, 0.0, %v2080
        %v2177 = vsel %vm2145, 0.0, %v2081
        %v2178 = vsel %vm2146, 0.0, %v2082
        %v2179 = vsel %vm2147, 0.0, %v2083
        %v2180 = vsel %vm2148, 0.0, %v2084
        %v2181 = vsel %vm2149, 0.0, %v2085
        %v2182 = vsel %vm2150, 0.0, %v2086
        %v2183 = vadd.f32 %v2087, %v2151
        %v2184 = vadd.f32 %v2088, %v2152
        %v2185 = vadd.f32 %v2089, %v2153
        %v2186 = vadd.f32 %v2090, %v2154
        %v2187 = vadd.f32 %v2091, %v2155
        %v2188 = vadd.f32 %v2092, %v2156
        %v2189 = vadd.f32 %v2093, %v2157
        %v2190 = vadd.f32 %v2094, %v2158
        %v2191 = vadd.f32 %v2095, %v2159
        %v2192 = vadd.f32 %v2096, %v2160
        %v2193 = vadd.f32 %v2097, %v2161
        %v2194 = vadd.f32 %v2098, %v2162
        %v2195 = vadd.f32 %v2099, %v2163
        %v2196 = vadd.f32 %v2100, %v2164
        %v2197 = vadd.f32 %v2101, %v2165
        %v2198 = vadd.f32 %v2102, %v2166
        %v2199 = vadd.f32 %v2103, %v2167
        %v2200 = vadd.f32 %v2104, %v2168
        %v2201 = vadd.f32 %v2105, %v2169
        %v2202 = vadd.f32 %v2106, %v2170
        %v2203 = vadd.f32 %v2107, %v2171
        %v2204 = vadd.f32 %v2108, %v2172
        %v2205 = vadd.f32 %v2109, %v2173
        %v2206 = vadd.f32 %v2110, %v2174
        %v2207 = vadd.f32 %v2111, %v2175
        %v2208 = vadd.f32 %v2112, %v2176
        %v2209 = vadd.f32 %v2113, %v2177
        %v2210 = vadd.f32 %v2114, %v2178
        %v2211 = vadd.f32 %v2115, %v2179
        %v2212 = vadd.f32 %v2116, %v2180
        %v2213 = vadd.f32 %v2117, %v2181
        %v2214 = vadd.f32 %v2118, %v2182
        %vm2215 = vcmp.ge.f32.partialorder %v2183, 40.0
        %vm2216 = vcmp.ge.f32.partialorder %v2184, 40.0
        %vm2217 = vcmp.ge.f32.partialorder %v2185, 40.0
        %vm2218 = vcmp.ge.f32.partialorder %v2186, 40.0
        %vm2219 = vcmp.ge.f32.partialorder %v2187, 40.0
        %vm2220 = vcmp.ge.f32.partialorder %v2188, 40.0
        %vm2221 = vcmp.ge.f32.partialorder %v2189, 40.0
        %vm2222 = vcmp.ge.f32.partialorder %v2190, 40.0
        %vm2223 = vcmp.ge.f32.partialorder %v2191, 40.0
        %vm2224 = vcmp.ge.f32.partialorder %v2192, 40.0
        %vm2225 = vcmp.ge.f32.partialorder %v2193, 40.0
        %vm2226 = vcmp.ge.f32.partialorder %v2194, 40.0
        %vm2227 = vcmp.ge.f32.partialorder %v2195, 40.0
        %vm2228 = vcmp.ge.f32.partialorder %v2196, 40.0
        %vm2229 = vcmp.ge.f32.partialorder %v2197, 40.0
        %vm2230 = vcmp.ge.f32.partialorder %v2198, 40.0
        %vm2231 = vcmp.ge.f32.partialorder %v2199, 40.0
        %vm2232 = vcmp.ge.f32.partialorder %v2200, 40.0
        %vm2233 = vcmp.ge.f32.partialorder %v2201, 40.0
        %vm2234 = vcmp.ge.f32.partialorder %v2202, 40.0
        %vm2235 = vcmp.ge.f32.partialorder %v2203, 40.0
        %vm2236 = vcmp.ge.f32.partialorder %v2204, 40.0
        %vm2237 = vcmp.ge.f32.partialorder %v2205, 40.0
        %vm2238 = vcmp.ge.f32.partialorder %v2206, 40.0
        %vm2239 = vcmp.ge.f32.partialorder %v2207, 40.0
        %vm2240 = vcmp.ge.f32.partialorder %v2208, 40.0
        %vm2241 = vcmp.ge.f32.partialorder %v2209, 40.0
        %vm2242 = vcmp.ge.f32.partialorder %v2210, 40.0
        %vm2243 = vcmp.ge.f32.partialorder %v2211, 40.0
        %vm2244 = vcmp.ge.f32.partialorder %v2212, 40.0
        %vm2245 = vcmp.ge.f32.partialorder %v2213, 40.0
        %vm2246 = vcmp.ge.f32.partialorder %v2214, 40.0
        %vm2247 = vmpackc.low %vm2217, %vm2215
        %vm2248 = vmpackc.low %vm2221, %vm2219
        %v2249 = vsel %vm2247, 16711935, 0
        %v2250 = vsel %vm2248, 16711935, 0
        %v2251 = vpack.c.b8 %v2250, %v2249
        %vm2252 = vnez %v2251
        %vm2253 = vmpackc.low %vm2218, %vm2216
        %vm2254 = vmpackc.low %vm2222, %vm2220
        %v2255 = vsel %vm2253, 16711935, 0
        %v2256 = vsel %vm2254, 16711935, 0
        %v2257 = vpack.c.b8 %v2256, %v2255
        %vm2258 = vnez %v2257
        %vm2259 = vmpackc.low %vm2225, %vm2223
        %vm2260 = vmpackc.low %vm2229, %vm2227
        %v2261 = vsel %vm2259, 16711935, 0
        %v2262 = vsel %vm2260, 16711935, 0
        %v2263 = vpack.c.b8 %v2262, %v2261
        %vm2264 = vnez %v2263
        %vm2265 = vmpackc.low %vm2226, %vm2224
        %vm2266 = vmpackc.low %vm2230, %vm2228
        %v2267 = vsel %vm2265, 16711935, 0
        %v2268 = vsel %vm2266, 16711935, 0
        %v2269 = vpack.c.b8 %v2268, %v2267
        %vm2270 = vnez %v2269
        %vm2271 = vmpackc.low %vm2233, %vm2231
        %vm2272 = vmpackc.low %vm2237, %vm2235
        %v2273 = vsel %vm2271, 16711935, 0
        %v2274 = vsel %vm2272, 16711935, 0
        %v2275 = vpack.c.b8 %v2274, %v2273
        %vm2276 = vnez %v2275
        %vm2277 = vmpackc.low %vm2234, %vm2232
        %vm2278 = vmpackc.low %vm2238, %vm2236
        %v2279 = vsel %vm2277, 16711935, 0
        %v2280 = vsel %vm2278, 16711935, 0
        %v2281 = vpack.c.b8 %v2280, %v2279
        %vm2282 = vnez %v2281
        %vm2283 = vmpackc.low %vm2241, %vm2239
        %vm2284 = vmpackc.low %vm2245, %vm2243
        %v2285 = vsel %vm2283, 16711935, 0
        %v2286 = vsel %vm2284, 16711935, 0
        %v2287 = vpack.c.b8 %v2286, %v2285
        %vm2288 = vnez %v2287
        %vm2289 = vmpackc.low %vm2242, %vm2240
        %vm2290 = vmpackc.low %vm2246, %vm2244
        %v2291 = vsel %vm2289, 16711935, 0
        %v2292 = vsel %vm2290, 16711935, 0
        %v2293 = vpack.c.b8 %v2292, %v2291
        %vm2294 = vnez %v2293
        %v2295 = vsel %vm2252, 16843009, 0
        %v2296 = vsel %vm2258, 16843009, 0
        %v2297 = vsel %vm2264, 16843009, 0
        %v2298 = vsel %vm2270, 16843009, 0
        %v2299 = vsel %vm2276, 16843009, 0
        %v2300 = vsel %vm2282, 16843009, 0
        %v2301 = vsel %vm2288, 16843009, 0
        %v2302 = vsel %vm2294, 16843009, 0
        %s2303 = scalar_lea.vmem %s483, 192 [#allocation11]
        %2304 = vst [vmem:[%s2303] sm:$0xff] %v2295
        %2305 = vst [vmem:[%s2303 + $0x8] sm:$0xff] %v2296
        %2306 = vst [vmem:[%s2303 + $0x10] sm:$0xff] %v2297
        %2307 = vst [vmem:[%s2303 + $0x18] sm:$0xff] %v2298
        %2308 = vst [vmem:[%s2303 + $0x20] sm:$0xff] %v2299
        %2309 = vst [vmem:[%s2303 + $0x28] sm:$0xff] %v2300
        %2310 = vst [vmem:[%s2303 + $0x30] sm:$0xff] %v2301
        %2311 = vst [vmem:[%s2303 + $0x38] sm:$0xff] %v2302
        %v2312 = vsub.f32 %v1926, 0.1
        %v2313 = vsub.f32 %v1927, 0.1
        %v2314 = vsub.f32 %v1928, 0.1
        %v2315 = vsub.f32 %v1929, 0.1
        %v2316 = vsub.f32 %v1930, 0.1
        %v2317 = vsub.f32 %v1931, 0.1
        %v2318 = vsub.f32 %v1932, 0.1
        %v2319 = vsub.f32 %v1933, 0.1
        %v2320 = vsub.f32 %v1934, 0.1
        %v2321 = vsub.f32 %v1935, 0.1
        %v2322 = vsub.f32 %v1936, 0.1
        %v2323 = vsub.f32 %v1937, 0.1
        %v2324 = vsub.f32 %v1938, 0.1
        %v2325 = vsub.f32 %v1939, 0.1
        %v2326 = vsub.f32 %v1940, 0.1
        %v2327 = vsub.f32 %v1941, 0.1
        %v2328 = vsub.f32 %v1942, 0.1
        %v2329 = vsub.f32 %v1943, 0.1
        %v2330 = vsub.f32 %v1944, 0.1
        %v2331 = vsub.f32 %v1945, 0.1
        %v2332 = vsub.f32 %v1946, 0.1
        %v2333 = vsub.f32 %v1947, 0.1
        %v2334 = vsub.f32 %v1948, 0.1
        %v2335 = vsub.f32 %v1949, 0.1
        %v2336 = vsub.f32 %v1950, 0.1
        %v2337 = vsub.f32 %v1951, 0.1
        %v2338 = vsub.f32 %v1952, 0.1
        %v2339 = vsub.f32 %v1953, 0.1
        %v2340 = vsub.f32 %v1954, 0.1
        %v2341 = vsub.f32 %v1955, 0.1
        %v2342 = vsub.f32 %v1956, 0.1
        %v2343 = vsub.f32 %v1957, 0.1
        %v2344 = vsel %vm2215, 5.0, %v2312
        %v2345 = vsel %vm2216, 5.0, %v2313
        %v2346 = vsel %vm2217, 5.0, %v2314
        %v2347 = vsel %vm2218, 5.0, %v2315
        %v2348 = vsel %vm2219, 5.0, %v2316
        %v2349 = vsel %vm2220, 5.0, %v2317
        %v2350 = vsel %vm2221, 5.0, %v2318
        %v2351 = vsel %vm2222, 5.0, %v2319
        %v2352 = vsel %vm2223, 5.0, %v2320
        %v2353 = vsel %vm2224, 5.0, %v2321
        %v2354 = vsel %vm2225, 5.0, %v2322
        %v2355 = vsel %vm2226, 5.0, %v2323
        %v2356 = vsel %vm2227, 5.0, %v2324
        %v2357 = vsel %vm2228, 5.0, %v2325
        %v2358 = vsel %vm2229, 5.0, %v2326
        %v2359 = vsel %vm2230, 5.0, %v2327
        %v2360 = vsel %vm2231, 5.0, %v2328
        %v2361 = vsel %vm2232, 5.0, %v2329
        %v2362 = vsel %vm2233, 5.0, %v2330
        %v2363 = vsel %vm2234, 5.0, %v2331
        %v2364 = vsel %vm2235, 5.0, %v2332
        %v2365 = vsel %vm2236, 5.0, %v2333
        %v2366 = vsel %vm2237, 5.0, %v2334
        %v2367 = vsel %vm2238, 5.0, %v2335
        %v2368 = vsel %vm2239, 5.0, %v2336
        %v2369 = vsel %vm2240, 5.0, %v2337
        %v2370 = vsel %vm2241, 5.0, %v2338
        %v2371 = vsel %vm2242, 5.0, %v2339
        %v2372 = vsel %vm2243, 5.0, %v2340
        %v2373 = vsel %vm2244, 5.0, %v2341
        %v2374 = vsel %vm2245, 5.0, %v2342
        %v2375 = vsel %vm2246, 5.0, %v2343
        %v2376 = vsel %vm2215, 0.0, %v2183
        %v2377 = vsel %vm2216, 0.0, %v2184
        %v2378 = vsel %vm2217, 0.0, %v2185
        %v2379 = vsel %vm2218, 0.0, %v2186
        %v2380 = vsel %vm2219, 0.0, %v2187
        %v2381 = vsel %vm2220, 0.0, %v2188
        %v2382 = vsel %vm2221, 0.0, %v2189
        %v2383 = vsel %vm2222, 0.0, %v2190
        %v2384 = vsel %vm2223, 0.0, %v2191
        %v2385 = vsel %vm2224, 0.0, %v2192
        %v2386 = vsel %vm2225, 0.0, %v2193
        %v2387 = vsel %vm2226, 0.0, %v2194
        %v2388 = vsel %vm2227, 0.0, %v2195
        %v2389 = vsel %vm2228, 0.0, %v2196
        %v2390 = vsel %vm2229, 0.0, %v2197
        %v2391 = vsel %vm2230, 0.0, %v2198
        %v2392 = vsel %vm2231, 0.0, %v2199
        %v2393 = vsel %vm2232, 0.0, %v2200
        %v2394 = vsel %vm2233, 0.0, %v2201
        %v2395 = vsel %vm2234, 0.0, %v2202
        %v2396 = vsel %vm2235, 0.0, %v2203
        %v2397 = vsel %vm2236, 0.0, %v2204
        %v2398 = vsel %vm2237, 0.0, %v2205
        %v2399 = vsel %vm2238, 0.0, %v2206
        %v2400 = vsel %vm2239, 0.0, %v2207
        %v2401 = vsel %vm2240, 0.0, %v2208
        %v2402 = vsel %vm2241, 0.0, %v2209
        %v2403 = vsel %vm2242, 0.0, %v2210
        %v2404 = vsel %vm2243, 0.0, %v2211
        %v2405 = vsel %vm2244, 0.0, %v2212
        %v2406 = vsel %vm2245, 0.0, %v2213
        %v2407 = vsel %vm2246, 0.0, %v2214
        %v2408 = vmul.f32 %v2022, 0.99004984
        %v2409 = vmul.f32 %v2023, 0.99004984
        %v2410 = vmul.f32 %v2024, 0.99004984
        %v2411 = vmul.f32 %v2025, 0.99004984
        %v2412 = vmul.f32 %v2026, 0.99004984
        %v2413 = vmul.f32 %v2027, 0.99004984
        %v2414 = vmul.f32 %v2028, 0.99004984
        %v2415 = vmul.f32 %v2029, 0.99004984
        %v2416 = vmul.f32 %v2030, 0.99004984
        %v2417 = vmul.f32 %v2031, 0.99004984
        %v2418 = vmul.f32 %v2032, 0.99004984
        %v2419 = vmul.f32 %v2033, 0.99004984
        %v2420 = vmul.f32 %v2034, 0.99004984
        %v2421 = vmul.f32 %v2035, 0.99004984
        %v2422 = vmul.f32 %v2036, 0.99004984
        %v2423 = vmul.f32 %v2037, 0.99004984
        %v2424 = vmul.f32 %v2038, 0.99004984
        %v2425 = vmul.f32 %v2039, 0.99004984
        %v2426 = vmul.f32 %v2040, 0.99004984
        %v2427 = vmul.f32 %v2041, 0.99004984
        %v2428 = vmul.f32 %v2042, 0.99004984
        %v2429 = vmul.f32 %v2043, 0.99004984
        %v2430 = vmul.f32 %v2044, 0.99004984
        %v2431 = vmul.f32 %v2045, 0.99004984
        %v2432 = vmul.f32 %v2046, 0.99004984
        %v2433 = vmul.f32 %v2047, 0.99004984
        %v2434 = vmul.f32 %v2048, 0.99004984
        %v2435 = vmul.f32 %v2049, 0.99004984
        %v2436 = vmul.f32 %v2050, 0.99004984
        %v2437 = vmul.f32 %v2051, 0.99004984
        %v2438 = vmul.f32 %v2052, 0.99004984
        %v2439 = vmul.f32 %v2053, 0.99004984
        %v2440 = vsel %vm2215, 1.0, %v2408
        %v2441 = vsel %vm2216, 1.0, %v2409
        %v2442 = vsel %vm2217, 1.0, %v2410
        %v2443 = vsel %vm2218, 1.0, %v2411
        %v2444 = vsel %vm2219, 1.0, %v2412
        %v2445 = vsel %vm2220, 1.0, %v2413
        %v2446 = vsel %vm2221, 1.0, %v2414
        %v2447 = vsel %vm2222, 1.0, %v2415
        %v2448 = vsel %vm2223, 1.0, %v2416
        %v2449 = vsel %vm2224, 1.0, %v2417
        %v2450 = vsel %vm2225, 1.0, %v2418
        %v2451 = vsel %vm2226, 1.0, %v2419
        %v2452 = vsel %vm2227, 1.0, %v2420
        %v2453 = vsel %vm2228, 1.0, %v2421
        %v2454 = vsel %vm2229, 1.0, %v2422
        %v2455 = vsel %vm2230, 1.0, %v2423
        %v2456 = vsel %vm2231, 1.0, %v2424
        %v2457 = vsel %vm2232, 1.0, %v2425
        %v2458 = vsel %vm2233, 1.0, %v2426
        %v2459 = vsel %vm2234, 1.0, %v2427
        %v2460 = vsel %vm2235, 1.0, %v2428
        %v2461 = vsel %vm2236, 1.0, %v2429
        %v2462 = vsel %vm2237, 1.0, %v2430
        %v2463 = vsel %vm2238, 1.0, %v2431
        %v2464 = vsel %vm2239, 1.0, %v2432
        %v2465 = vsel %vm2240, 1.0, %v2433
        %v2466 = vsel %vm2241, 1.0, %v2434
        %v2467 = vsel %vm2242, 1.0, %v2435
        %v2468 = vsel %vm2243, 1.0, %v2436
        %v2469 = vsel %vm2244, 1.0, %v2437
        %v2470 = vsel %vm2245, 1.0, %v2438
        %v2471 = vsel %vm2246, 1.0, %v2439
        %s2472 = scalar_lea.vmem %s406, 1024 [#allocation2]
        %v2473 = vld [vmem:[%s2472] sm:$0xff]
        %v2474 = vld [vmem:[%s2472 + $0x8] sm:$0xff]
        %v2475 = vld [vmem:[%s2472 + $0x10] sm:$0xff]
        %v2476 = vld [vmem:[%s2472 + $0x18] sm:$0xff]
        %v2477 = vld [vmem:[%s2472 + $0x20] sm:$0xff]
        %v2478 = vld [vmem:[%s2472 + $0x28] sm:$0xff]
        %v2479 = vld [vmem:[%s2472 + $0x30] sm:$0xff]
        %v2480 = vld [vmem:[%s2472 + $0x38] sm:$0xff]
        %v2481 = vld [vmem:[%s2472 + $0x40] sm:$0xff]
        %v2482 = vld [vmem:[%s2472 + $0x48] sm:$0xff]
        %v2483 = vld [vmem:[%s2472 + $0x50] sm:$0xff]
        %v2484 = vld [vmem:[%s2472 + $0x58] sm:$0xff]
        %v2485 = vld [vmem:[%s2472 + $0x60] sm:$0xff]
        %v2486 = vld [vmem:[%s2472 + $0x68] sm:$0xff]
        %v2487 = vld [vmem:[%s2472 + $0x70] sm:$0xff]
        %v2488 = vld [vmem:[%s2472 + $0x78] sm:$0xff]
        %v2489 = vld [vmem:[%s2472 + $0x80] sm:$0xff]
        %v2490 = vld [vmem:[%s2472 + $0x88] sm:$0xff]
        %v2491 = vld [vmem:[%s2472 + $0x90] sm:$0xff]
        %v2492 = vld [vmem:[%s2472 + $0x98] sm:$0xff]
        %v2493 = vld [vmem:[%s2472 + $0xa0] sm:$0xff]
        %v2494 = vld [vmem:[%s2472 + $0xa8] sm:$0xff]
        %v2495 = vld [vmem:[%s2472 + $0xb0] sm:$0xff]
        %v2496 = vld [vmem:[%s2472 + $0xb8] sm:$0xff]
        %v2497 = vld [vmem:[%s2472 + $0xc0] sm:$0xff]
        %v2498 = vld [vmem:[%s2472 + $0xc8] sm:$0xff]
        %v2499 = vld [vmem:[%s2472 + $0xd0] sm:$0xff]
        %v2500 = vld [vmem:[%s2472 + $0xd8] sm:$0xff]
        %v2501 = vld [vmem:[%s2472 + $0xe0] sm:$0xff]
        %v2502 = vld [vmem:[%s2472 + $0xe8] sm:$0xff]
        %v2503 = vld [vmem:[%s2472 + $0xf0] sm:$0xff]
        %v2504 = vld [vmem:[%s2472 + $0xf8] sm:$0xff]
        %v2505 = vmul.f32 %v2376, 0.9990005
        %v2506 = vmul.f32 %v2377, 0.9990005
        %v2507 = vmul.f32 %v2378, 0.9990005
        %v2508 = vmul.f32 %v2379, 0.9990005
        %v2509 = vmul.f32 %v2380, 0.9990005
        %v2510 = vmul.f32 %v2381, 0.9990005
        %v2511 = vmul.f32 %v2382, 0.9990005
        %v2512 = vmul.f32 %v2383, 0.9990005
        %v2513 = vmul.f32 %v2384, 0.9990005
        %v2514 = vmul.f32 %v2385, 0.9990005
        %v2515 = vmul.f32 %v2386, 0.9990005
        %v2516 = vmul.f32 %v2387, 0.9990005
        %v2517 = vmul.f32 %v2388, 0.9990005
        %v2518 = vmul.f32 %v2389, 0.9990005
        %v2519 = vmul.f32 %v2390, 0.9990005
        %v2520 = vmul.f32 %v2391, 0.9990005
        %v2521 = vmul.f32 %v2392, 0.9990005
        %v2522 = vmul.f32 %v2393, 0.9990005
        %v2523 = vmul.f32 %v2394, 0.9990005
        %v2524 = vmul.f32 %v2395, 0.9990005
        %v2525 = vmul.f32 %v2396, 0.9990005
        %v2526 = vmul.f32 %v2397, 0.9990005
        %v2527 = vmul.f32 %v2398, 0.9990005
        %v2528 = vmul.f32 %v2399, 0.9990005
        %v2529 = vmul.f32 %v2400, 0.9990005
        %v2530 = vmul.f32 %v2401, 0.9990005
        %v2531 = vmul.f32 %v2402, 0.9990005
        %v2532 = vmul.f32 %v2403, 0.9990005
        %v2533 = vmul.f32 %v2404, 0.9990005
        %v2534 = vmul.f32 %v2405, 0.9990005
        %v2535 = vmul.f32 %v2406, 0.9990005
        %v2536 = vmul.f32 %v2407, 0.9990005
        %vm2537 = vcmp.gt.f32.partialorder %v2344, 0.0
        %vm2538 = vcmp.gt.f32.partialorder %v2345, 0.0
        %vm2539 = vcmp.gt.f32.partialorder %v2346, 0.0
        %vm2540 = vcmp.gt.f32.partialorder %v2347, 0.0
        %vm2541 = vcmp.gt.f32.partialorder %v2348, 0.0
        %vm2542 = vcmp.gt.f32.partialorder %v2349, 0.0
        %vm2543 = vcmp.gt.f32.partialorder %v2350, 0.0
        %vm2544 = vcmp.gt.f32.partialorder %v2351, 0.0
        %vm2545 = vcmp.gt.f32.partialorder %v2352, 0.0
        %vm2546 = vcmp.gt.f32.partialorder %v2353, 0.0
        %vm2547 = vcmp.gt.f32.partialorder %v2354, 0.0
        %vm2548 = vcmp.gt.f32.partialorder %v2355, 0.0
        %vm2549 = vcmp.gt.f32.partialorder %v2356, 0.0
        %vm2550 = vcmp.gt.f32.partialorder %v2357, 0.0
        %vm2551 = vcmp.gt.f32.partialorder %v2358, 0.0
        %vm2552 = vcmp.gt.f32.partialorder %v2359, 0.0
        %vm2553 = vcmp.gt.f32.partialorder %v2360, 0.0
        %vm2554 = vcmp.gt.f32.partialorder %v2361, 0.0
        %vm2555 = vcmp.gt.f32.partialorder %v2362, 0.0
        %vm2556 = vcmp.gt.f32.partialorder %v2363, 0.0
        %vm2557 = vcmp.gt.f32.partialorder %v2364, 0.0
        %vm2558 = vcmp.gt.f32.partialorder %v2365, 0.0
        %vm2559 = vcmp.gt.f32.partialorder %v2366, 0.0
        %vm2560 = vcmp.gt.f32.partialorder %v2367, 0.0
        %vm2561 = vcmp.gt.f32.partialorder %v2368, 0.0
        %vm2562 = vcmp.gt.f32.partialorder %v2369, 0.0
        %vm2563 = vcmp.gt.f32.partialorder %v2370, 0.0
        %vm2564 = vcmp.gt.f32.partialorder %v2371, 0.0
        %vm2565 = vcmp.gt.f32.partialorder %v2372, 0.0
        %vm2566 = vcmp.gt.f32.partialorder %v2373, 0.0
        %vm2567 = vcmp.gt.f32.partialorder %v2374, 0.0
        %vm2568 = vcmp.gt.f32.partialorder %v2375, 0.0
        %v2569 = vsel %vm2537, 0.0, %v2473
        %v2570 = vsel %vm2538, 0.0, %v2474
        %v2571 = vsel %vm2539, 0.0, %v2475
        %v2572 = vsel %vm2540, 0.0, %v2476
        %v2573 = vsel %vm2541, 0.0, %v2477
        %v2574 = vsel %vm2542, 0.0, %v2478
        %v2575 = vsel %vm2543, 0.0, %v2479
        %v2576 = vsel %vm2544, 0.0, %v2480
        %v2577 = vsel %vm2545, 0.0, %v2481
        %v2578 = vsel %vm2546, 0.0, %v2482
        %v2579 = vsel %vm2547, 0.0, %v2483
        %v2580 = vsel %vm2548, 0.0, %v2484
        %v2581 = vsel %vm2549, 0.0, %v2485
        %v2582 = vsel %vm2550, 0.0, %v2486
        %v2583 = vsel %vm2551, 0.0, %v2487
        %v2584 = vsel %vm2552, 0.0, %v2488
        %v2585 = vsel %vm2553, 0.0, %v2489
        %v2586 = vsel %vm2554, 0.0, %v2490
        %v2587 = vsel %vm2555, 0.0, %v2491
        %v2588 = vsel %vm2556, 0.0, %v2492
        %v2589 = vsel %vm2557, 0.0, %v2493
        %v2590 = vsel %vm2558, 0.0, %v2494
        %v2591 = vsel %vm2559, 0.0, %v2495
        %v2592 = vsel %vm2560, 0.0, %v2496
        %v2593 = vsel %vm2561, 0.0, %v2497
        %v2594 = vsel %vm2562, 0.0, %v2498
        %v2595 = vsel %vm2563, 0.0, %v2499
        %v2596 = vsel %vm2564, 0.0, %v2500
        %v2597 = vsel %vm2565, 0.0, %v2501
        %v2598 = vsel %vm2566, 0.0, %v2502
        %v2599 = vsel %vm2567, 0.0, %v2503
        %v2600 = vsel %vm2568, 0.0, %v2504
        %v2601 = vadd.f32 %v2505, %v2569
        %v2602 = vadd.f32 %v2506, %v2570
        %v2603 = vadd.f32 %v2507, %v2571
        %v2604 = vadd.f32 %v2508, %v2572
        %v2605 = vadd.f32 %v2509, %v2573
        %v2606 = vadd.f32 %v2510, %v2574
        %v2607 = vadd.f32 %v2511, %v2575
        %v2608 = vadd.f32 %v2512, %v2576
        %v2609 = vadd.f32 %v2513, %v2577
        %v2610 = vadd.f32 %v2514, %v2578
        %v2611 = vadd.f32 %v2515, %v2579
        %v2612 = vadd.f32 %v2516, %v2580
        %v2613 = vadd.f32 %v2517, %v2581
        %v2614 = vadd.f32 %v2518, %v2582
        %v2615 = vadd.f32 %v2519, %v2583
        %v2616 = vadd.f32 %v2520, %v2584
        %v2617 = vadd.f32 %v2521, %v2585
        %v2618 = vadd.f32 %v2522, %v2586
        %v2619 = vadd.f32 %v2523, %v2587
        %v2620 = vadd.f32 %v2524, %v2588
        %v2621 = vadd.f32 %v2525, %v2589
        %v2622 = vadd.f32 %v2526, %v2590
        %v2623 = vadd.f32 %v2527, %v2591
        %v2624 = vadd.f32 %v2528, %v2592
        %v2625 = vadd.f32 %v2529, %v2593
        %v2626 = vadd.f32 %v2530, %v2594
        %v2627 = vadd.f32 %v2531, %v2595
        %v2628 = vadd.f32 %v2532, %v2596
        %v2629 = vadd.f32 %v2533, %v2597
        %v2630 = vadd.f32 %v2534, %v2598
        %v2631 = vadd.f32 %v2535, %v2599
        %v2632 = vadd.f32 %v2536, %v2600
        %vm2633 = vcmp.ge.f32.partialorder %v2601, 40.0
        %vm2634 = vcmp.ge.f32.partialorder %v2602, 40.0
        %vm2635 = vcmp.ge.f32.partialorder %v2603, 40.0
        %vm2636 = vcmp.ge.f32.partialorder %v2604, 40.0
        %vm2637 = vcmp.ge.f32.partialorder %v2605, 40.0
        %vm2638 = vcmp.ge.f32.partialorder %v2606, 40.0
        %vm2639 = vcmp.ge.f32.partialorder %v2607, 40.0
        %vm2640 = vcmp.ge.f32.partialorder %v2608, 40.0
        %vm2641 = vcmp.ge.f32.partialorder %v2609, 40.0
        %vm2642 = vcmp.ge.f32.partialorder %v2610, 40.0
        %vm2643 = vcmp.ge.f32.partialorder %v2611, 40.0
        %vm2644 = vcmp.ge.f32.partialorder %v2612, 40.0
        %vm2645 = vcmp.ge.f32.partialorder %v2613, 40.0
        %vm2646 = vcmp.ge.f32.partialorder %v2614, 40.0
        %vm2647 = vcmp.ge.f32.partialorder %v2615, 40.0
        %vm2648 = vcmp.ge.f32.partialorder %v2616, 40.0
        %vm2649 = vcmp.ge.f32.partialorder %v2617, 40.0
        %vm2650 = vcmp.ge.f32.partialorder %v2618, 40.0
        %vm2651 = vcmp.ge.f32.partialorder %v2619, 40.0
        %vm2652 = vcmp.ge.f32.partialorder %v2620, 40.0
        %vm2653 = vcmp.ge.f32.partialorder %v2621, 40.0
        %vm2654 = vcmp.ge.f32.partialorder %v2622, 40.0
        %vm2655 = vcmp.ge.f32.partialorder %v2623, 40.0
        %vm2656 = vcmp.ge.f32.partialorder %v2624, 40.0
        %vm2657 = vcmp.ge.f32.partialorder %v2625, 40.0
        %vm2658 = vcmp.ge.f32.partialorder %v2626, 40.0
        %vm2659 = vcmp.ge.f32.partialorder %v2627, 40.0
        %vm2660 = vcmp.ge.f32.partialorder %v2628, 40.0
        %vm2661 = vcmp.ge.f32.partialorder %v2629, 40.0
        %vm2662 = vcmp.ge.f32.partialorder %v2630, 40.0
        %vm2663 = vcmp.ge.f32.partialorder %v2631, 40.0
        %vm2664 = vcmp.ge.f32.partialorder %v2632, 40.0
        %vm2665 = vmpackc.low %vm2635, %vm2633
        %vm2666 = vmpackc.low %vm2639, %vm2637
        %v2667 = vsel %vm2665, 16711935, 0
        %v2668 = vsel %vm2666, 16711935, 0
        %v2669 = vpack.c.b8 %v2668, %v2667
        %vm2670 = vnez %v2669
        %vm2671 = vmpackc.low %vm2636, %vm2634
        %vm2672 = vmpackc.low %vm2640, %vm2638
        %v2673 = vsel %vm2671, 16711935, 0
        %v2674 = vsel %vm2672, 16711935, 0
        %v2675 = vpack.c.b8 %v2674, %v2673
        %vm2676 = vnez %v2675
        %vm2677 = vmpackc.low %vm2643, %vm2641
        %vm2678 = vmpackc.low %vm2647, %vm2645
        %v2679 = vsel %vm2677, 16711935, 0
        %v2680 = vsel %vm2678, 16711935, 0
        %v2681 = vpack.c.b8 %v2680, %v2679
        %vm2682 = vnez %v2681
        %vm2683 = vmpackc.low %vm2644, %vm2642
        %vm2684 = vmpackc.low %vm2648, %vm2646
        %v2685 = vsel %vm2683, 16711935, 0
        %v2686 = vsel %vm2684, 16711935, 0
        %v2687 = vpack.c.b8 %v2686, %v2685
        %vm2688 = vnez %v2687
        %vm2689 = vmpackc.low %vm2651, %vm2649
        %vm2690 = vmpackc.low %vm2655, %vm2653
        %v2691 = vsel %vm2689, 16711935, 0
        %v2692 = vsel %vm2690, 16711935, 0
        %v2693 = vpack.c.b8 %v2692, %v2691
        %vm2694 = vnez %v2693
        %vm2695 = vmpackc.low %vm2652, %vm2650
        %vm2696 = vmpackc.low %vm2656, %vm2654
        %v2697 = vsel %vm2695, 16711935, 0
        %v2698 = vsel %vm2696, 16711935, 0
        %v2699 = vpack.c.b8 %v2698, %v2697
        %vm2700 = vnez %v2699
        %vm2701 = vmpackc.low %vm2659, %vm2657
        %vm2702 = vmpackc.low %vm2663, %vm2661
        %v2703 = vsel %vm2701, 16711935, 0
        %v2704 = vsel %vm2702, 16711935, 0
        %v2705 = vpack.c.b8 %v2704, %v2703
        %vm2706 = vnez %v2705
        %vm2707 = vmpackc.low %vm2660, %vm2658
        %vm2708 = vmpackc.low %vm2664, %vm2662
        %v2709 = vsel %vm2707, 16711935, 0
        %v2710 = vsel %vm2708, 16711935, 0
        %v2711 = vpack.c.b8 %v2710, %v2709
        %vm2712 = vnez %v2711
        %v2713 = vsel %vm2670, 16843009, 0
        %v2714 = vsel %vm2676, 16843009, 0
        %v2715 = vsel %vm2682, 16843009, 0
        %v2716 = vsel %vm2688, 16843009, 0
        %v2717 = vsel %vm2694, 16843009, 0
        %v2718 = vsel %vm2700, 16843009, 0
        %v2719 = vsel %vm2706, 16843009, 0
        %v2720 = vsel %vm2712, 16843009, 0
        %s2721 = scalar_lea.vmem %s483, 256 [#allocation11]
        %2722 = vst [vmem:[%s2721] sm:$0xff] %v2713
        %2723 = vst [vmem:[%s2721 + $0x8] sm:$0xff] %v2714
        %2724 = vst [vmem:[%s2721 + $0x10] sm:$0xff] %v2715
        %2725 = vst [vmem:[%s2721 + $0x18] sm:$0xff] %v2716
        %2726 = vst [vmem:[%s2721 + $0x20] sm:$0xff] %v2717
        %2727 = vst [vmem:[%s2721 + $0x28] sm:$0xff] %v2718
        %2728 = vst [vmem:[%s2721 + $0x30] sm:$0xff] %v2719
        %2729 = vst [vmem:[%s2721 + $0x38] sm:$0xff] %v2720
        %v2730 = vsub.f32 %v2344, 0.1
        %v2731 = vsub.f32 %v2345, 0.1
        %v2732 = vsub.f32 %v2346, 0.1
        %v2733 = vsub.f32 %v2347, 0.1
        %v2734 = vsub.f32 %v2348, 0.1
        %v2735 = vsub.f32 %v2349, 0.1
        %v2736 = vsub.f32 %v2350, 0.1
        %v2737 = vsub.f32 %v2351, 0.1
        %v2738 = vsub.f32 %v2352, 0.1
        %v2739 = vsub.f32 %v2353, 0.1
        %v2740 = vsub.f32 %v2354, 0.1
        %v2741 = vsub.f32 %v2355, 0.1
        %v2742 = vsub.f32 %v2356, 0.1
        %v2743 = vsub.f32 %v2357, 0.1
        %v2744 = vsub.f32 %v2358, 0.1
        %v2745 = vsub.f32 %v2359, 0.1
        %v2746 = vsub.f32 %v2360, 0.1
        %v2747 = vsub.f32 %v2361, 0.1
        %v2748 = vsub.f32 %v2362, 0.1
        %v2749 = vsub.f32 %v2363, 0.1
        %v2750 = vsub.f32 %v2364, 0.1
        %v2751 = vsub.f32 %v2365, 0.1
        %v2752 = vsub.f32 %v2366, 0.1
        %v2753 = vsub.f32 %v2367, 0.1
        %v2754 = vsub.f32 %v2368, 0.1
        %v2755 = vsub.f32 %v2369, 0.1
        %v2756 = vsub.f32 %v2370, 0.1
        %v2757 = vsub.f32 %v2371, 0.1
        %v2758 = vsub.f32 %v2372, 0.1
        %v2759 = vsub.f32 %v2373, 0.1
        %v2760 = vsub.f32 %v2374, 0.1
        %v2761 = vsub.f32 %v2375, 0.1
        %v2762 = vsel %vm2633, 5.0, %v2730
        %v2763 = vsel %vm2634, 5.0, %v2731
        %v2764 = vsel %vm2635, 5.0, %v2732
        %v2765 = vsel %vm2636, 5.0, %v2733
        %v2766 = vsel %vm2637, 5.0, %v2734
        %v2767 = vsel %vm2638, 5.0, %v2735
        %v2768 = vsel %vm2639, 5.0, %v2736
        %v2769 = vsel %vm2640, 5.0, %v2737
        %v2770 = vsel %vm2641, 5.0, %v2738
        %v2771 = vsel %vm2642, 5.0, %v2739
        %v2772 = vsel %vm2643, 5.0, %v2740
        %v2773 = vsel %vm2644, 5.0, %v2741
        %v2774 = vsel %vm2645, 5.0, %v2742
        %v2775 = vsel %vm2646, 5.0, %v2743
        %v2776 = vsel %vm2647, 5.0, %v2744
        %v2777 = vsel %vm2648, 5.0, %v2745
        %v2778 = vsel %vm2649, 5.0, %v2746
        %v2779 = vsel %vm2650, 5.0, %v2747
        %v2780 = vsel %vm2651, 5.0, %v2748
        %v2781 = vsel %vm2652, 5.0, %v2749
        %v2782 = vsel %vm2653, 5.0, %v2750
        %v2783 = vsel %vm2654, 5.0, %v2751
        %v2784 = vsel %vm2655, 5.0, %v2752
        %v2785 = vsel %vm2656, 5.0, %v2753
        %v2786 = vsel %vm2657, 5.0, %v2754
        %v2787 = vsel %vm2658, 5.0, %v2755
        %v2788 = vsel %vm2659, 5.0, %v2756
        %v2789 = vsel %vm2660, 5.0, %v2757
        %v2790 = vsel %vm2661, 5.0, %v2758
        %v2791 = vsel %vm2662, 5.0, %v2759
        %v2792 = vsel %vm2663, 5.0, %v2760
        %v2793 = vsel %vm2664, 5.0, %v2761
        %v2794 = vsel %vm2633, 0.0, %v2601
        %v2795 = vsel %vm2634, 0.0, %v2602
        %v2796 = vsel %vm2635, 0.0, %v2603
        %v2797 = vsel %vm2636, 0.0, %v2604
        %v2798 = vsel %vm2637, 0.0, %v2605
        %v2799 = vsel %vm2638, 0.0, %v2606
        %v2800 = vsel %vm2639, 0.0, %v2607
        %v2801 = vsel %vm2640, 0.0, %v2608
        %v2802 = vsel %vm2641, 0.0, %v2609
        %v2803 = vsel %vm2642, 0.0, %v2610
        %v2804 = vsel %vm2643, 0.0, %v2611
        %v2805 = vsel %vm2644, 0.0, %v2612
        %v2806 = vsel %vm2645, 0.0, %v2613
        %v2807 = vsel %vm2646, 0.0, %v2614
        %v2808 = vsel %vm2647, 0.0, %v2615
        %v2809 = vsel %vm2648, 0.0, %v2616
        %v2810 = vsel %vm2649, 0.0, %v2617
        %v2811 = vsel %vm2650, 0.0, %v2618
        %v2812 = vsel %vm2651, 0.0, %v2619
        %v2813 = vsel %vm2652, 0.0, %v2620
        %v2814 = vsel %vm2653, 0.0, %v2621
        %v2815 = vsel %vm2654, 0.0, %v2622
        %v2816 = vsel %vm2655, 0.0, %v2623
        %v2817 = vsel %vm2656, 0.0, %v2624
        %v2818 = vsel %vm2657, 0.0, %v2625
        %v2819 = vsel %vm2658, 0.0, %v2626
        %v2820 = vsel %vm2659, 0.0, %v2627
        %v2821 = vsel %vm2660, 0.0, %v2628
        %v2822 = vsel %vm2661, 0.0, %v2629
        %v2823 = vsel %vm2662, 0.0, %v2630
        %v2824 = vsel %vm2663, 0.0, %v2631
        %v2825 = vsel %vm2664, 0.0, %v2632
        %v2826 = vmul.f32 %v2440, 0.99004984
        %v2827 = vmul.f32 %v2441, 0.99004984
        %v2828 = vmul.f32 %v2442, 0.99004984
        %v2829 = vmul.f32 %v2443, 0.99004984
        %v2830 = vmul.f32 %v2444, 0.99004984
        %v2831 = vmul.f32 %v2445, 0.99004984
        %v2832 = vmul.f32 %v2446, 0.99004984
        %v2833 = vmul.f32 %v2447, 0.99004984
        %v2834 = vmul.f32 %v2448, 0.99004984
        %v2835 = vmul.f32 %v2449, 0.99004984
        %v2836 = vmul.f32 %v2450, 0.99004984
        %v2837 = vmul.f32 %v2451, 0.99004984
        %v2838 = vmul.f32 %v2452, 0.99004984
        %v2839 = vmul.f32 %v2453, 0.99004984
        %v2840 = vmul.f32 %v2454, 0.99004984
        %v2841 = vmul.f32 %v2455, 0.99004984
        %v2842 = vmul.f32 %v2456, 0.99004984
        %v2843 = vmul.f32 %v2457, 0.99004984
        %v2844 = vmul.f32 %v2458, 0.99004984
        %v2845 = vmul.f32 %v2459, 0.99004984
        %v2846 = vmul.f32 %v2460, 0.99004984
        %v2847 = vmul.f32 %v2461, 0.99004984
        %v2848 = vmul.f32 %v2462, 0.99004984
        %v2849 = vmul.f32 %v2463, 0.99004984
        %v2850 = vmul.f32 %v2464, 0.99004984
        %v2851 = vmul.f32 %v2465, 0.99004984
        %v2852 = vmul.f32 %v2466, 0.99004984
        %v2853 = vmul.f32 %v2467, 0.99004984
        %v2854 = vmul.f32 %v2468, 0.99004984
        %v2855 = vmul.f32 %v2469, 0.99004984
        %v2856 = vmul.f32 %v2470, 0.99004984
        %v2857 = vmul.f32 %v2471, 0.99004984
        %v2858 = vsel %vm2633, 1.0, %v2826
        %v2859 = vsel %vm2634, 1.0, %v2827
        %v2860 = vsel %vm2635, 1.0, %v2828
        %v2861 = vsel %vm2636, 1.0, %v2829
        %v2862 = vsel %vm2637, 1.0, %v2830
        %v2863 = vsel %vm2638, 1.0, %v2831
        %v2864 = vsel %vm2639, 1.0, %v2832
        %v2865 = vsel %vm2640, 1.0, %v2833
        %v2866 = vsel %vm2641, 1.0, %v2834
        %v2867 = vsel %vm2642, 1.0, %v2835
        %v2868 = vsel %vm2643, 1.0, %v2836
        %v2869 = vsel %vm2644, 1.0, %v2837
        %v2870 = vsel %vm2645, 1.0, %v2838
        %v2871 = vsel %vm2646, 1.0, %v2839
        %v2872 = vsel %vm2647, 1.0, %v2840
        %v2873 = vsel %vm2648, 1.0, %v2841
        %v2874 = vsel %vm2649, 1.0, %v2842
        %v2875 = vsel %vm2650, 1.0, %v2843
        %v2876 = vsel %vm2651, 1.0, %v2844
        %v2877 = vsel %vm2652, 1.0, %v2845
        %v2878 = vsel %vm2653, 1.0, %v2846
        %v2879 = vsel %vm2654, 1.0, %v2847
        %v2880 = vsel %vm2655, 1.0, %v2848
        %v2881 = vsel %vm2656, 1.0, %v2849
        %v2882 = vsel %vm2657, 1.0, %v2850
        %v2883 = vsel %vm2658, 1.0, %v2851
        %v2884 = vsel %vm2659, 1.0, %v2852
        %v2885 = vsel %vm2660, 1.0, %v2853
        %v2886 = vsel %vm2661, 1.0, %v2854
        %v2887 = vsel %vm2662, 1.0, %v2855
        %v2888 = vsel %vm2663, 1.0, %v2856
        %v2889 = vsel %vm2664, 1.0, %v2857
        %s2890 = scalar_lea.vmem %s406, 1280 [#allocation2]
        %v2891 = vld [vmem:[%s2890] sm:$0xff]
        %v2892 = vld [vmem:[%s2890 + $0x8] sm:$0xff]
        %v2893 = vld [vmem:[%s2890 + $0x10] sm:$0xff]
        %v2894 = vld [vmem:[%s2890 + $0x18] sm:$0xff]
        %v2895 = vld [vmem:[%s2890 + $0x20] sm:$0xff]
        %v2896 = vld [vmem:[%s2890 + $0x28] sm:$0xff]
        %v2897 = vld [vmem:[%s2890 + $0x30] sm:$0xff]
        %v2898 = vld [vmem:[%s2890 + $0x38] sm:$0xff]
        %v2899 = vld [vmem:[%s2890 + $0x40] sm:$0xff]
        %v2900 = vld [vmem:[%s2890 + $0x48] sm:$0xff]
        %v2901 = vld [vmem:[%s2890 + $0x50] sm:$0xff]
        %v2902 = vld [vmem:[%s2890 + $0x58] sm:$0xff]
        %v2903 = vld [vmem:[%s2890 + $0x60] sm:$0xff]
        %v2904 = vld [vmem:[%s2890 + $0x68] sm:$0xff]
        %v2905 = vld [vmem:[%s2890 + $0x70] sm:$0xff]
        %v2906 = vld [vmem:[%s2890 + $0x78] sm:$0xff]
        %v2907 = vld [vmem:[%s2890 + $0x80] sm:$0xff]
        %v2908 = vld [vmem:[%s2890 + $0x88] sm:$0xff]
        %v2909 = vld [vmem:[%s2890 + $0x90] sm:$0xff]
        %v2910 = vld [vmem:[%s2890 + $0x98] sm:$0xff]
        %v2911 = vld [vmem:[%s2890 + $0xa0] sm:$0xff]
        %v2912 = vld [vmem:[%s2890 + $0xa8] sm:$0xff]
        %v2913 = vld [vmem:[%s2890 + $0xb0] sm:$0xff]
        %v2914 = vld [vmem:[%s2890 + $0xb8] sm:$0xff]
        %v2915 = vld [vmem:[%s2890 + $0xc0] sm:$0xff]
        %v2916 = vld [vmem:[%s2890 + $0xc8] sm:$0xff]
        %v2917 = vld [vmem:[%s2890 + $0xd0] sm:$0xff]
        %v2918 = vld [vmem:[%s2890 + $0xd8] sm:$0xff]
        %v2919 = vld [vmem:[%s2890 + $0xe0] sm:$0xff]
        %v2920 = vld [vmem:[%s2890 + $0xe8] sm:$0xff]
        %v2921 = vld [vmem:[%s2890 + $0xf0] sm:$0xff]
        %v2922 = vld [vmem:[%s2890 + $0xf8] sm:$0xff]
        %v2923 = vmul.f32 %v2794, 0.9990005
        %v2924 = vmul.f32 %v2795, 0.9990005
        %v2925 = vmul.f32 %v2796, 0.9990005
        %v2926 = vmul.f32 %v2797, 0.9990005
        %v2927 = vmul.f32 %v2798, 0.9990005
        %v2928 = vmul.f32 %v2799, 0.9990005
        %v2929 = vmul.f32 %v2800, 0.9990005
        %v2930 = vmul.f32 %v2801, 0.9990005
        %v2931 = vmul.f32 %v2802, 0.9990005
        %v2932 = vmul.f32 %v2803, 0.9990005
        %v2933 = vmul.f32 %v2804, 0.9990005
        %v2934 = vmul.f32 %v2805, 0.9990005
        %v2935 = vmul.f32 %v2806, 0.9990005
        %v2936 = vmul.f32 %v2807, 0.9990005
        %v2937 = vmul.f32 %v2808, 0.9990005
        %v2938 = vmul.f32 %v2809, 0.9990005
        %v2939 = vmul.f32 %v2810, 0.9990005
        %v2940 = vmul.f32 %v2811, 0.9990005
        %v2941 = vmul.f32 %v2812, 0.9990005
        %v2942 = vmul.f32 %v2813, 0.9990005
        %v2943 = vmul.f32 %v2814, 0.9990005
        %v2944 = vmul.f32 %v2815, 0.9990005
        %v2945 = vmul.f32 %v2816, 0.9990005
        %v2946 = vmul.f32 %v2817, 0.9990005
        %v2947 = vmul.f32 %v2818, 0.9990005
        %v2948 = vmul.f32 %v2819, 0.9990005
        %v2949 = vmul.f32 %v2820, 0.9990005
        %v2950 = vmul.f32 %v2821, 0.9990005
        %v2951 = vmul.f32 %v2822, 0.9990005
        %v2952 = vmul.f32 %v2823, 0.9990005
        %v2953 = vmul.f32 %v2824, 0.9990005
        %v2954 = vmul.f32 %v2825, 0.9990005
        %vm2955 = vcmp.gt.f32.partialorder %v2762, 0.0
        %vm2956 = vcmp.gt.f32.partialorder %v2763, 0.0
        %vm2957 = vcmp.gt.f32.partialorder %v2764, 0.0
        %vm2958 = vcmp.gt.f32.partialorder %v2765, 0.0
        %vm2959 = vcmp.gt.f32.partialorder %v2766, 0.0
        %vm2960 = vcmp.gt.f32.partialorder %v2767, 0.0
        %vm2961 = vcmp.gt.f32.partialorder %v2768, 0.0
        %vm2962 = vcmp.gt.f32.partialorder %v2769, 0.0
        %vm2963 = vcmp.gt.f32.partialorder %v2770, 0.0
        %vm2964 = vcmp.gt.f32.partialorder %v2771, 0.0
        %vm2965 = vcmp.gt.f32.partialorder %v2772, 0.0
        %vm2966 = vcmp.gt.f32.partialorder %v2773, 0.0
        %vm2967 = vcmp.gt.f32.partialorder %v2774, 0.0
        %vm2968 = vcmp.gt.f32.partialorder %v2775, 0.0
        %vm2969 = vcmp.gt.f32.partialorder %v2776, 0.0
        %vm2970 = vcmp.gt.f32.partialorder %v2777, 0.0
        %vm2971 = vcmp.gt.f32.partialorder %v2778, 0.0
        %vm2972 = vcmp.gt.f32.partialorder %v2779, 0.0
        %vm2973 = vcmp.gt.f32.partialorder %v2780, 0.0
        %vm2974 = vcmp.gt.f32.partialorder %v2781, 0.0
        %vm2975 = vcmp.gt.f32.partialorder %v2782, 0.0
        %vm2976 = vcmp.gt.f32.partialorder %v2783, 0.0
        %vm2977 = vcmp.gt.f32.partialorder %v2784, 0.0
        %vm2978 = vcmp.gt.f32.partialorder %v2785, 0.0
        %vm2979 = vcmp.gt.f32.partialorder %v2786, 0.0
        %vm2980 = vcmp.gt.f32.partialorder %v2787, 0.0
        %vm2981 = vcmp.gt.f32.partialorder %v2788, 0.0
        %vm2982 = vcmp.gt.f32.partialorder %v2789, 0.0
        %vm2983 = vcmp.gt.f32.partialorder %v2790, 0.0
        %vm2984 = vcmp.gt.f32.partialorder %v2791, 0.0
        %vm2985 = vcmp.gt.f32.partialorder %v2792, 0.0
        %vm2986 = vcmp.gt.f32.partialorder %v2793, 0.0
        %v2987 = vsel %vm2955, 0.0, %v2891
        %v2988 = vsel %vm2956, 0.0, %v2892
        %v2989 = vsel %vm2957, 0.0, %v2893
        %v2990 = vsel %vm2958, 0.0, %v2894
        %v2991 = vsel %vm2959, 0.0, %v2895
        %v2992 = vsel %vm2960, 0.0, %v2896
        %v2993 = vsel %vm2961, 0.0, %v2897
        %v2994 = vsel %vm2962, 0.0, %v2898
        %v2995 = vsel %vm2963, 0.0, %v2899
        %v2996 = vsel %vm2964, 0.0, %v2900
        %v2997 = vsel %vm2965, 0.0, %v2901
        %v2998 = vsel %vm2966, 0.0, %v2902
        %v2999 = vsel %vm2967, 0.0, %v2903
        %v3000 = vsel %vm2968, 0.0, %v2904
        %v3001 = vsel %vm2969, 0.0, %v2905
        %v3002 = vsel %vm2970, 0.0, %v2906
        %v3003 = vsel %vm2971, 0.0, %v2907
        %v3004 = vsel %vm2972, 0.0, %v2908
        %v3005 = vsel %vm2973, 0.0, %v2909
        %v3006 = vsel %vm2974, 0.0, %v2910
        %v3007 = vsel %vm2975, 0.0, %v2911
        %v3008 = vsel %vm2976, 0.0, %v2912
        %v3009 = vsel %vm2977, 0.0, %v2913
        %v3010 = vsel %vm2978, 0.0, %v2914
        %v3011 = vsel %vm2979, 0.0, %v2915
        %v3012 = vsel %vm2980, 0.0, %v2916
        %v3013 = vsel %vm2981, 0.0, %v2917
        %v3014 = vsel %vm2982, 0.0, %v2918
        %v3015 = vsel %vm2983, 0.0, %v2919
        %v3016 = vsel %vm2984, 0.0, %v2920
        %v3017 = vsel %vm2985, 0.0, %v2921
        %v3018 = vsel %vm2986, 0.0, %v2922
        %v3019 = vadd.f32 %v2923, %v2987
        %v3020 = vadd.f32 %v2924, %v2988
        %v3021 = vadd.f32 %v2925, %v2989
        %v3022 = vadd.f32 %v2926, %v2990
        %v3023 = vadd.f32 %v2927, %v2991
        %v3024 = vadd.f32 %v2928, %v2992
        %v3025 = vadd.f32 %v2929, %v2993
        %v3026 = vadd.f32 %v2930, %v2994
        %v3027 = vadd.f32 %v2931, %v2995
        %v3028 = vadd.f32 %v2932, %v2996
        %v3029 = vadd.f32 %v2933, %v2997
        %v3030 = vadd.f32 %v2934, %v2998
        %v3031 = vadd.f32 %v2935, %v2999
        %v3032 = vadd.f32 %v2936, %v3000
        %v3033 = vadd.f32 %v2937, %v3001
        %v3034 = vadd.f32 %v2938, %v3002
        %v3035 = vadd.f32 %v2939, %v3003
        %v3036 = vadd.f32 %v2940, %v3004
        %v3037 = vadd.f32 %v2941, %v3005
        %v3038 = vadd.f32 %v2942, %v3006
        %v3039 = vadd.f32 %v2943, %v3007
        %v3040 = vadd.f32 %v2944, %v3008
        %v3041 = vadd.f32 %v2945, %v3009
        %v3042 = vadd.f32 %v2946, %v3010
        %v3043 = vadd.f32 %v2947, %v3011
        %v3044 = vadd.f32 %v2948, %v3012
        %v3045 = vadd.f32 %v2949, %v3013
        %v3046 = vadd.f32 %v2950, %v3014
        %v3047 = vadd.f32 %v2951, %v3015
        %v3048 = vadd.f32 %v2952, %v3016
        %v3049 = vadd.f32 %v2953, %v3017
        %v3050 = vadd.f32 %v2954, %v3018
        %vm3051 = vcmp.ge.f32.partialorder %v3019, 40.0
        %vm3052 = vcmp.ge.f32.partialorder %v3020, 40.0
        %vm3053 = vcmp.ge.f32.partialorder %v3021, 40.0
        %vm3054 = vcmp.ge.f32.partialorder %v3022, 40.0
        %vm3055 = vcmp.ge.f32.partialorder %v3023, 40.0
        %vm3056 = vcmp.ge.f32.partialorder %v3024, 40.0
        %vm3057 = vcmp.ge.f32.partialorder %v3025, 40.0
        %vm3058 = vcmp.ge.f32.partialorder %v3026, 40.0
        %vm3059 = vcmp.ge.f32.partialorder %v3027, 40.0
        %vm3060 = vcmp.ge.f32.partialorder %v3028, 40.0
        %vm3061 = vcmp.ge.f32.partialorder %v3029, 40.0
        %vm3062 = vcmp.ge.f32.partialorder %v3030, 40.0
        %vm3063 = vcmp.ge.f32.partialorder %v3031, 40.0
        %vm3064 = vcmp.ge.f32.partialorder %v3032, 40.0
        %vm3065 = vcmp.ge.f32.partialorder %v3033, 40.0
        %vm3066 = vcmp.ge.f32.partialorder %v3034, 40.0
        %vm3067 = vcmp.ge.f32.partialorder %v3035, 40.0
        %vm3068 = vcmp.ge.f32.partialorder %v3036, 40.0
        %vm3069 = vcmp.ge.f32.partialorder %v3037, 40.0
        %vm3070 = vcmp.ge.f32.partialorder %v3038, 40.0
        %vm3071 = vcmp.ge.f32.partialorder %v3039, 40.0
        %vm3072 = vcmp.ge.f32.partialorder %v3040, 40.0
        %vm3073 = vcmp.ge.f32.partialorder %v3041, 40.0
        %vm3074 = vcmp.ge.f32.partialorder %v3042, 40.0
        %vm3075 = vcmp.ge.f32.partialorder %v3043, 40.0
        %vm3076 = vcmp.ge.f32.partialorder %v3044, 40.0
        %vm3077 = vcmp.ge.f32.partialorder %v3045, 40.0
        %vm3078 = vcmp.ge.f32.partialorder %v3046, 40.0
        %vm3079 = vcmp.ge.f32.partialorder %v3047, 40.0
        %vm3080 = vcmp.ge.f32.partialorder %v3048, 40.0
        %vm3081 = vcmp.ge.f32.partialorder %v3049, 40.0
        %vm3082 = vcmp.ge.f32.partialorder %v3050, 40.0
        %vm3083 = vmpackc.low %vm3053, %vm3051
        %vm3084 = vmpackc.low %vm3057, %vm3055
        %v3085 = vsel %vm3083, 16711935, 0
        %v3086 = vsel %vm3084, 16711935, 0
        %v3087 = vpack.c.b8 %v3086, %v3085
        %vm3088 = vnez %v3087
        %vm3089 = vmpackc.low %vm3054, %vm3052
        %vm3090 = vmpackc.low %vm3058, %vm3056
        %v3091 = vsel %vm3089, 16711935, 0
        %v3092 = vsel %vm3090, 16711935, 0
        %v3093 = vpack.c.b8 %v3092, %v3091
        %vm3094 = vnez %v3093
        %vm3095 = vmpackc.low %vm3061, %vm3059
        %vm3096 = vmpackc.low %vm3065, %vm3063
        %v3097 = vsel %vm3095, 16711935, 0
        %v3098 = vsel %vm3096, 16711935, 0
        %v3099 = vpack.c.b8 %v3098, %v3097
        %vm3100 = vnez %v3099
        %vm3101 = vmpackc.low %vm3062, %vm3060
        %vm3102 = vmpackc.low %vm3066, %vm3064
        %v3103 = vsel %vm3101, 16711935, 0
        %v3104 = vsel %vm3102, 16711935, 0
        %v3105 = vpack.c.b8 %v3104, %v3103
        %vm3106 = vnez %v3105
        %vm3107 = vmpackc.low %vm3069, %vm3067
        %vm3108 = vmpackc.low %vm3073, %vm3071
        %v3109 = vsel %vm3107, 16711935, 0
        %v3110 = vsel %vm3108, 16711935, 0
        %v3111 = vpack.c.b8 %v3110, %v3109
        %vm3112 = vnez %v3111
        %vm3113 = vmpackc.low %vm3070, %vm3068
        %vm3114 = vmpackc.low %vm3074, %vm3072
        %v3115 = vsel %vm3113, 16711935, 0
        %v3116 = vsel %vm3114, 16711935, 0
        %v3117 = vpack.c.b8 %v3116, %v3115
        %vm3118 = vnez %v3117
        %vm3119 = vmpackc.low %vm3077, %vm3075
        %vm3120 = vmpackc.low %vm3081, %vm3079
        %v3121 = vsel %vm3119, 16711935, 0
        %v3122 = vsel %vm3120, 16711935, 0
        %v3123 = vpack.c.b8 %v3122, %v3121
        %vm3124 = vnez %v3123
        %vm3125 = vmpackc.low %vm3078, %vm3076
        %vm3126 = vmpackc.low %vm3082, %vm3080
        %v3127 = vsel %vm3125, 16711935, 0
        %v3128 = vsel %vm3126, 16711935, 0
        %v3129 = vpack.c.b8 %v3128, %v3127
        %vm3130 = vnez %v3129
        %v3131 = vsel %vm3088, 16843009, 0
        %v3132 = vsel %vm3094, 16843009, 0
        %v3133 = vsel %vm3100, 16843009, 0
        %v3134 = vsel %vm3106, 16843009, 0
        %v3135 = vsel %vm3112, 16843009, 0
        %v3136 = vsel %vm3118, 16843009, 0
        %v3137 = vsel %vm3124, 16843009, 0
        %v3138 = vsel %vm3130, 16843009, 0
        %s3139 = scalar_lea.vmem %s483, 320 [#allocation11]
        %3140 = vst [vmem:[%s3139] sm:$0xff] %v3131
        %3141 = vst [vmem:[%s3139 + $0x8] sm:$0xff] %v3132
        %3142 = vst [vmem:[%s3139 + $0x10] sm:$0xff] %v3133
        %3143 = vst [vmem:[%s3139 + $0x18] sm:$0xff] %v3134
        %3144 = vst [vmem:[%s3139 + $0x20] sm:$0xff] %v3135
        %3145 = vst [vmem:[%s3139 + $0x28] sm:$0xff] %v3136
        %3146 = vst [vmem:[%s3139 + $0x30] sm:$0xff] %v3137
        %3147 = vst [vmem:[%s3139 + $0x38] sm:$0xff] %v3138
        %v3148 = vsub.f32 %v2762, 0.1
        %v3149 = vsub.f32 %v2763, 0.1
        %v3150 = vsub.f32 %v2764, 0.1
        %v3151 = vsub.f32 %v2765, 0.1
        %v3152 = vsub.f32 %v2766, 0.1
        %v3153 = vsub.f32 %v2767, 0.1
        %v3154 = vsub.f32 %v2768, 0.1
        %v3155 = vsub.f32 %v2769, 0.1
        %v3156 = vsub.f32 %v2770, 0.1
        %v3157 = vsub.f32 %v2771, 0.1
        %v3158 = vsub.f32 %v2772, 0.1
        %v3159 = vsub.f32 %v2773, 0.1
        %v3160 = vsub.f32 %v2774, 0.1
        %v3161 = vsub.f32 %v2775, 0.1
        %v3162 = vsub.f32 %v2776, 0.1
        %v3163 = vsub.f32 %v2777, 0.1
        %v3164 = vsub.f32 %v2778, 0.1
        %v3165 = vsub.f32 %v2779, 0.1
        %v3166 = vsub.f32 %v2780, 0.1
        %v3167 = vsub.f32 %v2781, 0.1
        %v3168 = vsub.f32 %v2782, 0.1
        %v3169 = vsub.f32 %v2783, 0.1
        %v3170 = vsub.f32 %v2784, 0.1
        %v3171 = vsub.f32 %v2785, 0.1
        %v3172 = vsub.f32 %v2786, 0.1
        %v3173 = vsub.f32 %v2787, 0.1
        %v3174 = vsub.f32 %v2788, 0.1
        %v3175 = vsub.f32 %v2789, 0.1
        %v3176 = vsub.f32 %v2790, 0.1
        %v3177 = vsub.f32 %v2791, 0.1
        %v3178 = vsub.f32 %v2792, 0.1
        %v3179 = vsub.f32 %v2793, 0.1
        %v3180 = vsel %vm3051, 5.0, %v3148
        %v3181 = vsel %vm3052, 5.0, %v3149
        %v3182 = vsel %vm3053, 5.0, %v3150
        %v3183 = vsel %vm3054, 5.0, %v3151
        %v3184 = vsel %vm3055, 5.0, %v3152
        %v3185 = vsel %vm3056, 5.0, %v3153
        %v3186 = vsel %vm3057, 5.0, %v3154
        %v3187 = vsel %vm3058, 5.0, %v3155
        %v3188 = vsel %vm3059, 5.0, %v3156
        %v3189 = vsel %vm3060, 5.0, %v3157
        %v3190 = vsel %vm3061, 5.0, %v3158
        %v3191 = vsel %vm3062, 5.0, %v3159
        %v3192 = vsel %vm3063, 5.0, %v3160
        %v3193 = vsel %vm3064, 5.0, %v3161
        %v3194 = vsel %vm3065, 5.0, %v3162
        %v3195 = vsel %vm3066, 5.0, %v3163
        %v3196 = vsel %vm3067, 5.0, %v3164
        %v3197 = vsel %vm3068, 5.0, %v3165
        %v3198 = vsel %vm3069, 5.0, %v3166
        %v3199 = vsel %vm3070, 5.0, %v3167
        %v3200 = vsel %vm3071, 5.0, %v3168
        %v3201 = vsel %vm3072, 5.0, %v3169
        %v3202 = vsel %vm3073, 5.0, %v3170
        %v3203 = vsel %vm3074, 5.0, %v3171
        %v3204 = vsel %vm3075, 5.0, %v3172
        %v3205 = vsel %vm3076, 5.0, %v3173
        %v3206 = vsel %vm3077, 5.0, %v3174
        %v3207 = vsel %vm3078, 5.0, %v3175
        %v3208 = vsel %vm3079, 5.0, %v3176
        %v3209 = vsel %vm3080, 5.0, %v3177
        %v3210 = vsel %vm3081, 5.0, %v3178
        %v3211 = vsel %vm3082, 5.0, %v3179
        %v3212 = vsel %vm3051, 0.0, %v3019
        %v3213 = vsel %vm3052, 0.0, %v3020
        %v3214 = vsel %vm3053, 0.0, %v3021
        %v3215 = vsel %vm3054, 0.0, %v3022
        %v3216 = vsel %vm3055, 0.0, %v3023
        %v3217 = vsel %vm3056, 0.0, %v3024
        %v3218 = vsel %vm3057, 0.0, %v3025
        %v3219 = vsel %vm3058, 0.0, %v3026
        %v3220 = vsel %vm3059, 0.0, %v3027
        %v3221 = vsel %vm3060, 0.0, %v3028
        %v3222 = vsel %vm3061, 0.0, %v3029
        %v3223 = vsel %vm3062, 0.0, %v3030
        %v3224 = vsel %vm3063, 0.0, %v3031
        %v3225 = vsel %vm3064, 0.0, %v3032
        %v3226 = vsel %vm3065, 0.0, %v3033
        %v3227 = vsel %vm3066, 0.0, %v3034
        %v3228 = vsel %vm3067, 0.0, %v3035
        %v3229 = vsel %vm3068, 0.0, %v3036
        %v3230 = vsel %vm3069, 0.0, %v3037
        %v3231 = vsel %vm3070, 0.0, %v3038
        %v3232 = vsel %vm3071, 0.0, %v3039
        %v3233 = vsel %vm3072, 0.0, %v3040
        %v3234 = vsel %vm3073, 0.0, %v3041
        %v3235 = vsel %vm3074, 0.0, %v3042
        %v3236 = vsel %vm3075, 0.0, %v3043
        %v3237 = vsel %vm3076, 0.0, %v3044
        %v3238 = vsel %vm3077, 0.0, %v3045
        %v3239 = vsel %vm3078, 0.0, %v3046
        %v3240 = vsel %vm3079, 0.0, %v3047
        %v3241 = vsel %vm3080, 0.0, %v3048
        %v3242 = vsel %vm3081, 0.0, %v3049
        %v3243 = vsel %vm3082, 0.0, %v3050
        %v3244 = vmul.f32 %v2858, 0.99004984
        %v3245 = vmul.f32 %v2859, 0.99004984
        %v3246 = vmul.f32 %v2860, 0.99004984
        %v3247 = vmul.f32 %v2861, 0.99004984
        %v3248 = vmul.f32 %v2862, 0.99004984
        %v3249 = vmul.f32 %v2863, 0.99004984
        %v3250 = vmul.f32 %v2864, 0.99004984
        %v3251 = vmul.f32 %v2865, 0.99004984
        %v3252 = vmul.f32 %v2866, 0.99004984
        %v3253 = vmul.f32 %v2867, 0.99004984
        %v3254 = vmul.f32 %v2868, 0.99004984
        %v3255 = vmul.f32 %v2869, 0.99004984
        %v3256 = vmul.f32 %v2870, 0.99004984
        %v3257 = vmul.f32 %v2871, 0.99004984
        %v3258 = vmul.f32 %v2872, 0.99004984
        %v3259 = vmul.f32 %v2873, 0.99004984
        %v3260 = vmul.f32 %v2874, 0.99004984
        %v3261 = vmul.f32 %v2875, 0.99004984
        %v3262 = vmul.f32 %v2876, 0.99004984
        %v3263 = vmul.f32 %v2877, 0.99004984
        %v3264 = vmul.f32 %v2878, 0.99004984
        %v3265 = vmul.f32 %v2879, 0.99004984
        %v3266 = vmul.f32 %v2880, 0.99004984
        %v3267 = vmul.f32 %v2881, 0.99004984
        %v3268 = vmul.f32 %v2882, 0.99004984
        %v3269 = vmul.f32 %v2883, 0.99004984
        %v3270 = vmul.f32 %v2884, 0.99004984
        %v3271 = vmul.f32 %v2885, 0.99004984
        %v3272 = vmul.f32 %v2886, 0.99004984
        %v3273 = vmul.f32 %v2887, 0.99004984
        %v3274 = vmul.f32 %v2888, 0.99004984
        %v3275 = vmul.f32 %v2889, 0.99004984
        %v3276 = vsel %vm3051, 1.0, %v3244
        %v3277 = vsel %vm3052, 1.0, %v3245
        %v3278 = vsel %vm3053, 1.0, %v3246
        %v3279 = vsel %vm3054, 1.0, %v3247
        %v3280 = vsel %vm3055, 1.0, %v3248
        %v3281 = vsel %vm3056, 1.0, %v3249
        %v3282 = vsel %vm3057, 1.0, %v3250
        %v3283 = vsel %vm3058, 1.0, %v3251
        %v3284 = vsel %vm3059, 1.0, %v3252
        %v3285 = vsel %vm3060, 1.0, %v3253
        %v3286 = vsel %vm3061, 1.0, %v3254
        %v3287 = vsel %vm3062, 1.0, %v3255
        %v3288 = vsel %vm3063, 1.0, %v3256
        %v3289 = vsel %vm3064, 1.0, %v3257
        %v3290 = vsel %vm3065, 1.0, %v3258
        %v3291 = vsel %vm3066, 1.0, %v3259
        %v3292 = vsel %vm3067, 1.0, %v3260
        %v3293 = vsel %vm3068, 1.0, %v3261
        %v3294 = vsel %vm3069, 1.0, %v3262
        %v3295 = vsel %vm3070, 1.0, %v3263
        %v3296 = vsel %vm3071, 1.0, %v3264
        %v3297 = vsel %vm3072, 1.0, %v3265
        %v3298 = vsel %vm3073, 1.0, %v3266
        %v3299 = vsel %vm3074, 1.0, %v3267
        %v3300 = vsel %vm3075, 1.0, %v3268
        %v3301 = vsel %vm3076, 1.0, %v3269
        %v3302 = vsel %vm3077, 1.0, %v3270
        %v3303 = vsel %vm3078, 1.0, %v3271
        %v3304 = vsel %vm3079, 1.0, %v3272
        %v3305 = vsel %vm3080, 1.0, %v3273
        %v3306 = vsel %vm3081, 1.0, %v3274
        %v3307 = vsel %vm3082, 1.0, %v3275
        %s3308 = scalar_lea.vmem %s406, 1536 [#allocation2]
        %v3309 = vld [vmem:[%s3308] sm:$0xff]
        %v3310 = vld [vmem:[%s3308 + $0x8] sm:$0xff]
        %v3311 = vld [vmem:[%s3308 + $0x10] sm:$0xff]
        %v3312 = vld [vmem:[%s3308 + $0x18] sm:$0xff]
        %v3313 = vld [vmem:[%s3308 + $0x20] sm:$0xff]
        %v3314 = vld [vmem:[%s3308 + $0x28] sm:$0xff]
        %v3315 = vld [vmem:[%s3308 + $0x30] sm:$0xff]
        %v3316 = vld [vmem:[%s3308 + $0x38] sm:$0xff]
        %v3317 = vld [vmem:[%s3308 + $0x40] sm:$0xff]
        %v3318 = vld [vmem:[%s3308 + $0x48] sm:$0xff]
        %v3319 = vld [vmem:[%s3308 + $0x50] sm:$0xff]
        %v3320 = vld [vmem:[%s3308 + $0x58] sm:$0xff]
        %v3321 = vld [vmem:[%s3308 + $0x60] sm:$0xff]
        %v3322 = vld [vmem:[%s3308 + $0x68] sm:$0xff]
        %v3323 = vld [vmem:[%s3308 + $0x70] sm:$0xff]
        %v3324 = vld [vmem:[%s3308 + $0x78] sm:$0xff]
        %v3325 = vld [vmem:[%s3308 + $0x80] sm:$0xff]
        %v3326 = vld [vmem:[%s3308 + $0x88] sm:$0xff]
        %v3327 = vld [vmem:[%s3308 + $0x90] sm:$0xff]
        %v3328 = vld [vmem:[%s3308 + $0x98] sm:$0xff]
        %v3329 = vld [vmem:[%s3308 + $0xa0] sm:$0xff]
        %v3330 = vld [vmem:[%s3308 + $0xa8] sm:$0xff]
        %v3331 = vld [vmem:[%s3308 + $0xb0] sm:$0xff]
        %v3332 = vld [vmem:[%s3308 + $0xb8] sm:$0xff]
        %v3333 = vld [vmem:[%s3308 + $0xc0] sm:$0xff]
        %v3334 = vld [vmem:[%s3308 + $0xc8] sm:$0xff]
        %v3335 = vld [vmem:[%s3308 + $0xd0] sm:$0xff]
        %v3336 = vld [vmem:[%s3308 + $0xd8] sm:$0xff]
        %v3337 = vld [vmem:[%s3308 + $0xe0] sm:$0xff]
        %v3338 = vld [vmem:[%s3308 + $0xe8] sm:$0xff]
        %v3339 = vld [vmem:[%s3308 + $0xf0] sm:$0xff]
        %v3340 = vld [vmem:[%s3308 + $0xf8] sm:$0xff]
        %v3341 = vmul.f32 %v3212, 0.9990005
        %v3342 = vmul.f32 %v3213, 0.9990005
        %v3343 = vmul.f32 %v3214, 0.9990005
        %v3344 = vmul.f32 %v3215, 0.9990005
        %v3345 = vmul.f32 %v3216, 0.9990005
        %v3346 = vmul.f32 %v3217, 0.9990005
        %v3347 = vmul.f32 %v3218, 0.9990005
        %v3348 = vmul.f32 %v3219, 0.9990005
        %v3349 = vmul.f32 %v3220, 0.9990005
        %v3350 = vmul.f32 %v3221, 0.9990005
        %v3351 = vmul.f32 %v3222, 0.9990005
        %v3352 = vmul.f32 %v3223, 0.9990005
        %v3353 = vmul.f32 %v3224, 0.9990005
        %v3354 = vmul.f32 %v3225, 0.9990005
        %v3355 = vmul.f32 %v3226, 0.9990005
        %v3356 = vmul.f32 %v3227, 0.9990005
        %v3357 = vmul.f32 %v3228, 0.9990005
        %v3358 = vmul.f32 %v3229, 0.9990005
        %v3359 = vmul.f32 %v3230, 0.9990005
        %v3360 = vmul.f32 %v3231, 0.9990005
        %v3361 = vmul.f32 %v3232, 0.9990005
        %v3362 = vmul.f32 %v3233, 0.9990005
        %v3363 = vmul.f32 %v3234, 0.9990005
        %v3364 = vmul.f32 %v3235, 0.9990005
        %v3365 = vmul.f32 %v3236, 0.9990005
        %v3366 = vmul.f32 %v3237, 0.9990005
        %v3367 = vmul.f32 %v3238, 0.9990005
        %v3368 = vmul.f32 %v3239, 0.9990005
        %v3369 = vmul.f32 %v3240, 0.9990005
        %v3370 = vmul.f32 %v3241, 0.9990005
        %v3371 = vmul.f32 %v3242, 0.9990005
        %v3372 = vmul.f32 %v3243, 0.9990005
        %vm3373 = vcmp.gt.f32.partialorder %v3180, 0.0
        %vm3374 = vcmp.gt.f32.partialorder %v3181, 0.0
        %vm3375 = vcmp.gt.f32.partialorder %v3182, 0.0
        %vm3376 = vcmp.gt.f32.partialorder %v3183, 0.0
        %vm3377 = vcmp.gt.f32.partialorder %v3184, 0.0
        %vm3378 = vcmp.gt.f32.partialorder %v3185, 0.0
        %vm3379 = vcmp.gt.f32.partialorder %v3186, 0.0
        %vm3380 = vcmp.gt.f32.partialorder %v3187, 0.0
        %vm3381 = vcmp.gt.f32.partialorder %v3188, 0.0
        %vm3382 = vcmp.gt.f32.partialorder %v3189, 0.0
        %vm3383 = vcmp.gt.f32.partialorder %v3190, 0.0
        %vm3384 = vcmp.gt.f32.partialorder %v3191, 0.0
        %vm3385 = vcmp.gt.f32.partialorder %v3192, 0.0
        %vm3386 = vcmp.gt.f32.partialorder %v3193, 0.0
        %vm3387 = vcmp.gt.f32.partialorder %v3194, 0.0
        %vm3388 = vcmp.gt.f32.partialorder %v3195, 0.0
        %vm3389 = vcmp.gt.f32.partialorder %v3196, 0.0
        %vm3390 = vcmp.gt.f32.partialorder %v3197, 0.0
        %vm3391 = vcmp.gt.f32.partialorder %v3198, 0.0
        %vm3392 = vcmp.gt.f32.partialorder %v3199, 0.0
        %vm3393 = vcmp.gt.f32.partialorder %v3200, 0.0
        %vm3394 = vcmp.gt.f32.partialorder %v3201, 0.0
        %vm3395 = vcmp.gt.f32.partialorder %v3202, 0.0
        %vm3396 = vcmp.gt.f32.partialorder %v3203, 0.0
        %vm3397 = vcmp.gt.f32.partialorder %v3204, 0.0
        %vm3398 = vcmp.gt.f32.partialorder %v3205, 0.0
        %vm3399 = vcmp.gt.f32.partialorder %v3206, 0.0
        %vm3400 = vcmp.gt.f32.partialorder %v3207, 0.0
        %vm3401 = vcmp.gt.f32.partialorder %v3208, 0.0
        %vm3402 = vcmp.gt.f32.partialorder %v3209, 0.0
        %vm3403 = vcmp.gt.f32.partialorder %v3210, 0.0
        %vm3404 = vcmp.gt.f32.partialorder %v3211, 0.0
        %v3405 = vsel %vm3373, 0.0, %v3309
        %v3406 = vsel %vm3374, 0.0, %v3310
        %v3407 = vsel %vm3375, 0.0, %v3311
        %v3408 = vsel %vm3376, 0.0, %v3312
        %v3409 = vsel %vm3377, 0.0, %v3313
        %v3410 = vsel %vm3378, 0.0, %v3314
        %v3411 = vsel %vm3379, 0.0, %v3315
        %v3412 = vsel %vm3380, 0.0, %v3316
        %v3413 = vsel %vm3381, 0.0, %v3317
        %v3414 = vsel %vm3382, 0.0, %v3318
        %v3415 = vsel %vm3383, 0.0, %v3319
        %v3416 = vsel %vm3384, 0.0, %v3320
        %v3417 = vsel %vm3385, 0.0, %v3321
        %v3418 = vsel %vm3386, 0.0, %v3322
        %v3419 = vsel %vm3387, 0.0, %v3323
        %v3420 = vsel %vm3388, 0.0, %v3324
        %v3421 = vsel %vm3389, 0.0, %v3325
        %v3422 = vsel %vm3390, 0.0, %v3326
        %v3423 = vsel %vm3391, 0.0, %v3327
        %v3424 = vsel %vm3392, 0.0, %v3328
        %v3425 = vsel %vm3393, 0.0, %v3329
        %v3426 = vsel %vm3394, 0.0, %v3330
        %v3427 = vsel %vm3395, 0.0, %v3331
        %v3428 = vsel %vm3396, 0.0, %v3332
        %v3429 = vsel %vm3397, 0.0, %v3333
        %v3430 = vsel %vm3398, 0.0, %v3334
        %v3431 = vsel %vm3399, 0.0, %v3335
        %v3432 = vsel %vm3400, 0.0, %v3336
        %v3433 = vsel %vm3401, 0.0, %v3337
        %v3434 = vsel %vm3402, 0.0, %v3338
        %v3435 = vsel %vm3403, 0.0, %v3339
        %v3436 = vsel %vm3404, 0.0, %v3340
        %v3437 = vadd.f32 %v3341, %v3405
        %v3438 = vadd.f32 %v3342, %v3406
        %v3439 = vadd.f32 %v3343, %v3407
        %v3440 = vadd.f32 %v3344, %v3408
        %v3441 = vadd.f32 %v3345, %v3409
        %v3442 = vadd.f32 %v3346, %v3410
        %v3443 = vadd.f32 %v3347, %v3411
        %v3444 = vadd.f32 %v3348, %v3412
        %v3445 = vadd.f32 %v3349, %v3413
        %v3446 = vadd.f32 %v3350, %v3414
        %v3447 = vadd.f32 %v3351, %v3415
        %v3448 = vadd.f32 %v3352, %v3416
        %v3449 = vadd.f32 %v3353, %v3417
        %v3450 = vadd.f32 %v3354, %v3418
        %v3451 = vadd.f32 %v3355, %v3419
        %v3452 = vadd.f32 %v3356, %v3420
        %v3453 = vadd.f32 %v3357, %v3421
        %v3454 = vadd.f32 %v3358, %v3422
        %v3455 = vadd.f32 %v3359, %v3423
        %v3456 = vadd.f32 %v3360, %v3424
        %v3457 = vadd.f32 %v3361, %v3425
        %v3458 = vadd.f32 %v3362, %v3426
        %v3459 = vadd.f32 %v3363, %v3427
        %v3460 = vadd.f32 %v3364, %v3428
        %v3461 = vadd.f32 %v3365, %v3429
        %v3462 = vadd.f32 %v3366, %v3430
        %v3463 = vadd.f32 %v3367, %v3431
        %v3464 = vadd.f32 %v3368, %v3432
        %v3465 = vadd.f32 %v3369, %v3433
        %v3466 = vadd.f32 %v3370, %v3434
        %v3467 = vadd.f32 %v3371, %v3435
        %v3468 = vadd.f32 %v3372, %v3436
        %vm3469 = vcmp.ge.f32.partialorder %v3437, 40.0
        %vm3470 = vcmp.ge.f32.partialorder %v3438, 40.0
        %vm3471 = vcmp.ge.f32.partialorder %v3439, 40.0
        %vm3472 = vcmp.ge.f32.partialorder %v3440, 40.0
        %vm3473 = vcmp.ge.f32.partialorder %v3441, 40.0
        %vm3474 = vcmp.ge.f32.partialorder %v3442, 40.0
        %vm3475 = vcmp.ge.f32.partialorder %v3443, 40.0
        %vm3476 = vcmp.ge.f32.partialorder %v3444, 40.0
        %vm3477 = vcmp.ge.f32.partialorder %v3445, 40.0
        %vm3478 = vcmp.ge.f32.partialorder %v3446, 40.0
        %vm3479 = vcmp.ge.f32.partialorder %v3447, 40.0
        %vm3480 = vcmp.ge.f32.partialorder %v3448, 40.0
        %vm3481 = vcmp.ge.f32.partialorder %v3449, 40.0
        %vm3482 = vcmp.ge.f32.partialorder %v3450, 40.0
        %vm3483 = vcmp.ge.f32.partialorder %v3451, 40.0
        %vm3484 = vcmp.ge.f32.partialorder %v3452, 40.0
        %vm3485 = vcmp.ge.f32.partialorder %v3453, 40.0
        %vm3486 = vcmp.ge.f32.partialorder %v3454, 40.0
        %vm3487 = vcmp.ge.f32.partialorder %v3455, 40.0
        %vm3488 = vcmp.ge.f32.partialorder %v3456, 40.0
        %vm3489 = vcmp.ge.f32.partialorder %v3457, 40.0
        %vm3490 = vcmp.ge.f32.partialorder %v3458, 40.0
        %vm3491 = vcmp.ge.f32.partialorder %v3459, 40.0
        %vm3492 = vcmp.ge.f32.partialorder %v3460, 40.0
        %vm3493 = vcmp.ge.f32.partialorder %v3461, 40.0
        %vm3494 = vcmp.ge.f32.partialorder %v3462, 40.0
        %vm3495 = vcmp.ge.f32.partialorder %v3463, 40.0
        %vm3496 = vcmp.ge.f32.partialorder %v3464, 40.0
        %vm3497 = vcmp.ge.f32.partialorder %v3465, 40.0
        %vm3498 = vcmp.ge.f32.partialorder %v3466, 40.0
        %vm3499 = vcmp.ge.f32.partialorder %v3467, 40.0
        %vm3500 = vcmp.ge.f32.partialorder %v3468, 40.0
        %vm3501 = vmpackc.low %vm3471, %vm3469
        %vm3502 = vmpackc.low %vm3475, %vm3473
        %v3503 = vsel %vm3501, 16711935, 0
        %v3504 = vsel %vm3502, 16711935, 0
        %v3505 = vpack.c.b8 %v3504, %v3503
        %vm3506 = vnez %v3505
        %vm3507 = vmpackc.low %vm3472, %vm3470
        %vm3508 = vmpackc.low %vm3476, %vm3474
        %v3509 = vsel %vm3507, 16711935, 0
        %v3510 = vsel %vm3508, 16711935, 0
        %v3511 = vpack.c.b8 %v3510, %v3509
        %vm3512 = vnez %v3511
        %vm3513 = vmpackc.low %vm3479, %vm3477
        %vm3514 = vmpackc.low %vm3483, %vm3481
        %v3515 = vsel %vm3513, 16711935, 0
        %v3516 = vsel %vm3514, 16711935, 0
        %v3517 = vpack.c.b8 %v3516, %v3515
        %vm3518 = vnez %v3517
        %vm3519 = vmpackc.low %vm3480, %vm3478
        %vm3520 = vmpackc.low %vm3484, %vm3482
        %v3521 = vsel %vm3519, 16711935, 0
        %v3522 = vsel %vm3520, 16711935, 0
        %v3523 = vpack.c.b8 %v3522, %v3521
        %vm3524 = vnez %v3523
        %vm3525 = vmpackc.low %vm3487, %vm3485
        %vm3526 = vmpackc.low %vm3491, %vm3489
        %v3527 = vsel %vm3525, 16711935, 0
        %v3528 = vsel %vm3526, 16711935, 0
        %v3529 = vpack.c.b8 %v3528, %v3527
        %vm3530 = vnez %v3529
        %vm3531 = vmpackc.low %vm3488, %vm3486
        %vm3532 = vmpackc.low %vm3492, %vm3490
        %v3533 = vsel %vm3531, 16711935, 0
        %v3534 = vsel %vm3532, 16711935, 0
        %v3535 = vpack.c.b8 %v3534, %v3533
        %vm3536 = vnez %v3535
        %vm3537 = vmpackc.low %vm3495, %vm3493
        %vm3538 = vmpackc.low %vm3499, %vm3497
        %v3539 = vsel %vm3537, 16711935, 0
        %v3540 = vsel %vm3538, 16711935, 0
        %v3541 = vpack.c.b8 %v3540, %v3539
        %vm3542 = vnez %v3541
        %vm3543 = vmpackc.low %vm3496, %vm3494
        %vm3544 = vmpackc.low %vm3500, %vm3498
        %v3545 = vsel %vm3543, 16711935, 0
        %v3546 = vsel %vm3544, 16711935, 0
        %v3547 = vpack.c.b8 %v3546, %v3545
        %vm3548 = vnez %v3547
        %v3549 = vsel %vm3506, 16843009, 0
        %v3550 = vsel %vm3512, 16843009, 0
        %v3551 = vsel %vm3518, 16843009, 0
        %v3552 = vsel %vm3524, 16843009, 0
        %v3553 = vsel %vm3530, 16843009, 0
        %v3554 = vsel %vm3536, 16843009, 0
        %v3555 = vsel %vm3542, 16843009, 0
        %v3556 = vsel %vm3548, 16843009, 0
        %s3557 = scalar_lea.vmem %s483, 384 [#allocation11]
        %3558 = vst [vmem:[%s3557] sm:$0xff] %v3549
        %3559 = vst [vmem:[%s3557 + $0x8] sm:$0xff] %v3550
        %3560 = vst [vmem:[%s3557 + $0x10] sm:$0xff] %v3551
        %3561 = vst [vmem:[%s3557 + $0x18] sm:$0xff] %v3552
        %3562 = vst [vmem:[%s3557 + $0x20] sm:$0xff] %v3553
        %3563 = vst [vmem:[%s3557 + $0x28] sm:$0xff] %v3554
        %3564 = vst [vmem:[%s3557 + $0x30] sm:$0xff] %v3555
        %3565 = vst [vmem:[%s3557 + $0x38] sm:$0xff] %v3556
        %v3566 = vsub.f32 %v3180, 0.1
        %v3567 = vsub.f32 %v3181, 0.1
        %v3568 = vsub.f32 %v3182, 0.1
        %v3569 = vsub.f32 %v3183, 0.1
        %v3570 = vsub.f32 %v3184, 0.1
        %v3571 = vsub.f32 %v3185, 0.1
        %v3572 = vsub.f32 %v3186, 0.1
        %v3573 = vsub.f32 %v3187, 0.1
        %v3574 = vsub.f32 %v3188, 0.1
        %v3575 = vsub.f32 %v3189, 0.1
        %v3576 = vsub.f32 %v3190, 0.1
        %v3577 = vsub.f32 %v3191, 0.1
        %v3578 = vsub.f32 %v3192, 0.1
        %v3579 = vsub.f32 %v3193, 0.1
        %v3580 = vsub.f32 %v3194, 0.1
        %v3581 = vsub.f32 %v3195, 0.1
        %v3582 = vsub.f32 %v3196, 0.1
        %v3583 = vsub.f32 %v3197, 0.1
        %v3584 = vsub.f32 %v3198, 0.1
        %v3585 = vsub.f32 %v3199, 0.1
        %v3586 = vsub.f32 %v3200, 0.1
        %v3587 = vsub.f32 %v3201, 0.1
        %v3588 = vsub.f32 %v3202, 0.1
        %v3589 = vsub.f32 %v3203, 0.1
        %v3590 = vsub.f32 %v3204, 0.1
        %v3591 = vsub.f32 %v3205, 0.1
        %v3592 = vsub.f32 %v3206, 0.1
        %v3593 = vsub.f32 %v3207, 0.1
        %v3594 = vsub.f32 %v3208, 0.1
        %v3595 = vsub.f32 %v3209, 0.1
        %v3596 = vsub.f32 %v3210, 0.1
        %v3597 = vsub.f32 %v3211, 0.1
        %v3598 = vsel %vm3469, 5.0, %v3566
        %v3599 = vsel %vm3470, 5.0, %v3567
        %v3600 = vsel %vm3471, 5.0, %v3568
        %v3601 = vsel %vm3472, 5.0, %v3569
        %v3602 = vsel %vm3473, 5.0, %v3570
        %v3603 = vsel %vm3474, 5.0, %v3571
        %v3604 = vsel %vm3475, 5.0, %v3572
        %v3605 = vsel %vm3476, 5.0, %v3573
        %v3606 = vsel %vm3477, 5.0, %v3574
        %v3607 = vsel %vm3478, 5.0, %v3575
        %v3608 = vsel %vm3479, 5.0, %v3576
        %v3609 = vsel %vm3480, 5.0, %v3577
        %v3610 = vsel %vm3481, 5.0, %v3578
        %v3611 = vsel %vm3482, 5.0, %v3579
        %v3612 = vsel %vm3483, 5.0, %v3580
        %v3613 = vsel %vm3484, 5.0, %v3581
        %v3614 = vsel %vm3485, 5.0, %v3582
        %v3615 = vsel %vm3486, 5.0, %v3583
        %v3616 = vsel %vm3487, 5.0, %v3584
        %v3617 = vsel %vm3488, 5.0, %v3585
        %v3618 = vsel %vm3489, 5.0, %v3586
        %v3619 = vsel %vm3490, 5.0, %v3587
        %v3620 = vsel %vm3491, 5.0, %v3588
        %v3621 = vsel %vm3492, 5.0, %v3589
        %v3622 = vsel %vm3493, 5.0, %v3590
        %v3623 = vsel %vm3494, 5.0, %v3591
        %v3624 = vsel %vm3495, 5.0, %v3592
        %v3625 = vsel %vm3496, 5.0, %v3593
        %v3626 = vsel %vm3497, 5.0, %v3594
        %v3627 = vsel %vm3498, 5.0, %v3595
        %v3628 = vsel %vm3499, 5.0, %v3596
        %v3629 = vsel %vm3500, 5.0, %v3597
        %v3630 = vsel %vm3469, 0.0, %v3437
        %v3631 = vsel %vm3470, 0.0, %v3438
        %v3632 = vsel %vm3471, 0.0, %v3439
        %v3633 = vsel %vm3472, 0.0, %v3440
        %v3634 = vsel %vm3473, 0.0, %v3441
        %v3635 = vsel %vm3474, 0.0, %v3442
        %v3636 = vsel %vm3475, 0.0, %v3443
        %v3637 = vsel %vm3476, 0.0, %v3444
        %v3638 = vsel %vm3477, 0.0, %v3445
        %v3639 = vsel %vm3478, 0.0, %v3446
        %v3640 = vsel %vm3479, 0.0, %v3447
        %v3641 = vsel %vm3480, 0.0, %v3448
        %v3642 = vsel %vm3481, 0.0, %v3449
        %v3643 = vsel %vm3482, 0.0, %v3450
        %v3644 = vsel %vm3483, 0.0, %v3451
        %v3645 = vsel %vm3484, 0.0, %v3452
        %v3646 = vsel %vm3485, 0.0, %v3453
        %v3647 = vsel %vm3486, 0.0, %v3454
        %v3648 = vsel %vm3487, 0.0, %v3455
        %v3649 = vsel %vm3488, 0.0, %v3456
        %v3650 = vsel %vm3489, 0.0, %v3457
        %v3651 = vsel %vm3490, 0.0, %v3458
        %v3652 = vsel %vm3491, 0.0, %v3459
        %v3653 = vsel %vm3492, 0.0, %v3460
        %v3654 = vsel %vm3493, 0.0, %v3461
        %v3655 = vsel %vm3494, 0.0, %v3462
        %v3656 = vsel %vm3495, 0.0, %v3463
        %v3657 = vsel %vm3496, 0.0, %v3464
        %v3658 = vsel %vm3497, 0.0, %v3465
        %v3659 = vsel %vm3498, 0.0, %v3466
        %v3660 = vsel %vm3499, 0.0, %v3467
        %v3661 = vsel %vm3500, 0.0, %v3468
        %v3662 = vmul.f32 %v3276, 0.99004984
        %v3663 = vmul.f32 %v3277, 0.99004984
        %v3664 = vmul.f32 %v3278, 0.99004984
        %v3665 = vmul.f32 %v3279, 0.99004984
        %v3666 = vmul.f32 %v3280, 0.99004984
        %v3667 = vmul.f32 %v3281, 0.99004984
        %v3668 = vmul.f32 %v3282, 0.99004984
        %v3669 = vmul.f32 %v3283, 0.99004984
        %v3670 = vmul.f32 %v3284, 0.99004984
        %v3671 = vmul.f32 %v3285, 0.99004984
        %v3672 = vmul.f32 %v3286, 0.99004984
        %v3673 = vmul.f32 %v3287, 0.99004984
        %v3674 = vmul.f32 %v3288, 0.99004984
        %v3675 = vmul.f32 %v3289, 0.99004984
        %v3676 = vmul.f32 %v3290, 0.99004984
        %v3677 = vmul.f32 %v3291, 0.99004984
        %v3678 = vmul.f32 %v3292, 0.99004984
        %v3679 = vmul.f32 %v3293, 0.99004984
        %v3680 = vmul.f32 %v3294, 0.99004984
        %v3681 = vmul.f32 %v3295, 0.99004984
        %v3682 = vmul.f32 %v3296, 0.99004984
        %v3683 = vmul.f32 %v3297, 0.99004984
        %v3684 = vmul.f32 %v3298, 0.99004984
        %v3685 = vmul.f32 %v3299, 0.99004984
        %v3686 = vmul.f32 %v3300, 0.99004984
        %v3687 = vmul.f32 %v3301, 0.99004984
        %v3688 = vmul.f32 %v3302, 0.99004984
        %v3689 = vmul.f32 %v3303, 0.99004984
        %v3690 = vmul.f32 %v3304, 0.99004984
        %v3691 = vmul.f32 %v3305, 0.99004984
        %v3692 = vmul.f32 %v3306, 0.99004984
        %v3693 = vmul.f32 %v3307, 0.99004984
        %v3694 = vsel %vm3469, 1.0, %v3662
        %v3695 = vsel %vm3470, 1.0, %v3663
        %v3696 = vsel %vm3471, 1.0, %v3664
        %v3697 = vsel %vm3472, 1.0, %v3665
        %v3698 = vsel %vm3473, 1.0, %v3666
        %v3699 = vsel %vm3474, 1.0, %v3667
        %v3700 = vsel %vm3475, 1.0, %v3668
        %v3701 = vsel %vm3476, 1.0, %v3669
        %v3702 = vsel %vm3477, 1.0, %v3670
        %v3703 = vsel %vm3478, 1.0, %v3671
        %v3704 = vsel %vm3479, 1.0, %v3672
        %v3705 = vsel %vm3480, 1.0, %v3673
        %v3706 = vsel %vm3481, 1.0, %v3674
        %v3707 = vsel %vm3482, 1.0, %v3675
        %v3708 = vsel %vm3483, 1.0, %v3676
        %v3709 = vsel %vm3484, 1.0, %v3677
        %v3710 = vsel %vm3485, 1.0, %v3678
        %v3711 = vsel %vm3486, 1.0, %v3679
        %v3712 = vsel %vm3487, 1.0, %v3680
        %v3713 = vsel %vm3488, 1.0, %v3681
        %v3714 = vsel %vm3489, 1.0, %v3682
        %v3715 = vsel %vm3490, 1.0, %v3683
        %v3716 = vsel %vm3491, 1.0, %v3684
        %v3717 = vsel %vm3492, 1.0, %v3685
        %v3718 = vsel %vm3493, 1.0, %v3686
        %v3719 = vsel %vm3494, 1.0, %v3687
        %v3720 = vsel %vm3495, 1.0, %v3688
        %v3721 = vsel %vm3496, 1.0, %v3689
        %v3722 = vsel %vm3497, 1.0, %v3690
        %v3723 = vsel %vm3498, 1.0, %v3691
        %v3724 = vsel %vm3499, 1.0, %v3692
        %v3725 = vsel %vm3500, 1.0, %v3693
        %s3726 = scalar_lea.vmem %s406, 1792 [#allocation2]
        %v3727 = vld [vmem:[%s3726] sm:$0xff]
        %v3728 = vld [vmem:[%s3726 + $0x8] sm:$0xff]
        %v3729 = vld [vmem:[%s3726 + $0x10] sm:$0xff]
        %v3730 = vld [vmem:[%s3726 + $0x18] sm:$0xff]
        %v3731 = vld [vmem:[%s3726 + $0x20] sm:$0xff]
        %v3732 = vld [vmem:[%s3726 + $0x28] sm:$0xff]
        %v3733 = vld [vmem:[%s3726 + $0x30] sm:$0xff]
        %v3734 = vld [vmem:[%s3726 + $0x38] sm:$0xff]
        %v3735 = vld [vmem:[%s3726 + $0x40] sm:$0xff]
        %v3736 = vld [vmem:[%s3726 + $0x48] sm:$0xff]
        %v3737 = vld [vmem:[%s3726 + $0x50] sm:$0xff]
        %v3738 = vld [vmem:[%s3726 + $0x58] sm:$0xff]
        %v3739 = vld [vmem:[%s3726 + $0x60] sm:$0xff]
        %v3740 = vld [vmem:[%s3726 + $0x68] sm:$0xff]
        %v3741 = vld [vmem:[%s3726 + $0x70] sm:$0xff]
        %v3742 = vld [vmem:[%s3726 + $0x78] sm:$0xff]
        %v3743 = vld [vmem:[%s3726 + $0x80] sm:$0xff]
        %v3744 = vld [vmem:[%s3726 + $0x88] sm:$0xff]
        %v3745 = vld [vmem:[%s3726 + $0x90] sm:$0xff]
        %v3746 = vld [vmem:[%s3726 + $0x98] sm:$0xff]
        %v3747 = vld [vmem:[%s3726 + $0xa0] sm:$0xff]
        %v3748 = vld [vmem:[%s3726 + $0xa8] sm:$0xff]
        %v3749 = vld [vmem:[%s3726 + $0xb0] sm:$0xff]
        %v3750 = vld [vmem:[%s3726 + $0xb8] sm:$0xff]
        %v3751 = vld [vmem:[%s3726 + $0xc0] sm:$0xff]
        %v3752 = vld [vmem:[%s3726 + $0xc8] sm:$0xff]
        %v3753 = vld [vmem:[%s3726 + $0xd0] sm:$0xff]
        %v3754 = vld [vmem:[%s3726 + $0xd8] sm:$0xff]
        %v3755 = vld [vmem:[%s3726 + $0xe0] sm:$0xff]
        %v3756 = vld [vmem:[%s3726 + $0xe8] sm:$0xff]
        %v3757 = vld [vmem:[%s3726 + $0xf0] sm:$0xff]
        %v3758 = vld [vmem:[%s3726 + $0xf8] sm:$0xff]
        %v3759 = vmul.f32 %v3630, 0.9990005
        %v3760 = vmul.f32 %v3631, 0.9990005
        %v3761 = vmul.f32 %v3632, 0.9990005
        %v3762 = vmul.f32 %v3633, 0.9990005
        %v3763 = vmul.f32 %v3634, 0.9990005
        %v3764 = vmul.f32 %v3635, 0.9990005
        %v3765 = vmul.f32 %v3636, 0.9990005
        %v3766 = vmul.f32 %v3637, 0.9990005
        %v3767 = vmul.f32 %v3638, 0.9990005
        %v3768 = vmul.f32 %v3639, 0.9990005
        %v3769 = vmul.f32 %v3640, 0.9990005
        %v3770 = vmul.f32 %v3641, 0.9990005
        %v3771 = vmul.f32 %v3642, 0.9990005
        %v3772 = vmul.f32 %v3643, 0.9990005
        %v3773 = vmul.f32 %v3644, 0.9990005
        %v3774 = vmul.f32 %v3645, 0.9990005
        %v3775 = vmul.f32 %v3646, 0.9990005
        %v3776 = vmul.f32 %v3647, 0.9990005
        %v3777 = vmul.f32 %v3648, 0.9990005
        %v3778 = vmul.f32 %v3649, 0.9990005
        %v3779 = vmul.f32 %v3650, 0.9990005
        %v3780 = vmul.f32 %v3651, 0.9990005
        %v3781 = vmul.f32 %v3652, 0.9990005
        %v3782 = vmul.f32 %v3653, 0.9990005
        %v3783 = vmul.f32 %v3654, 0.9990005
        %v3784 = vmul.f32 %v3655, 0.9990005
        %v3785 = vmul.f32 %v3656, 0.9990005
        %v3786 = vmul.f32 %v3657, 0.9990005
        %v3787 = vmul.f32 %v3658, 0.9990005
        %v3788 = vmul.f32 %v3659, 0.9990005
        %v3789 = vmul.f32 %v3660, 0.9990005
        %v3790 = vmul.f32 %v3661, 0.9990005
        %vm3791 = vcmp.gt.f32.partialorder %v3598, 0.0
        %vm3792 = vcmp.gt.f32.partialorder %v3599, 0.0
        %vm3793 = vcmp.gt.f32.partialorder %v3600, 0.0
        %vm3794 = vcmp.gt.f32.partialorder %v3601, 0.0
        %vm3795 = vcmp.gt.f32.partialorder %v3602, 0.0
        %vm3796 = vcmp.gt.f32.partialorder %v3603, 0.0
        %vm3797 = vcmp.gt.f32.partialorder %v3604, 0.0
        %vm3798 = vcmp.gt.f32.partialorder %v3605, 0.0
        %vm3799 = vcmp.gt.f32.partialorder %v3606, 0.0
        %vm3800 = vcmp.gt.f32.partialorder %v3607, 0.0
        %vm3801 = vcmp.gt.f32.partialorder %v3608, 0.0
        %vm3802 = vcmp.gt.f32.partialorder %v3609, 0.0
        %vm3803 = vcmp.gt.f32.partialorder %v3610, 0.0
        %vm3804 = vcmp.gt.f32.partialorder %v3611, 0.0
        %vm3805 = vcmp.gt.f32.partialorder %v3612, 0.0
        %vm3806 = vcmp.gt.f32.partialorder %v3613, 0.0
        %vm3807 = vcmp.gt.f32.partialorder %v3614, 0.0
        %vm3808 = vcmp.gt.f32.partialorder %v3615, 0.0
        %vm3809 = vcmp.gt.f32.partialorder %v3616, 0.0
        %vm3810 = vcmp.gt.f32.partialorder %v3617, 0.0
        %vm3811 = vcmp.gt.f32.partialorder %v3618, 0.0
        %vm3812 = vcmp.gt.f32.partialorder %v3619, 0.0
        %vm3813 = vcmp.gt.f32.partialorder %v3620, 0.0
        %vm3814 = vcmp.gt.f32.partialorder %v3621, 0.0
        %vm3815 = vcmp.gt.f32.partialorder %v3622, 0.0
        %vm3816 = vcmp.gt.f32.partialorder %v3623, 0.0
        %vm3817 = vcmp.gt.f32.partialorder %v3624, 0.0
        %vm3818 = vcmp.gt.f32.partialorder %v3625, 0.0
        %vm3819 = vcmp.gt.f32.partialorder %v3626, 0.0
        %vm3820 = vcmp.gt.f32.partialorder %v3627, 0.0
        %vm3821 = vcmp.gt.f32.partialorder %v3628, 0.0
        %vm3822 = vcmp.gt.f32.partialorder %v3629, 0.0
        %v3823 = vsel %vm3791, 0.0, %v3727
        %v3824 = vsel %vm3792, 0.0, %v3728
        %v3825 = vsel %vm3793, 0.0, %v3729
        %v3826 = vsel %vm3794, 0.0, %v3730
        %v3827 = vsel %vm3795, 0.0, %v3731
        %v3828 = vsel %vm3796, 0.0, %v3732
        %v3829 = vsel %vm3797, 0.0, %v3733
        %v3830 = vsel %vm3798, 0.0, %v3734
        %v3831 = vsel %vm3799, 0.0, %v3735
        %v3832 = vsel %vm3800, 0.0, %v3736
        %v3833 = vsel %vm3801, 0.0, %v3737
        %v3834 = vsel %vm3802, 0.0, %v3738
        %v3835 = vsel %vm3803, 0.0, %v3739
        %v3836 = vsel %vm3804, 0.0, %v3740
        %v3837 = vsel %vm3805, 0.0, %v3741
        %v3838 = vsel %vm3806, 0.0, %v3742
        %v3839 = vsel %vm3807, 0.0, %v3743
        %v3840 = vsel %vm3808, 0.0, %v3744
        %v3841 = vsel %vm3809, 0.0, %v3745
        %v3842 = vsel %vm3810, 0.0, %v3746
        %v3843 = vsel %vm3811, 0.0, %v3747
        %v3844 = vsel %vm3812, 0.0, %v3748
        %v3845 = vsel %vm3813, 0.0, %v3749
        %v3846 = vsel %vm3814, 0.0, %v3750
        %v3847 = vsel %vm3815, 0.0, %v3751
        %v3848 = vsel %vm3816, 0.0, %v3752
        %v3849 = vsel %vm3817, 0.0, %v3753
        %v3850 = vsel %vm3818, 0.0, %v3754
        %v3851 = vsel %vm3819, 0.0, %v3755
        %v3852 = vsel %vm3820, 0.0, %v3756
        %v3853 = vsel %vm3821, 0.0, %v3757
        %v3854 = vsel %vm3822, 0.0, %v3758
        %v3855 = vadd.f32 %v3759, %v3823
        %v3856 = vadd.f32 %v3760, %v3824
        %v3857 = vadd.f32 %v3761, %v3825
        %v3858 = vadd.f32 %v3762, %v3826
        %v3859 = vadd.f32 %v3763, %v3827
        %v3860 = vadd.f32 %v3764, %v3828
        %v3861 = vadd.f32 %v3765, %v3829
        %v3862 = vadd.f32 %v3766, %v3830
        %v3863 = vadd.f32 %v3767, %v3831
        %v3864 = vadd.f32 %v3768, %v3832
        %v3865 = vadd.f32 %v3769, %v3833
        %v3866 = vadd.f32 %v3770, %v3834
        %v3867 = vadd.f32 %v3771, %v3835
        %v3868 = vadd.f32 %v3772, %v3836
        %v3869 = vadd.f32 %v3773, %v3837
        %v3870 = vadd.f32 %v3774, %v3838
        %v3871 = vadd.f32 %v3775, %v3839
        %v3872 = vadd.f32 %v3776, %v3840
        %v3873 = vadd.f32 %v3777, %v3841
        %v3874 = vadd.f32 %v3778, %v3842
        %v3875 = vadd.f32 %v3779, %v3843
        %v3876 = vadd.f32 %v3780, %v3844
        %v3877 = vadd.f32 %v3781, %v3845
        %v3878 = vadd.f32 %v3782, %v3846
        %v3879 = vadd.f32 %v3783, %v3847
        %v3880 = vadd.f32 %v3784, %v3848
        %v3881 = vadd.f32 %v3785, %v3849
        %v3882 = vadd.f32 %v3786, %v3850
        %v3883 = vadd.f32 %v3787, %v3851
        %v3884 = vadd.f32 %v3788, %v3852
        %v3885 = vadd.f32 %v3789, %v3853
        %v3886 = vadd.f32 %v3790, %v3854
        %vm3887 = vcmp.ge.f32.partialorder %v3855, 40.0
        %vm3888 = vcmp.ge.f32.partialorder %v3856, 40.0
        %vm3889 = vcmp.ge.f32.partialorder %v3857, 40.0
        %vm3890 = vcmp.ge.f32.partialorder %v3858, 40.0
        %vm3891 = vcmp.ge.f32.partialorder %v3859, 40.0
        %vm3892 = vcmp.ge.f32.partialorder %v3860, 40.0
        %vm3893 = vcmp.ge.f32.partialorder %v3861, 40.0
        %vm3894 = vcmp.ge.f32.partialorder %v3862, 40.0
        %vm3895 = vcmp.ge.f32.partialorder %v3863, 40.0
        %vm3896 = vcmp.ge.f32.partialorder %v3864, 40.0
        %vm3897 = vcmp.ge.f32.partialorder %v3865, 40.0
        %vm3898 = vcmp.ge.f32.partialorder %v3866, 40.0
        %vm3899 = vcmp.ge.f32.partialorder %v3867, 40.0
        %vm3900 = vcmp.ge.f32.partialorder %v3868, 40.0
        %vm3901 = vcmp.ge.f32.partialorder %v3869, 40.0
        %vm3902 = vcmp.ge.f32.partialorder %v3870, 40.0
        %vm3903 = vcmp.ge.f32.partialorder %v3871, 40.0
        %vm3904 = vcmp.ge.f32.partialorder %v3872, 40.0
        %vm3905 = vcmp.ge.f32.partialorder %v3873, 40.0
        %vm3906 = vcmp.ge.f32.partialorder %v3874, 40.0
        %vm3907 = vcmp.ge.f32.partialorder %v3875, 40.0
        %vm3908 = vcmp.ge.f32.partialorder %v3876, 40.0
        %vm3909 = vcmp.ge.f32.partialorder %v3877, 40.0
        %vm3910 = vcmp.ge.f32.partialorder %v3878, 40.0
        %vm3911 = vcmp.ge.f32.partialorder %v3879, 40.0
        %vm3912 = vcmp.ge.f32.partialorder %v3880, 40.0
        %vm3913 = vcmp.ge.f32.partialorder %v3881, 40.0
        %vm3914 = vcmp.ge.f32.partialorder %v3882, 40.0
        %vm3915 = vcmp.ge.f32.partialorder %v3883, 40.0
        %vm3916 = vcmp.ge.f32.partialorder %v3884, 40.0
        %vm3917 = vcmp.ge.f32.partialorder %v3885, 40.0
        %vm3918 = vcmp.ge.f32.partialorder %v3886, 40.0
        %vm3919 = vmpackc.low %vm3889, %vm3887
        %vm3920 = vmpackc.low %vm3893, %vm3891
        %v3921 = vsel %vm3919, 16711935, 0
        %v3922 = vsel %vm3920, 16711935, 0
        %v3923 = vpack.c.b8 %v3922, %v3921
        %vm3924 = vnez %v3923
        %vm3925 = vmpackc.low %vm3890, %vm3888
        %vm3926 = vmpackc.low %vm3894, %vm3892
        %v3927 = vsel %vm3925, 16711935, 0
        %v3928 = vsel %vm3926, 16711935, 0
        %v3929 = vpack.c.b8 %v3928, %v3927
        %vm3930 = vnez %v3929
        %vm3931 = vmpackc.low %vm3897, %vm3895
        %vm3932 = vmpackc.low %vm3901, %vm3899
        %v3933 = vsel %vm3931, 16711935, 0
        %v3934 = vsel %vm3932, 16711935, 0
        %v3935 = vpack.c.b8 %v3934, %v3933
        %vm3936 = vnez %v3935
        %vm3937 = vmpackc.low %vm3898, %vm3896
        %vm3938 = vmpackc.low %vm3902, %vm3900
        %v3939 = vsel %vm3937, 16711935, 0
        %v3940 = vsel %vm3938, 16711935, 0
        %v3941 = vpack.c.b8 %v3940, %v3939
        %vm3942 = vnez %v3941
        %vm3943 = vmpackc.low %vm3905, %vm3903
        %vm3944 = vmpackc.low %vm3909, %vm3907
        %v3945 = vsel %vm3943, 16711935, 0
        %v3946 = vsel %vm3944, 16711935, 0
        %v3947 = vpack.c.b8 %v3946, %v3945
        %vm3948 = vnez %v3947
        %vm3949 = vmpackc.low %vm3906, %vm3904
        %vm3950 = vmpackc.low %vm3910, %vm3908
        %v3951 = vsel %vm3949, 16711935, 0
        %v3952 = vsel %vm3950, 16711935, 0
        %v3953 = vpack.c.b8 %v3952, %v3951
        %vm3954 = vnez %v3953
        %vm3955 = vmpackc.low %vm3913, %vm3911
        %vm3956 = vmpackc.low %vm3917, %vm3915
        %v3957 = vsel %vm3955, 16711935, 0
        %v3958 = vsel %vm3956, 16711935, 0
        %v3959 = vpack.c.b8 %v3958, %v3957
        %vm3960 = vnez %v3959
        %vm3961 = vmpackc.low %vm3914, %vm3912
        %vm3962 = vmpackc.low %vm3918, %vm3916
        %v3963 = vsel %vm3961, 16711935, 0
        %v3964 = vsel %vm3962, 16711935, 0
        %v3965 = vpack.c.b8 %v3964, %v3963
        %vm3966 = vnez %v3965
        %v3967 = vsel %vm3924, 16843009, 0
        %v3968 = vsel %vm3930, 16843009, 0
        %v3969 = vsel %vm3936, 16843009, 0
        %v3970 = vsel %vm3942, 16843009, 0
        %v3971 = vsel %vm3948, 16843009, 0
        %v3972 = vsel %vm3954, 16843009, 0
        %v3973 = vsel %vm3960, 16843009, 0
        %v3974 = vsel %vm3966, 16843009, 0
        %s3975 = scalar_lea.vmem %s483, 448 [#allocation11]
        %3976 = vst [vmem:[%s3975] sm:$0xff] %v3967
        %3977 = vst [vmem:[%s3975 + $0x8] sm:$0xff] %v3968
        %3978 = vst [vmem:[%s3975 + $0x10] sm:$0xff] %v3969
        %3979 = vst [vmem:[%s3975 + $0x18] sm:$0xff] %v3970
        %3980 = vst [vmem:[%s3975 + $0x20] sm:$0xff] %v3971
        %3981 = vst [vmem:[%s3975 + $0x28] sm:$0xff] %v3972
        %3982 = vst [vmem:[%s3975 + $0x30] sm:$0xff] %v3973
        %3983 = vst [vmem:[%s3975 + $0x38] sm:$0xff] %v3974
        %v3984 = vsub.f32 %v3598, 0.1
        %v3985 = vsub.f32 %v3599, 0.1
        %v3986 = vsub.f32 %v3600, 0.1
        %v3987 = vsub.f32 %v3601, 0.1
        %v3988 = vsub.f32 %v3602, 0.1
        %v3989 = vsub.f32 %v3603, 0.1
        %v3990 = vsub.f32 %v3604, 0.1
        %v3991 = vsub.f32 %v3605, 0.1
        %v3992 = vsub.f32 %v3606, 0.1
        %v3993 = vsub.f32 %v3607, 0.1
        %v3994 = vsub.f32 %v3608, 0.1
        %v3995 = vsub.f32 %v3609, 0.1
        %v3996 = vsub.f32 %v3610, 0.1
        %v3997 = vsub.f32 %v3611, 0.1
        %v3998 = vsub.f32 %v3612, 0.1
        %v3999 = vsub.f32 %v3613, 0.1
        %v4000 = vsub.f32 %v3614, 0.1
        %v4001 = vsub.f32 %v3615, 0.1
        %v4002 = vsub.f32 %v3616, 0.1
        %v4003 = vsub.f32 %v3617, 0.1
        %v4004 = vsub.f32 %v3618, 0.1
        %v4005 = vsub.f32 %v3619, 0.1
        %v4006 = vsub.f32 %v3620, 0.1
        %v4007 = vsub.f32 %v3621, 0.1
        %v4008 = vsub.f32 %v3622, 0.1
        %v4009 = vsub.f32 %v3623, 0.1
        %v4010 = vsub.f32 %v3624, 0.1
        %v4011 = vsub.f32 %v3625, 0.1
        %v4012 = vsub.f32 %v3626, 0.1
        %v4013 = vsub.f32 %v3627, 0.1
        %v4014 = vsub.f32 %v3628, 0.1
        %v4015 = vsub.f32 %v3629, 0.1
        %v4016 = vsel %vm3887, 5.0, %v3984
        %v4017 = vsel %vm3888, 5.0, %v3985
        %v4018 = vsel %vm3889, 5.0, %v3986
        %v4019 = vsel %vm3890, 5.0, %v3987
        %v4020 = vsel %vm3891, 5.0, %v3988
        %v4021 = vsel %vm3892, 5.0, %v3989
        %v4022 = vsel %vm3893, 5.0, %v3990
        %v4023 = vsel %vm3894, 5.0, %v3991
        %v4024 = vsel %vm3895, 5.0, %v3992
        %v4025 = vsel %vm3896, 5.0, %v3993
        %v4026 = vsel %vm3897, 5.0, %v3994
        %v4027 = vsel %vm3898, 5.0, %v3995
        %v4028 = vsel %vm3899, 5.0, %v3996
        %v4029 = vsel %vm3900, 5.0, %v3997
        %v4030 = vsel %vm3901, 5.0, %v3998
        %v4031 = vsel %vm3902, 5.0, %v3999
        %v4032 = vsel %vm3903, 5.0, %v4000
        %v4033 = vsel %vm3904, 5.0, %v4001
        %v4034 = vsel %vm3905, 5.0, %v4002
        %v4035 = vsel %vm3906, 5.0, %v4003
        %v4036 = vsel %vm3907, 5.0, %v4004
        %v4037 = vsel %vm3908, 5.0, %v4005
        %v4038 = vsel %vm3909, 5.0, %v4006
        %v4039 = vsel %vm3910, 5.0, %v4007
        %v4040 = vsel %vm3911, 5.0, %v4008
        %v4041 = vsel %vm3912, 5.0, %v4009
        %v4042 = vsel %vm3913, 5.0, %v4010
        %v4043 = vsel %vm3914, 5.0, %v4011
        %v4044 = vsel %vm3915, 5.0, %v4012
        %v4045 = vsel %vm3916, 5.0, %v4013
        %v4046 = vsel %vm3917, 5.0, %v4014
        %v4047 = vsel %vm3918, 5.0, %v4015
        %v4048 = vsel %vm3887, 0.0, %v3855
        %v4049 = vsel %vm3888, 0.0, %v3856
        %v4050 = vsel %vm3889, 0.0, %v3857
        %v4051 = vsel %vm3890, 0.0, %v3858
        %v4052 = vsel %vm3891, 0.0, %v3859
        %v4053 = vsel %vm3892, 0.0, %v3860
        %v4054 = vsel %vm3893, 0.0, %v3861
        %v4055 = vsel %vm3894, 0.0, %v3862
        %v4056 = vsel %vm3895, 0.0, %v3863
        %v4057 = vsel %vm3896, 0.0, %v3864
        %v4058 = vsel %vm3897, 0.0, %v3865
        %v4059 = vsel %vm3898, 0.0, %v3866
        %v4060 = vsel %vm3899, 0.0, %v3867
        %v4061 = vsel %vm3900, 0.0, %v3868
        %v4062 = vsel %vm3901, 0.0, %v3869
        %v4063 = vsel %vm3902, 0.0, %v3870
        %v4064 = vsel %vm3903, 0.0, %v3871
        %v4065 = vsel %vm3904, 0.0, %v3872
        %v4066 = vsel %vm3905, 0.0, %v3873
        %v4067 = vsel %vm3906, 0.0, %v3874
        %v4068 = vsel %vm3907, 0.0, %v3875
        %v4069 = vsel %vm3908, 0.0, %v3876
        %v4070 = vsel %vm3909, 0.0, %v3877
        %v4071 = vsel %vm3910, 0.0, %v3878
        %v4072 = vsel %vm3911, 0.0, %v3879
        %v4073 = vsel %vm3912, 0.0, %v3880
        %v4074 = vsel %vm3913, 0.0, %v3881
        %v4075 = vsel %vm3914, 0.0, %v3882
        %v4076 = vsel %vm3915, 0.0, %v3883
        %v4077 = vsel %vm3916, 0.0, %v3884
        %v4078 = vsel %vm3917, 0.0, %v3885
        %v4079 = vsel %vm3918, 0.0, %v3886
        %v4080 = vmul.f32 %v3694, 0.99004984
        %v4081 = vmul.f32 %v3695, 0.99004984
        %v4082 = vmul.f32 %v3696, 0.99004984
        %v4083 = vmul.f32 %v3697, 0.99004984
        %v4084 = vmul.f32 %v3698, 0.99004984
        %v4085 = vmul.f32 %v3699, 0.99004984
        %v4086 = vmul.f32 %v3700, 0.99004984
        %v4087 = vmul.f32 %v3701, 0.99004984
        %v4088 = vmul.f32 %v3702, 0.99004984
        %v4089 = vmul.f32 %v3703, 0.99004984
        %v4090 = vmul.f32 %v3704, 0.99004984
        %v4091 = vmul.f32 %v3705, 0.99004984
        %v4092 = vmul.f32 %v3706, 0.99004984
        %v4093 = vmul.f32 %v3707, 0.99004984
        %v4094 = vmul.f32 %v3708, 0.99004984
        %v4095 = vmul.f32 %v3709, 0.99004984
        %v4096 = vmul.f32 %v3710, 0.99004984
        %v4097 = vmul.f32 %v3711, 0.99004984
        %v4098 = vmul.f32 %v3712, 0.99004984
        %v4099 = vmul.f32 %v3713, 0.99004984
        %v4100 = vmul.f32 %v3714, 0.99004984
        %v4101 = vmul.f32 %v3715, 0.99004984
        %v4102 = vmul.f32 %v3716, 0.99004984
        %v4103 = vmul.f32 %v3717, 0.99004984
        %v4104 = vmul.f32 %v3718, 0.99004984
        %v4105 = vmul.f32 %v3719, 0.99004984
        %v4106 = vmul.f32 %v3720, 0.99004984
        %v4107 = vmul.f32 %v3721, 0.99004984
        %v4108 = vmul.f32 %v3722, 0.99004984
        %v4109 = vmul.f32 %v3723, 0.99004984
        %v4110 = vmul.f32 %v3724, 0.99004984
        %v4111 = vmul.f32 %v3725, 0.99004984
        %v4112 = vsel %vm3887, 1.0, %v4080
        %v4113 = vsel %vm3888, 1.0, %v4081
        %v4114 = vsel %vm3889, 1.0, %v4082
        %v4115 = vsel %vm3890, 1.0, %v4083
        %v4116 = vsel %vm3891, 1.0, %v4084
        %v4117 = vsel %vm3892, 1.0, %v4085
        %v4118 = vsel %vm3893, 1.0, %v4086
        %v4119 = vsel %vm3894, 1.0, %v4087
        %v4120 = vsel %vm3895, 1.0, %v4088
        %v4121 = vsel %vm3896, 1.0, %v4089
        %v4122 = vsel %vm3897, 1.0, %v4090
        %v4123 = vsel %vm3898, 1.0, %v4091
        %v4124 = vsel %vm3899, 1.0, %v4092
        %v4125 = vsel %vm3900, 1.0, %v4093
        %v4126 = vsel %vm3901, 1.0, %v4094
        %v4127 = vsel %vm3902, 1.0, %v4095
        %v4128 = vsel %vm3903, 1.0, %v4096
        %v4129 = vsel %vm3904, 1.0, %v4097
        %v4130 = vsel %vm3905, 1.0, %v4098
        %v4131 = vsel %vm3906, 1.0, %v4099
        %v4132 = vsel %vm3907, 1.0, %v4100
        %v4133 = vsel %vm3908, 1.0, %v4101
        %v4134 = vsel %vm3909, 1.0, %v4102
        %v4135 = vsel %vm3910, 1.0, %v4103
        %v4136 = vsel %vm3911, 1.0, %v4104
        %v4137 = vsel %vm3912, 1.0, %v4105
        %v4138 = vsel %vm3913, 1.0, %v4106
        %v4139 = vsel %vm3914, 1.0, %v4107
        %v4140 = vsel %vm3915, 1.0, %v4108
        %v4141 = vsel %vm3916, 1.0, %v4109
        %v4142 = vsel %vm3917, 1.0, %v4110
        %v4143 = vsel %vm3918, 1.0, %v4111
        %4144 = vst [vmem:[%s476] sm:$0xff] %v4048
        %4145 = vst [vmem:[%s476 + $0x8] sm:$0xff] %v4049
        %4146 = vst [vmem:[%s476 + $0x10] sm:$0xff] %v4050
        %4147 = vst [vmem:[%s476 + $0x18] sm:$0xff] %v4051
        %4148 = vst [vmem:[%s476 + $0x20] sm:$0xff] %v4052
        %4149 = vst [vmem:[%s476 + $0x28] sm:$0xff] %v4053
        %4150 = vst [vmem:[%s476 + $0x30] sm:$0xff] %v4054
        %4151 = vst [vmem:[%s476 + $0x38] sm:$0xff] %v4055
        %4152 = vst [vmem:[%s476 + $0x40] sm:$0xff] %v4056
        %4153 = vst [vmem:[%s476 + $0x48] sm:$0xff] %v4057
        %4154 = vst [vmem:[%s476 + $0x50] sm:$0xff] %v4058
        %4155 = vst [vmem:[%s476 + $0x58] sm:$0xff] %v4059
        %4156 = vst [vmem:[%s476 + $0x60] sm:$0xff] %v4060
        %4157 = vst [vmem:[%s476 + $0x68] sm:$0xff] %v4061
        %4158 = vst [vmem:[%s476 + $0x70] sm:$0xff] %v4062
        %4159 = vst [vmem:[%s476 + $0x78] sm:$0xff] %v4063
        %4160 = vst [vmem:[%s476 + $0x80] sm:$0xff] %v4064
        %4161 = vst [vmem:[%s476 + $0x88] sm:$0xff] %v4065
        %4162 = vst [vmem:[%s476 + $0x90] sm:$0xff] %v4066
        %4163 = vst [vmem:[%s476 + $0x98] sm:$0xff] %v4067
        %4164 = vst [vmem:[%s476 + $0xa0] sm:$0xff] %v4068
        %4165 = vst [vmem:[%s476 + $0xa8] sm:$0xff] %v4069
        %4166 = vst [vmem:[%s476 + $0xb0] sm:$0xff] %v4070
        %4167 = vst [vmem:[%s476 + $0xb8] sm:$0xff] %v4071
        %4168 = vst [vmem:[%s476 + $0xc0] sm:$0xff] %v4072
        %4169 = vst [vmem:[%s476 + $0xc8] sm:$0xff] %v4073
        %4170 = vst [vmem:[%s476 + $0xd0] sm:$0xff] %v4074
        %4171 = vst [vmem:[%s476 + $0xd8] sm:$0xff] %v4075
        %4172 = vst [vmem:[%s476 + $0xe0] sm:$0xff] %v4076
        %4173 = vst [vmem:[%s476 + $0xe8] sm:$0xff] %v4077
        %4174 = vst [vmem:[%s476 + $0xf0] sm:$0xff] %v4078
        %4175 = vst [vmem:[%s476 + $0xf8] sm:$0xff] %v4079
        %4176 = vst [vmem:[%s490] sm:$0xff] %v4016
        %4177 = vst [vmem:[%s490 + $0x8] sm:$0xff] %v4017
        %4178 = vst [vmem:[%s490 + $0x10] sm:$0xff] %v4018
        %4179 = vst [vmem:[%s490 + $0x18] sm:$0xff] %v4019
        %4180 = vst [vmem:[%s490 + $0x20] sm:$0xff] %v4020
        %4181 = vst [vmem:[%s490 + $0x28] sm:$0xff] %v4021
        %4182 = vst [vmem:[%s490 + $0x30] sm:$0xff] %v4022
        %4183 = vst [vmem:[%s490 + $0x38] sm:$0xff] %v4023
        %4184 = vst [vmem:[%s490 + $0x40] sm:$0xff] %v4024
        %4185 = vst [vmem:[%s490 + $0x48] sm:$0xff] %v4025
        %4186 = vst [vmem:[%s490 + $0x50] sm:$0xff] %v4026
        %4187 = vst [vmem:[%s490 + $0x58] sm:$0xff] %v4027
        %4188 = vst [vmem:[%s490 + $0x60] sm:$0xff] %v4028
        %4189 = vst [vmem:[%s490 + $0x68] sm:$0xff] %v4029
        %4190 = vst [vmem:[%s490 + $0x70] sm:$0xff] %v4030
        %4191 = vst [vmem:[%s490 + $0x78] sm:$0xff] %v4031
        %4192 = vst [vmem:[%s490 + $0x80] sm:$0xff] %v4032
        %4193 = vst [vmem:[%s490 + $0x88] sm:$0xff] %v4033
        %4194 = vst [vmem:[%s490 + $0x90] sm:$0xff] %v4034
        %4195 = vst [vmem:[%s490 + $0x98] sm:$0xff] %v4035
        %4196 = vst [vmem:[%s490 + $0xa0] sm:$0xff] %v4036
        %4197 = vst [vmem:[%s490 + $0xa8] sm:$0xff] %v4037
        %4198 = vst [vmem:[%s490 + $0xb0] sm:$0xff] %v4038
        %4199 = vst [vmem:[%s490 + $0xb8] sm:$0xff] %v4039
        %4200 = vst [vmem:[%s490 + $0xc0] sm:$0xff] %v4040
        %4201 = vst [vmem:[%s490 + $0xc8] sm:$0xff] %v4041
        %4202 = vst [vmem:[%s490 + $0xd0] sm:$0xff] %v4042
        %4203 = vst [vmem:[%s490 + $0xd8] sm:$0xff] %v4043
        %4204 = vst [vmem:[%s490 + $0xe0] sm:$0xff] %v4044
        %4205 = vst [vmem:[%s490 + $0xe8] sm:$0xff] %v4045
        %4206 = vst [vmem:[%s490 + $0xf0] sm:$0xff] %v4046
        %4207 = vst [vmem:[%s490 + $0xf8] sm:$0xff] %v4047
        %4208 = vst [vmem:[%s497] sm:$0xff] %v4112
        %4209 = vst [vmem:[%s497 + $0x8] sm:$0xff] %v4113
        %4210 = vst [vmem:[%s497 + $0x10] sm:$0xff] %v4114
        %4211 = vst [vmem:[%s497 + $0x18] sm:$0xff] %v4115
        %4212 = vst [vmem:[%s497 + $0x20] sm:$0xff] %v4116
        %4213 = vst [vmem:[%s497 + $0x28] sm:$0xff] %v4117
        %4214 = vst [vmem:[%s497 + $0x30] sm:$0xff] %v4118
        %4215 = vst [vmem:[%s497 + $0x38] sm:$0xff] %v4119
        %4216 = vst [vmem:[%s497 + $0x40] sm:$0xff] %v4120
        %4217 = vst [vmem:[%s497 + $0x48] sm:$0xff] %v4121
        %4218 = vst [vmem:[%s497 + $0x50] sm:$0xff] %v4122
        %4219 = vst [vmem:[%s497 + $0x58] sm:$0xff] %v4123
        %4220 = vst [vmem:[%s497 + $0x60] sm:$0xff] %v4124
        %4221 = vst [vmem:[%s497 + $0x68] sm:$0xff] %v4125
        %4222 = vst [vmem:[%s497 + $0x70] sm:$0xff] %v4126
        %4223 = vst [vmem:[%s497 + $0x78] sm:$0xff] %v4127
        %4224 = vst [vmem:[%s497 + $0x80] sm:$0xff] %v4128
        %4225 = vst [vmem:[%s497 + $0x88] sm:$0xff] %v4129
        %4226 = vst [vmem:[%s497 + $0x90] sm:$0xff] %v4130
        %4227 = vst [vmem:[%s497 + $0x98] sm:$0xff] %v4131
        %4228 = vst [vmem:[%s497 + $0xa0] sm:$0xff] %v4132
        %4229 = vst [vmem:[%s497 + $0xa8] sm:$0xff] %v4133
        %4230 = vst [vmem:[%s497 + $0xb0] sm:$0xff] %v4134
        %4231 = vst [vmem:[%s497 + $0xb8] sm:$0xff] %v4135
        %4232 = vst [vmem:[%s497 + $0xc0] sm:$0xff] %v4136
        %4233 = vst [vmem:[%s497 + $0xc8] sm:$0xff] %v4137
        %4234 = vst [vmem:[%s497 + $0xd0] sm:$0xff] %v4138
        %4235 = vst [vmem:[%s497 + $0xd8] sm:$0xff] %v4139
        %4236 = vst [vmem:[%s497 + $0xe0] sm:$0xff] %v4140
        %4237 = vst [vmem:[%s497 + $0xe8] sm:$0xff] %v4141
        %4238 = vst [vmem:[%s497 + $0xf0] sm:$0xff] %v4142
        %4239 = vst [vmem:[%s497 + $0xf8] sm:$0xff] %v4143
        %s4240 = sand.u32 %s163, 1
        %s4241 = scalar_lea.sflag [#allocation4], %s4240
        %s4242 = sand.u32 %s163, 1
        %s4243 = smul.addr %s4242, 256
        %s4244 = scalar_lea.vmem [#allocation10], %s4243
        %s4245 = sand.u32 %s37, 1
        %s4246 = scalar_lea.sflag [#allocation12], %s4245
        %s4247 = sand.u32 %s191, 1
        %s4248 = smul.addr %s4247, 512
        %s4249 = scalar_lea.vmem [#allocation11], %s4248
        %s4250 = sand.u32 %s37, 1
        %s4251 = scalar_lea.sflag [#allocation12], %s4250
        %s4252 = sand.u32 %s217, 1
        %s4253 = smul.addr %s4252, 256
        %s4254 = scalar_lea.vmem [#allocation13], %s4253
        %s4255 = sand.u32 %s243, 1
        %s4256 = scalar_lea.sflag [#allocation15], %s4255
        %s4257 = sand.u32 %s243, 1
        %s4258 = smul.addr %s4257, 256
        %s4259 = scalar_lea.vmem [#allocation14], %s4258
        // Predicated region
        $region57: #{boosted_lif_forward.1} parent=35 // pred_check
          %p4260 = pneg %p173
        $region58: #{boosted_lif_forward.1} parent=35 // pred_check_branch
          %4262 = sbr.rel (%p4260) target = $region60
        $region59: #{boosted_lif_forward.1} parent=35 // pred_region
          %s4263 = smul.u32 16, %s41
          %4265 = vsyncadd %s4241, 0
          %s4266 = smul.addr %s4263, 2
          %s4267 = smul.addr %s4266, 8
          %s4268 = scalar_lea.hbm %s4, %s4267
          %s4269 = sshll.u32 %s4244, 4
          %s4270 = int_to_ptr.vmem [resolvable:$true] %s4269
          %s4271 = sshll.u32 %s4268, 4
          %s4272 = int_to_ptr.hbm [resolvable:$true] %s4271
          %4277 = dma.vmem_to_hbm [thread:$0]  %s4270, 4096, %s4272, %s4241, 256, 256, 16
        $region60: #{boosted_lif_forward.1} parent=35 // pred_fallthru
          _
        // Predicated region
        $region61: #{boosted_lif_forward.1} parent=35 // pred_check
          %p4278 = pneg %p201
        $region62: #{boosted_lif_forward.1} parent=35 // pred_check_branch
          %4280 = sbr.rel (%p4278) target = $region64
        $region63: #{boosted_lif_forward.1} parent=35 // pred_region
          #allocation19 [shape = 'u32[6]{0}', space=smem, size = 0x18, scoped, tag = 'DMA stride descriptor']
          %s4281 = smul.u32 8, %s42
          %s4282 = smul.u32 4, %s41
          %4284 = vsyncadd %s4246, 0
          %s4285 = smul.addr %s4282, 2
          %s4286 = smul.addr %s4281, 16
          %s4287 = sadd.s32 %s4285, %s4286
          %s4288 = smul.addr %s4287, 8
          %s4289 = scalar_lea.hbm %s5, %s4288
          %s4291 = sshll.u32 1, 14
          %s4292 = sxor.u32 4294967295, %s4291
          %s4295 = sshll.u32 7, 18
          %s4296 = sxor.u32 4294967295, %s4295
          %s4297 = sand.u32 0, %s4296
          %s4299 = sor.u32 %s4297, 0
          %s4300 = sshll.u32 %s4249, 4
          %s4301 = int_to_ptr.vmem [resolvable:$true] %s4300
          %s4302 = sshll.u32 %s4289, 4
          %s4303 = int_to_ptr.hbm [resolvable:$true] %s4302
          %4309 = sst [smem:[#allocation19]] 1024
          %s4310 = scalar_lea.smem [#allocation19], 1
          %4311 = sst [smem:[%s4310]] 2048
          %s4312 = scalar_lea.smem [#allocation19], 2
          %4313 = sst [smem:[%s4312]] 4
          %s4314 = scalar_lea.smem [#allocation19], 3
          %4315 = sst [smem:[%s4314]] 256
          %s4316 = scalar_lea.smem [#allocation19], 4
          %4317 = sst [smem:[%s4316]] 256
          %s4318 = scalar_lea.smem [#allocation19], 5
          %4319 = sst [smem:[%s4318]] 16
          %4321 = dma.general %s4301, 8192, %s4303, %s4246, [#allocation18], [#allocation19], %s4299, 0
        $region64: #{boosted_lif_forward.1} parent=35 // pred_fallthru
          _
        // Predicated region
        $region65: #{boosted_lif_forward.1} parent=35 // pred_check
          %p4322 = pneg %p227
        $region66: #{boosted_lif_forward.1} parent=35 // pred_check_branch
          %4324 = sbr.rel (%p4322) target = $region68
        $region67: #{boosted_lif_forward.1} parent=35 // pred_region
          %s4325 = smul.u32 16, %s41
          %4327 = vsyncadd %s4251, 0
          %s4328 = smul.addr %s4325, 2
          %s4329 = smul.addr %s4328, 8
          %s4330 = scalar_lea.hbm %s6, %s4329
          %s4331 = sshll.u32 %s4254, 4
          %s4332 = int_to_ptr.vmem [resolvable:$true] %s4331
          %s4333 = sshll.u32 %s4330, 4
          %s4334 = int_to_ptr.hbm [resolvable:$true] %s4333
          %4339 = dma.vmem_to_hbm [thread:$0]  %s4332, 4096, %s4334, %s4251, 256, 256, 16
        $region68: #{boosted_lif_forward.1} parent=35 // pred_fallthru
          _
        // Predicated region
        $region69: #{boosted_lif_forward.1} parent=35 // pred_check
          %p4340 = pneg %p253
        $region70: #{boosted_lif_forward.1} parent=35 // pred_check_branch
          %4342 = sbr.rel (%p4340) target = $region72
        $region71: #{boosted_lif_forward.1} parent=35 // pred_region
          %s4343 = smul.u32 16, %s41
          %4345 = vsyncadd %s4256, 0
          %s4346 = smul.addr %s4343, 2
          %s4347 = smul.addr %s4346, 8
          %s4348 = scalar_lea.hbm %s7, %s4347
          %s4349 = sshll.u32 %s4259, 4
          %s4350 = int_to_ptr.vmem [resolvable:$true] %s4349
          %s4351 = sshll.u32 %s4348, 4
          %s4352 = int_to_ptr.hbm [resolvable:$true] %s4351
          %4357 = dma.vmem_to_hbm [thread:$0]  %s4350, 4096, %s4352, %s4256, 256, 256, 16
        $region72: #{boosted_lif_forward.1} parent=35 // pred_fallthru
          _
      $region36: #{boosted_lif_forward.1} parent=5 // pred_fallthru
        _
      %p4358 = scmp.le.s32.totalorder 2, %s32
      // Predicated region
      $region73: #{boosted_lif_forward.1} parent=5 // pred_check
        %p4359 = pneg %p4358
      $region74: #{boosted_lif_forward.1} parent=5 // pred_check_branch
        %4361 = sbr.rel (%p4359) target = $region76
      $region75: #{boosted_lif_forward.1} parent=5 // pred_region
        %s4362 = ssub.s32 %s32, 2
        // Predicated region
        $region77: #{boosted_lif_forward.1} parent=75 // pred_check
          %p4363 = pneg %p179
        $region78: #{boosted_lif_forward.1} parent=75 // pred_check_branch
          %4365 = sbr.rel (%p4363) target = $region80
        $region79: #{boosted_lif_forward.1} parent=75 // pred_region
          %s4366 = sand.u32 %s164, 1
          %s4367 = scalar_lea.sflag [#allocation4], %s4366
          %s4368 = sand.u32 %s164, 1
          %s4369 = smul.addr %s4368, 256
          %s4370 = scalar_lea.vmem [#allocation10], %s4369
          %4372 = dma.done %s4367, 4096
        $region80: #{boosted_lif_forward.1} parent=75 // pred_fallthru
          _
        // Predicated region
        $region81: #{boosted_lif_forward.1} parent=75 // pred_check
          %p4373 = pneg %p207
        $region82: #{boosted_lif_forward.1} parent=75 // pred_check_branch
          %4375 = sbr.rel (%p4373) target = $region84
        $region83: #{boosted_lif_forward.1} parent=75 // pred_region
          %s4376 = sand.u32 %s38, 1
          %s4377 = scalar_lea.sflag [#allocation12], %s4376
          %s4378 = sand.u32 %s192, 1
          %s4379 = smul.addr %s4378, 512
          %s4380 = scalar_lea.vmem [#allocation11], %s4379
          %4382 = dma.done %s4377, 8192
        $region84: #{boosted_lif_forward.1} parent=75 // pred_fallthru
          _
        // Predicated region
        $region85: #{boosted_lif_forward.1} parent=75 // pred_check
          %p4383 = pneg %p233
        $region86: #{boosted_lif_forward.1} parent=75 // pred_check_branch
          %4385 = sbr.rel (%p4383) target = $region88
        $region87: #{boosted_lif_forward.1} parent=75 // pred_region
          %s4386 = sand.u32 %s38, 1
          %s4387 = scalar_lea.sflag [#allocation12], %s4386
          %s4388 = sand.u32 %s218, 1
          %s4389 = smul.addr %s4388, 256
          %s4390 = scalar_lea.vmem [#allocation13], %s4389
          %4392 = dma.done %s4387, 4096
        $region88: #{boosted_lif_forward.1} parent=75 // pred_fallthru
          _
        // Predicated region
        $region89: #{boosted_lif_forward.1} parent=75 // pred_check
          %p4393 = pneg %p259
        $region90: #{boosted_lif_forward.1} parent=75 // pred_check_branch
          %4395 = sbr.rel (%p4393) target = $region92
        $region91: #{boosted_lif_forward.1} parent=75 // pred_region
          %s4396 = sand.u32 %s244, 1
          %s4397 = scalar_lea.sflag [#allocation15], %s4396
          %s4398 = sand.u32 %s244, 1
          %s4399 = smul.addr %s4398, 256
          %s4400 = scalar_lea.vmem [#allocation14], %s4399
          %4402 = dma.done %s4397, 4096
        $region92: #{boosted_lif_forward.1} parent=75 // pred_fallthru
          _
      $region76: #{boosted_lif_forward.1} parent=5 // pred_fallthru
        _
    $region6: #{boosted_lif_forward.1} parent=1 // loop_footer
      %s36 = sadd.s32 1, %s32
    $region7: #{boosted_lif_forward.1} parent=1 // loop_footer_branch
      %31 = sbr.rel target = $region3
    $region8: #{boosted_lif_forward.1} parent=1 // loop_exit
      _
    %4403 = vsyncpa [#allocation3], 1
    %s4404 = scalar_lea.sflag [#allocation3], 1
    %4405 = vsyncpa %s4404, 1
    %4406 = vsyncpa [#allocation6], 1
    %s4407 = scalar_lea.sflag [#allocation6], 1
    %4408 = vsyncpa %s4407, 1
    %4409 = vsyncpa [#allocation9], 1
    %s4410 = scalar_lea.sflag [#allocation9], 1
    %4411 = vsyncpa %s4410, 1
    %4412 = vsyncpa [#allocation4], 1
    %s4413 = scalar_lea.sflag [#allocation4], 1
    %4414 = vsyncpa %s4413, 1
    %4415 = vsyncpa [#allocation12], 1
    %s4416 = scalar_lea.sflag [#allocation12], 1
    %4417 = vsyncpa %s4416, 1
    %4418 = vsyncpa [#allocation15], 1
    %s4419 = scalar_lea.sflag [#allocation15], 1
    %4420 = vsyncpa %s4419, 1

</llo_original>
